<compile_context>
chip_gen: v6e
topology: v6e:2x2x1
jax: 0.10.0
libtpu: 0.0.40
codegen_flags: <defaults>
</compile_context>

<pallas_src>
import functools

import jax
import jax.numpy as jnp
from jax.experimental import pallas as pl
from jax.experimental.pallas import tpu as pltpu

BANDS = ((0.0, 0.1), (0.1, 0.25), (0.25, 0.5), (0.5, 0.75), (0.75, 1.0))
# (stride, padding) per conv layer; kernel sizes come from the weight shapes.
_LAYER_GEOM = (((1, 1), (1, 4)),
               ((1, 2), (1, 4)),
               ((1, 2), (1, 4)),
               ((1, 2), (1, 4)),
               ((1, 1), (1, 1)))

_MAX_TP = 1024   # conv spatial (lane) tile, multiple of 128
_MAX_TT = 512    # spectrogram frame tile


def _round_up(x, m):
    return ((x + m - 1) // m) * m


# ----------------------------------------------------------------------------
# Pallas kernel A: grouped conv matmul.
# One grid step = (batch element, spatial tile); the scalar-prefetched tile->
# group map picks the group's (Cout, K) weight and bias.  Output is lane-dense
# (Cout, TP) bf16, directly in NCHW order.
# ----------------------------------------------------------------------------
def _grouped_conv_kernel(gid_ref, w_ref, x_ref, b_ref, o_ref, *, apply_act, slope):
    del gid_ref  # only used by the index_maps
    acc = jnp.dot(w_ref[...], x_ref[...],
                  preferred_element_type=jnp.float32)        # (Cout, TP) f32
    acc = acc + b_ref[...]                                   # (Cout, 1) broadcast
    if apply_act:
        acc = jnp.where(acc >= 0, acc, slope * acc)          # leaky_relu(0.1) in f32
    o_ref[...] = acc.astype(o_ref.dtype)                     # bf16 writeback


def grouped_conv2d_pallas(xs, ws, bs, stride, padding, *, apply_act, slope=0.1):
    """Apply G independent Conv2d's (one per group/band) in a single pallas_call.

    xs: list of (B, Cin, H_g, W_g); ws: list of (Cout, Cin, KH, KW); bs: (Cout,).
    All groups share B, Cin, Cout, KH, KW, stride, padding.
    Returns a list of (B, Cout, Ho_g, Wo_g) bf16 arrays.
    """
    sh, sw = stride
    ph, pw = padding
    B, Cin = xs[0].shape[0], xs[0].shape[1]
    Cout, _, KH, KW = ws[0].shape
    K = Cin * KH * KW
    G = len(xs)

    # im2col per group (bf16).  TODO(synk): still an XLA-side materialization.
    patches, out_hw = [], []
    for x in xs:
        _, _, H, W = x.shape
        xp = jnp.pad(x, ((0, 0), (0, 0), (ph, ph), (pw, pw))).astype(jnp.bfloat16)
        Hp, Wp = H + 2 * ph, W + 2 * pw
        Ho = (Hp - KH) // sh + 1
        Wo = (Wp - KW) // sw + 1
        sl = []
        for kh in range(KH):
            for kw in range(KW):
                sl.append(xp[:, :, kh:kh + sh * (Ho - 1) + 1:sh,
                                   kw:kw + sw * (Wo - 1) + 1:sw])
        p = jnp.stack(sl, axis=2).reshape(B, K, Ho * Wo)     # cin-major, (kh,kw)-minor
        patches.append(p)
        out_hw.append((Ho, Wo))

    # Pad each group's spatial extent to a tile multiple and concatenate on the
    # lane axis; build the tile -> group map for scalar prefetch.
    P_list = [p.shape[-1] for p in patches]
    TP = min(_MAX_TP, _round_up(max(P_list), 128))
    padded, tile_gid, offs = [], [], []
    off = 0
    for g, p in enumerate(patches):
        Pp = _round_up(p.shape[-1], TP)
        padded.append(jnp.pad(p, ((0, 0), (0, 0), (0, Pp - p.shape[-1]))))
        tile_gid.extend([g] * (Pp // TP))
        offs.append(off)
        off += Pp
    x_cat = jnp.concatenate(padded, axis=-1)                 # (B, K, P_cat) bf16
    P_cat = x_cat.shape[-1]
    n_tiles = P_cat // TP
    tile_gid = jnp.asarray(tile_gid, jnp.int32)              # (n_tiles,)

    w_stack = jnp.stack([w.reshape(Cout, K) for w in ws]).astype(jnp.bfloat16)
    b_stack = jnp.stack([b.reshape(Cout, 1) for b in bs]).astype(jnp.float32)

    kernel = functools.partial(_grouped_conv_kernel, apply_act=apply_act, slope=slope)
    out = pl.pallas_call(
        kernel,
        out_shape=jax.ShapeDtypeStruct((B, Cout, P_cat), jnp.bfloat16),
        grid_spec=pltpu.PrefetchScalarGridSpec(
            num_scalar_prefetch=1,
            grid=(B, n_tiles),
            in_specs=[
                pl.BlockSpec((None, Cout, K), lambda bb, tt, gid: (gid[tt], 0, 0)),
                pl.BlockSpec((None, K, TP), lambda bb, tt, gid: (bb, 0, tt)),
                pl.BlockSpec((None, Cout, 1), lambda bb, tt, gid: (gid[tt], 0, 0)),
            ],
            out_specs=pl.BlockSpec((None, Cout, TP), lambda bb, tt, gid: (bb, 0, tt)),
        ),
        compiler_params=pltpu.CompilerParams(
            dimension_semantics=("parallel", "arbitrary")),
        cost_estimate=pl.CostEstimate(
            flops=int(2 * B * P_cat * K * Cout),
            transcendentals=0,
            bytes_accessed=int(B * K * P_cat * 2 + G * Cout * K * 2
                               + B * Cout * P_cat * 2)),
    )(tile_gid, w_stack, x_cat, b_stack)

    outs = []
    for g, (Ho, Wo) in enumerate(out_hw):
        Pg = Ho * Wo
        outs.append(out[:, :, offs[g]:offs[g] + Pg].reshape(B, Cout, Ho, Wo))
    return outs


def conv2d_pallas(x, w, b, stride, padding, *, apply_act, slope=0.1):
    """Single conv; pads Cout up to 8 so stores stay sublane-dense (Cout=1 post conv)."""
    Cout = w.shape[0]
    Cout_pad = max(8, _round_up(Cout, 8))
    if Cout_pad != Cout:
        w = jnp.pad(w, ((0, Cout_pad - Cout), (0, 0), (0, 0), (0, 0)))
        b = jnp.pad(b, ((0, Cout_pad - Cout),))
    out = grouped_conv2d_pallas([x], [w], [b], stride, padding,
                                apply_act=apply_act, slope=slope)[0]
    return out[:, :Cout]


# ----------------------------------------------------------------------------
# Pallas kernel B: windowed-DFT spectrogram.
# One kernel produces both real and imaginary parts -> output is already
# (B, 2, T, Fpad); downstream band extraction is a plain slice (no stack copy).
# ----------------------------------------------------------------------------
def _spec_kernel(x_ref, dft_ref, o_ref):
    frames = x_ref[...]                                       # (TT, n_fft) bf16
    o_ref[0] = jnp.dot(frames, dft_ref[0],
                       preferred_element_type=jnp.float32).astype(o_ref.dtype)
    o_ref[1] = jnp.dot(frames, dft_ref[1],
                       preferred_element_type=jnp.float32).astype(o_ref.dtype)


def _spec_tile_and_vmem(T, n_fft, Fpad):
    tt = T if T <= _MAX_TT else _MAX_TT
    def est(t):
        return (2 * t * n_fft * 2            # frames, double-buffered bf16
                + 2 * 2 * n_fft * Fpad * 2   # cos/sin DFT (counted double) bf16
                + 2 * 2 * t * Fpad * 2)      # output, double-buffered bf16
    while tt > 64 and est(tt) > 40 * (1 << 20):
        tt //= 2
    limit = int(min(56 * (1 << 20), max(32 * (1 << 20), 2 * est(tt))))
    return tt, limit


def spectrogram_bands(x, window_length, hop, bands_idx):
    """x: (B, T_audio) f32 -> list of (B, 2, T_frames, band_width) bf16 arrays."""
    x = x - x.mean(axis=-1, keepdims=True)
    x = 0.8 * x / (jnp.abs(x).max(axis=-1, keepdims=True) + 1e-9)

    n_fft = window_length
    pad = n_fft // 2
    xp = jnp.pad(x, ((0, 0), (pad, pad)), mode="reflect")
    n_frames = 1 + (xp.shape[1] - n_fft) // hop

    # TODO(synk): framing gather materializes the 4x-overlapped frames tensor.
    starts = jnp.arange(n_frames) * hop
    idx = starts[:, None] + jnp.arange(n_fft)[None, :]
    frames = xp[:, idx].astype(jnp.bfloat16)                  # (B, T, n_fft)

    # Windowed-DFT projection matrices (periodic hann), lane-padded.
    n = jnp.arange(n_fft, dtype=jnp.float32)
    win = 0.5 * (1.0 - jnp.cos(2.0 * jnp.pi * n / n_fft))
    F = n_fft // 2 + 1
    f = jnp.arange(F, dtype=jnp.float32)
    ang = -2.0 * jnp.pi * jnp.outer(n, f) / n_fft
    Fpad = _round_up(F, 128)
    cosm = jnp.pad(jnp.cos(ang) * win[:, None], ((0, 0), (0, Fpad - F)))
    sinm = jnp.pad(jnp.sin(ang) * win[:, None], ((0, 0), (0, Fpad - F)))
    dft = jnp.stack([cosm, sinm]).astype(jnp.bfloat16)        # (2, n_fft, Fpad)

    B, T = x.shape[0], n_frames
    TT, vmem_limit = _spec_tile_and_vmem(T, n_fft, Fpad)
    n_tt = pl.cdiv(T, TT)

    spec = pl.pallas_call(
        _spec_kernel,
        out_shape=jax.ShapeDtypeStruct((B, 2, T, Fpad), jnp.bfloat16),
        grid=(B, n_tt),
        in_specs=[
            pl.BlockSpec((None, TT, n_fft), lambda bb, tt: (bb, tt, 0)),
            pl.BlockSpec((2, n_fft, Fpad), lambda bb, tt: (0, 0, 0)),   # resident
        ],
        out_specs=pl.BlockSpec((None, 2, TT, Fpad), lambda bb, tt: (bb, 0, tt, 0)),
        compiler_params=pltpu.CompilerParams(
            dimension_semantics=("parallel", "arbitrary"),
            vmem_limit_bytes=vmem_limit),
        cost_estimate=pl.CostEstimate(
            flops=int(2 * B * T * n_fft * 2 * Fpad),
            transcendentals=0,
            bytes_accessed=int(B * T * n_fft * 2 + 2 * n_fft * Fpad * 2
                               + B * 2 * T * Fpad * 2)),
    )(frames, dft)

    return [spec[..., b0:b1] for (b0, b1) in bands_idx]


# ----------------------------------------------------------------------------
# DiscriminatorR parameters + forward
# ----------------------------------------------------------------------------
def init_discriminator_r_params(key, channels=32, num_embeddings=None):
    # weight_norm folded into plain weights (inference-time equivalent)
    cfg = [
        (2, channels, (3, 9)),
        (channels, channels, (3, 9)),
        (channels, channels, (3, 9)),
        (channels, channels, (3, 9)),
        (channels, channels, (3, 3)),
    ]
    params = {"band_convs": []}
    for _ in range(len(BANDS)):
        stack = []
        for (cin, cout, (kh, kw)) in cfg:
            key, k1, k2 = jax.random.split(key, 3)
            w = 0.05 * jax.random.normal(k1, (cout, cin, kh, kw), jnp.float32)
            b = 0.05 * jax.random.normal(k2, (cout,), jnp.float32)
            stack.append((w, b))
        params["band_convs"].append(stack)
    key, k1, k2 = jax.random.split(key, 3)
    params["post_w"] = 0.05 * jax.random.normal(k1, (1, channels, 3, 3), jnp.float32)
    params["post_b"] = 0.05 * jax.random.normal(k2, (1,), jnp.float32)
    if num_embeddings is not None:
        params["emb"] = jnp.zeros((num_embeddings, channels), jnp.float32)
    return params


def discriminator_r_forward(params, x, window_length, hop_factor=0.25,
                            cond_embedding_id=None):
    """x: (B, 1, T) audio. Returns (out, fmap) like the PyTorch module (f32)."""
    x = x[:, 0, :]                                            # squeeze(1) -> (B, T)
    hop = int(window_length * hop_factor)
    n_fft_bins = window_length // 2 + 1
    bands_idx = [(int(b0 * n_fft_bins), int(b1 * n_fft_bins)) for (b0, b1) in BANDS]

    bands = spectrogram_bands(x, window_length, hop, bands_idx)
    n_bands = len(bands)

    # Layer-major execution (all bands fused per layer); fmap re-ordered band-major
    # afterwards to match the reference module.
    per_band_fmap = [[] for _ in range(n_bands)]
    cur = bands
    for li, (stride, padding) in enumerate(_LAYER_GEOM):
        ws = [params["band_convs"][bi][li][0] for bi in range(n_bands)]
        bs = [params["band_convs"][bi][li][1] for bi in range(n_bands)]
        cur = grouped_conv2d_pallas(cur, ws, bs, stride, padding, apply_act=True)
        if li > 0:
            for bi in range(n_bands):
                per_band_fmap[bi].append(cur[bi])
    fmap = [t for band_list in per_band_fmap for t in band_list]

    xcat = jnp.concatenate(cur, axis=-1)                      # (B, C, T, sum_W) bf16

    if cond_embedding_id is not None and "emb" in params:
        emb = params["emb"][cond_embedding_id]                # (C,)
        h = (emb.reshape(1, -1, 1, 1) * xcat.astype(jnp.float32)).sum(
            axis=1, keepdims=True)
    else:
        h = 0.0

    out = conv2d_pallas(xcat, params["post_w"], params["post_b"],
                        (1, 1), (1, 1), apply_act=False)      # (B, 1, T, sum_W) bf16
    fmap.append(out)

    # Boundary cast back to f32 (kernels keep bf16 HBM traffic internally).
    fmap = [f.astype(jnp.float32) for f in fmap]
    out = out.astype(jnp.float32) + h
    return out, fmap


# ----------------------------------------------------------------------------
# MultiResolutionDiscriminator
# ----------------------------------------------------------------------------
def init_mrd_params(key, fft_sizes, channels=32, num_embeddings=None):
    params = []
    for _ in fft_sizes:
        key, sub = jax.random.split(key)
        params.append(init_discriminator_r_params(sub, channels=channels,
                                                  num_embeddings=num_embeddings))
    return params


def multi_resolution_discriminator_forward(params_list, y, y_hat, *, fft_sizes,
                                           bandwidth_id=None, hop_factor=0.25):
    B = y.shape[0]
    x_all = jnp.concatenate([y, y_hat], axis=0)               # batch y and y_hat
    y_d_rs, y_d_gs, fmap_rs, fmap_gs = [], [], [], []
    for p, wlen in zip(params_list, fft_sizes):
        out, fmap = discriminator_r_forward(p, x_all, wlen, hop_factor, bandwidth_id)
        y_d_rs.append(out[:B])
        y_d_gs.append(out[B:])
        fmap_rs.append([f[:B] for f in fmap])
        fmap_gs.append([f[B:] for f in fmap])
    return y_d_rs, y_d_gs, fmap_rs, fmap_gs


# ----------------------------------------------------------------------------
if __name__ == "__main__":
    fft_sizes = (64, 32)        # small window lengths; all 5 bands non-empty
    channels = 32
    B, T = 2, 256

    key = jax.random.PRNGKey(0)
    key, ky, kg, kp = jax.random.split(key, 4)
    y = jax.random.normal(ky, (B, 1, T), jnp.float32)
    y_hat = jax.random.normal(kg, (B, 1, T), jnp.float32)
    params = init_mrd_params(kp, fft_sizes, channels=channels, num_embeddings=None)

    fwd = jax.jit(functools.partial(multi_resolution_discriminator_forward,
                                    fft_sizes=fft_sizes, hop_factor=0.25))
    y_d_rs, y_d_gs, fmap_rs, fmap_gs = jax.block_until_ready(fwd(params, y, y_hat))

    assert len(y_d_rs) == len(fft_sizes) and len(y_d_gs) == len(fft_sizes)
    for o in y_d_rs + y_d_gs:
        assert o.ndim == 4 and o.shape[:2] == (B, 1) and o.dtype == jnp.float32
        assert bool(jnp.all(jnp.isfinite(o)))
    for fm in fmap_rs + fmap_gs:
        assert len(fm) == 5 * 4 + 1
        assert all(bool(jnp.all(jnp.isfinite(f))) for f in fm)

    print("KERNEL_OK")
</pallas_src>

<mosaic_0001>
module attributes {stable_mosaic.version = 11 : i64} {
  func.func @_spec_kernel(%arg0: i32, %arg1: i32, %arg2: memref<1x33x32xbf16, #tpu.memory_space<vmem>>, %arg3: memref<2x32x128xbf16, #tpu.memory_space<vmem>>, %arg4: memref<1x2x33x128xbf16, #tpu.memory_space<vmem>>) attributes {dimension_semantics = [#tpu.dimension_semantics<parallel>, #tpu.dimension_semantics<arbitrary>], iteration_bounds = array<i64: 4, 1>, scalar_prefetch = 0 : i64, scratch_operands = 0 : i64, tpu.core_type = #tpu.core_type<tc>, window_params = [{transform_indices = @transform_0, window_bounds = array<i64: 1, 33, 32>}, {pipeline_mode = #tpu.pipeline_mode<synchronous>, transform_indices = @transform_1, window_bounds = array<i64: 2, 32, 128>}, {transform_indices = @transform_2, window_bounds = array<i64: 1, 2, 33, 128>}]} {
    %c0 = arith.constant 0 : index
    %c0_0 = arith.constant 0 : index
    %c0_1 = arith.constant 0 : index
    %0 = vector.load %arg2[%c0, %c0_0, %c0_1] : memref<1x33x32xbf16, #tpu.memory_space<vmem>>, vector<1x33x32xbf16>
    %1 = vector.shape_cast %0 : vector<1x33x32xbf16> to vector<33x32xbf16>
    %c0_2 = arith.constant 0 : index
    %c0_3 = arith.constant 0 : index
    %c0_4 = arith.constant 0 : index
    %2 = vector.load %arg3[%c0_2, %c0_3, %c0_4] : memref<2x32x128xbf16, #tpu.memory_space<vmem>>, vector<1x32x128xbf16>
    %3 = vector.shape_cast %2 : vector<1x32x128xbf16> to vector<32x128xbf16>
    %cst = arith.constant dense<0.000000e+00> : vector<33x128xf32>
    %4 = tpu.matmul %1, %3, %cst {dimension_numbers = #tpu.dot_dimension_numbers<[1], [0], [0], [1], [0, 0, 1, 1], [], []>} : vector<33x32xbf16>, vector<32x128xbf16>, vector<33x128xf32> -> vector<33x128xf32>
    %5 = arith.truncf %4 : vector<33x128xf32> to vector<33x128xbf16>
    %c0_5 = arith.constant 0 : index
    %c0_6 = arith.constant 0 : index
    %c0_7 = arith.constant 0 : index
    %c0_8 = arith.constant 0 : index
    %6 = vector.load %arg4[%c0_5, %c0_6, %c0_7, %c0_8] : memref<1x2x33x128xbf16, #tpu.memory_space<vmem>>, vector<1x1x33x128xbf16>
    %7 = vector.shape_cast %6 : vector<1x1x33x128xbf16> to vector<33x128xbf16>
    %8 = vector.shape_cast %5 : vector<33x128xbf16> to vector<1x1x33x128xbf16>
    tpu.vector_store %arg4[%c0_5, %c0_6, %c0_7, %c0_8], %8 {strides = array<i32>} : memref<1x2x33x128xbf16, #tpu.memory_space<vmem>>, vector<1x1x33x128xbf16>,
    %c1 = arith.constant 1 : index
    %c0_9 = arith.constant 0 : index
    %c0_10 = arith.constant 0 : index
    %9 = vector.load %arg3[%c1, %c0_9, %c0_10] : memref<2x32x128xbf16, #tpu.memory_space<vmem>>, vector<1x32x128xbf16>
    %10 = vector.shape_cast %9 : vector<1x32x128xbf16> to vector<32x128xbf16>
    %cst_11 = arith.constant dense<0.000000e+00> : vector<33x128xf32>
    %11 = tpu.matmul %1, %10, %cst_11 {dimension_numbers = #tpu.dot_dimension_numbers<[1], [0], [0], [1], [0, 0, 1, 1], [], []>} : vector<33x32xbf16>, vector<32x128xbf16>, vector<33x128xf32> -> vector<33x128xf32>
    %12 = arith.truncf %11 : vector<33x128xf32> to vector<33x128xbf16>
    %c0_12 = arith.constant 0 : index
    %c1_13 = arith.constant 1 : index
    %c0_14 = arith.constant 0 : index
    %c0_15 = arith.constant 0 : index
    %13 = vector.load %arg4[%c0_12, %c1_13, %c0_14, %c0_15] : memref<1x2x33x128xbf16, #tpu.memory_space<vmem>>, vector<1x1x33x128xbf16>
    %14 = vector.shape_cast %13 : vector<1x1x33x128xbf16> to vector<33x128xbf16>
    %15 = vector.shape_cast %12 : vector<33x128xbf16> to vector<1x1x33x128xbf16>
    tpu.vector_store %arg4[%c0_12, %c1_13, %c0_14, %c0_15], %15 {strides = array<i32>} : memref<1x2x33x128xbf16, #tpu.memory_space<vmem>>, vector<1x1x33x128xbf16>,
    return
  }
  func.func @transform_0(%arg0: i32, %arg1: i32) -> (i32, i32, i32) {
    %c0_i32 = arith.constant 0 : i32
    %c0_i32_0 = arith.constant 0 : i32
    return %arg0, %arg1, %c0_i32 : i32, i32, i32
  }
  func.func @transform_1(%arg0: i32, %arg1: i32) -> (i32, i32, i32) {
    %c0_i32 = arith.constant 0 : i32
    %c0_i32_0 = arith.constant 0 : i32
    %c0_i32_1 = arith.constant 0 : i32
    %c0_i32_2 = arith.constant 0 : i32
    return %c0_i32, %c0_i32_0, %c0_i32_1 : i32, i32, i32
  }
  func.func @transform_2(%arg0: i32, %arg1: i32) -> (i32, i32, i32, i32) {
    %c0_i32 = arith.constant 0 : i32
    %c0_i32_0 = arith.constant 0 : i32
    %c0_i32_1 = arith.constant 0 : i32
    return %arg0, %c0_i32, %arg1, %c0_i32_0 : i32, i32, i32, i32
  }
}

module attributes {stable_mosaic.version = 11 : i64} {
  func.func @_grouped_conv_kernel(%arg0: i32, %arg1: i32, %arg2: memref<5xi32, #tpu.memory_space<smem>>, %arg3: memref<1x32x54xbf16, #tpu.memory_space<vmem>>, %arg4: memref<1x54x256xbf16, #tpu.memory_space<vmem>>, %arg5: memref<1x32x1xf32, #tpu.memory_space<vmem>>, %arg6: memref<1x32x256xbf16, #tpu.memory_space<vmem>>) attributes {dimension_semantics = [#tpu.dimension_semantics<parallel>, #tpu.dimension_semantics<arbitrary>], iteration_bounds = array<i64: 4, 5>, scalar_prefetch = 1 : i64, scratch_operands = 0 : i64, tpu.core_type = #tpu.core_type<tc>, window_params = [{transform_indices = @transform_0, window_bounds = array<i64: 1, 32, 54>}, {transform_indices = @transform_1, window_bounds = array<i64: 1, 54, 256>}, {transform_indices = @transform_2, window_bounds = array<i64: 1, 32, 1>}, {transform_indices = @transform_3, window_bounds = array<i64: 1, 32, 256>}]} {
    %c0 = arith.constant 0 : index
    %c0_0 = arith.constant 0 : index
    %c0_1 = arith.constant 0 : index
    %0 = vector.load %arg3[%c0, %c0_0, %c0_1] : memref<1x32x54xbf16, #tpu.memory_space<vmem>>, vector<1x32x54xbf16>
    %1 = vector.shape_cast %0 : vector<1x32x54xbf16> to vector<32x54xbf16>
    %c0_2 = arith.constant 0 : index
    %c0_3 = arith.constant 0 : index
    %c0_4 = arith.constant 0 : index
    %2 = vector.load %arg4[%c0_2, %c0_3, %c0_4] : memref<1x54x256xbf16, #tpu.memory_space<vmem>>, vector<1x54x256xbf16>
    %3 = vector.shape_cast %2 : vector<1x54x256xbf16> to vector<54x256xbf16>
    %cst = arith.constant dense<0.000000e+00> : vector<32x256xf32>
    %4 = tpu.matmul %1, %3, %cst {dimension_numbers = #tpu.dot_dimension_numbers<[1], [0], [0], [1], [0, 0, 1, 1], [], []>} : vector<32x54xbf16>, vector<54x256xbf16>, vector<32x256xf32> -> vector<32x256xf32>
    %c0_5 = arith.constant 0 : index
    %c0_6 = arith.constant 0 : index
    %c0_7 = arith.constant 0 : index
    %5 = vector.load %arg5[%c0_5, %c0_6, %c0_7] : memref<1x32x1xf32, #tpu.memory_space<vmem>>, vector<1x32x1xf32>
    %6 = vector.shape_cast %5 : vector<1x32x1xf32> to vector<32x1xf32>
    %7 = vector.broadcast %6 : vector<32x1xf32> to vector<32x256xf32>
    %8 = arith.addf %4, %7 : vector<32x256xf32>
    %cst_8 = arith.constant 0.000000e+00 : f32
    %9 = vector.broadcast %cst_8 : f32 to vector<32x256xf32>
    %10 = arith.cmpf oge, %8, %9 : vector<32x256xf32>
    %cst_9 = arith.constant 1.000000e-01 : f32
    %11 = vector.broadcast %cst_9 : f32 to vector<32x256xf32>
    %12 = arith.mulf %11, %8 : vector<32x256xf32>
    %13 = arith.select %10, %8, %12 : vector<32x256xi1>, vector<32x256xf32>
    %14 = arith.truncf %13 : vector<32x256xf32> to vector<32x256xbf16>
    %c0_10 = arith.constant 0 : index
    %c0_11 = arith.constant 0 : index
    %c0_12 = arith.constant 0 : index
    %15 = vector.load %arg6[%c0_10, %c0_11, %c0_12] : memref<1x32x256xbf16, #tpu.memory_space<vmem>>, vector<1x32x256xbf16>
    %16 = vector.shape_cast %15 : vector<1x32x256xbf16> to vector<32x256xbf16>
    %17 = vector.shape_cast %14 : vector<32x256xbf16> to vector<1x32x256xbf16>
    tpu.vector_store %arg6[%c0_10, %c0_11, %c0_12], %17 {strides = array<i32>} : memref<1x32x256xbf16, #tpu.memory_space<vmem>>, vector<1x32x256xbf16>,
    return
  }
  func.func @transform_0(%arg0: i32, %arg1: i32, %arg2: memref<5xi32, #tpu.memory_space<smem>>) -> (i32, i32, i32) {
    %0 = arith.index_cast %arg1 : i32 to index
    %1 = memref.load %arg2[%0] : memref<5xi32, #tpu.memory_space<smem>>
    %c0_i32 = arith.constant 0 : i32
    %c0_i32_0 = arith.constant 0 : i32
    %c0_i32_1 = arith.constant 0 : i32
    return %1, %c0_i32, %c0_i32_0 : i32, i32, i32
  }
  func.func @transform_1(%arg0: i32, %arg1: i32, %arg2: memref<5xi32, #tpu.memory_space<smem>>) -> (i32, i32, i32) {
    %c0_i32 = arith.constant 0 : i32
    %c0_i32_0 = arith.constant 0 : i32
    return %arg0, %c0_i32, %arg1 : i32, i32, i32
  }
  func.func @transform_2(%arg0: i32, %arg1: i32, %arg2: memref<5xi32, #tpu.memory_space<smem>>) -> (i32, i32, i32) {
    %0 = arith.index_cast %arg1 : i32 to index
    %1 = memref.load %arg2[%0] : memref<5xi32, #tpu.memory_space<smem>>
    %c0_i32 = arith.constant 0 : i32
    %c0_i32_0 = arith.constant 0 : i32
    %c0_i32_1 = arith.constant 0 : i32
    return %1, %c0_i32, %c0_i32_0 : i32, i32, i32
  }
  func.func @transform_3(%arg0: i32, %arg1: i32, %arg2: memref<5xi32, #tpu.memory_space<smem>>) -> (i32, i32, i32) {
    %c0_i32 = arith.constant 0 : i32
    %c0_i32_0 = arith.constant 0 : i32
    return %arg0, %c0_i32, %arg1 : i32, i32, i32
  }
}

module attributes {stable_mosaic.version = 11 : i64} {
  func.func @_grouped_conv_kernel(%arg0: i32, %arg1: i32, %arg2: memref<5xi32, #tpu.memory_space<smem>>, %arg3: memref<1x32x864xbf16, #tpu.memory_space<vmem>>, %arg4: memref<1x864x128xbf16, #tpu.memory_space<vmem>>, %arg5: memref<1x32x1xf32, #tpu.memory_space<vmem>>, %arg6: memref<1x32x128xbf16, #tpu.memory_space<vmem>>) attributes {dimension_semantics = [#tpu.dimension_semantics<parallel>, #tpu.dimension_semantics<arbitrary>], iteration_bounds = array<i64: 4, 5>, scalar_prefetch = 1 : i64, scratch_operands = 0 : i64, tpu.core_type = #tpu.core_type<tc>, window_params = [{transform_indices = @transform_0, window_bounds = array<i64: 1, 32, 864>}, {transform_indices = @transform_1, window_bounds = array<i64: 1, 864, 128>}, {transform_indices = @transform_2, window_bounds = array<i64: 1, 32, 1>}, {transform_indices = @transform_3, window_bounds = array<i64: 1, 32, 128>}]} {
    %c0 = arith.constant 0 : index
    %c0_0 = arith.constant 0 : index
    %c0_1 = arith.constant 0 : index
    %0 = vector.load %arg3[%c0, %c0_0, %c0_1] : memref<1x32x864xbf16, #tpu.memory_space<vmem>>, vector<1x32x864xbf16>
    %1 = vector.shape_cast %0 : vector<1x32x864xbf16> to vector<32x864xbf16>
    %c0_2 = arith.constant 0 : index
    %c0_3 = arith.constant 0 : index
    %c0_4 = arith.constant 0 : index
    %2 = vector.load %arg4[%c0_2, %c0_3, %c0_4] : memref<1x864x128xbf16, #tpu.memory_space<vmem>>, vector<1x864x128xbf16>
    %3 = vector.shape_cast %2 : vector<1x864x128xbf16> to vector<864x128xbf16>
    %cst = arith.constant dense<0.000000e+00> : vector<32x128xf32>
    %4 = tpu.matmul %1, %3, %cst {dimension_numbers = #tpu.dot_dimension_numbers<[1], [0], [0], [1], [0, 0, 1, 1], [], []>} : vector<32x864xbf16>, vector<864x128xbf16>, vector<32x128xf32> -> vector<32x128xf32>
    %c0_5 = arith.constant 0 : index
    %c0_6 = arith.constant 0 : index
    %c0_7 = arith.constant 0 : index
    %5 = vector.load %arg5[%c0_5, %c0_6, %c0_7] : memref<1x32x1xf32, #tpu.memory_space<vmem>>, vector<1x32x1xf32>
    %6 = vector.shape_cast %5 : vector<1x32x1xf32> to vector<32x1xf32>
    %7 = vector.broadcast %6 : vector<32x1xf32> to vector<32x128xf32>
    %8 = arith.addf %4, %7 : vector<32x128xf32>
    %cst_8 = arith.constant 0.000000e+00 : f32
    %9 = vector.broadcast %cst_8 : f32 to vector<32x128xf32>
    %10 = arith.cmpf oge, %8, %9 : vector<32x128xf32>
    %cst_9 = arith.constant 1.000000e-01 : f32
    %11 = vector.broadcast %cst_9 : f32 to vector<32x128xf32>
    %12 = arith.mulf %11, %8 : vector<32x128xf32>
    %13 = arith.select %10, %8, %12 : vector<32x128xi1>, vector<32x128xf32>
    %14 = arith.truncf %13 : vector<32x128xf32> to vector<32x128xbf16>
    %c0_10 = arith.constant 0 : index
    %c0_11 = arith.constant 0 : index
    %c0_12 = arith.constant 0 : index
    %15 = vector.load %arg6[%c0_10, %c0_11, %c0_12] : memref<1x32x128xbf16, #tpu.memory_space<vmem>>, vector<1x32x128xbf16>
    %16 = vector.shape_cast %15 : vector<1x32x128xbf16> to vector<32x128xbf16>
    %17 = vector.shape_cast %14 : vector<32x128xbf16> to vector<1x32x128xbf16>
    tpu.vector_store %arg6[%c0_10, %c0_11, %c0_12], %17 {strides = array<i32>} : memref<1x32x128xbf16, #tpu.memory_space<vmem>>, vector<1x32x128xbf16>,
    return
  }
  func.func @transform_0(%arg0: i32, %arg1: i32, %arg2: memref<5xi32, #tpu.memory_space<smem>>) -> (i32, i32, i32) {
    %0 = arith.index_cast %arg1 : i32 to index
    %1 = memref.load %arg2[%0] : memref<5xi32, #tpu.memory_space<smem>>
    %c0_i32 = arith.constant 0 : i32
    %c0_i32_0 = arith.constant 0 : i32
    %c0_i32_1 = arith.constant 0 : i32
    return %1, %c0_i32, %c0_i32_0 : i32, i32, i32
  }
  func.func @transform_1(%arg0: i32, %arg1: i32, %arg2: memref<5xi32, #tpu.memory_space<smem>>) -> (i32, i32, i32) {
    %c0_i32 = arith.constant 0 : i32
    %c0_i32_0 = arith.constant 0 : i32
    return %arg0, %c0_i32, %arg1 : i32, i32, i32
  }
  func.func @transform_2(%arg0: i32, %arg1: i32, %arg2: memref<5xi32, #tpu.memory_space<smem>>) -> (i32, i32, i32) {
    %0 = arith.index_cast %arg1 : i32 to index
    %1 = memref.load %arg2[%0] : memref<5xi32, #tpu.memory_space<smem>>
    %c0_i32 = arith.constant 0 : i32
    %c0_i32_0 = arith.constant 0 : i32
    %c0_i32_1 = arith.constant 0 : i32
    return %1, %c0_i32, %c0_i32_0 : i32, i32, i32
  }
  func.func @transform_3(%arg0: i32, %arg1: i32, %arg2: memref<5xi32, #tpu.memory_space<smem>>) -> (i32, i32, i32) {
    %c0_i32 = arith.constant 0 : i32
    %c0_i32_0 = arith.constant 0 : i32
    return %arg0, %c0_i32, %arg1 : i32, i32, i32
  }
}

module attributes {stable_mosaic.version = 11 : i64} {
  func.func @_grouped_conv_kernel(%arg0: i32, %arg1: i32, %arg2: memref<5xi32, #tpu.memory_space<smem>>, %arg3: memref<1x32x288xbf16, #tpu.memory_space<vmem>>, %arg4: memref<1x288x128xbf16, #tpu.memory_space<vmem>>, %arg5: memref<1x32x1xf32, #tpu.memory_space<vmem>>, %arg6: memref<1x32x128xbf16, #tpu.memory_space<vmem>>) attributes {dimension_semantics = [#tpu.dimension_semantics<parallel>, #tpu.dimension_semantics<arbitrary>], iteration_bounds = array<i64: 4, 5>, scalar_prefetch = 1 : i64, scratch_operands = 0 : i64, tpu.core_type = #tpu.core_type<tc>, window_params = [{transform_indices = @transform_0, window_bounds = array<i64: 1, 32, 288>}, {transform_indices = @transform_1, window_bounds = array<i64: 1, 288, 128>}, {transform_indices = @transform_2, window_bounds = array<i64: 1, 32, 1>}, {transform_indices = @transform_3, window_bounds = array<i64: 1, 32, 128>}]} {
    %c0 = arith.constant 0 : index
    %c0_0 = arith.constant 0 : index
    %c0_1 = arith.constant 0 : index
    %0 = vector.load %arg3[%c0, %c0_0, %c0_1] : memref<1x32x288xbf16, #tpu.memory_space<vmem>>, vector<1x32x288xbf16>
    %1 = vector.shape_cast %0 : vector<1x32x288xbf16> to vector<32x288xbf16>
    %c0_2 = arith.constant 0 : index
    %c0_3 = arith.constant 0 : index
    %c0_4 = arith.constant 0 : index
    %2 = vector.load %arg4[%c0_2, %c0_3, %c0_4] : memref<1x288x128xbf16, #tpu.memory_space<vmem>>, vector<1x288x128xbf16>
    %3 = vector.shape_cast %2 : vector<1x288x128xbf16> to vector<288x128xbf16>
    %cst = arith.constant dense<0.000000e+00> : vector<32x128xf32>
    %4 = tpu.matmul %1, %3, %cst {dimension_numbers = #tpu.dot_dimension_numbers<[1], [0], [0], [1], [0, 0, 1, 1], [], []>} : vector<32x288xbf16>, vector<288x128xbf16>, vector<32x128xf32> -> vector<32x128xf32>
    %c0_5 = arith.constant 0 : index
    %c0_6 = arith.constant 0 : index
    %c0_7 = arith.constant 0 : index
    %5 = vector.load %arg5[%c0_5, %c0_6, %c0_7] : memref<1x32x1xf32, #tpu.memory_space<vmem>>, vector<1x32x1xf32>
    %6 = vector.shape_cast %5 : vector<1x32x1xf32> to vector<32x1xf32>
    %7 = vector.broadcast %6 : vector<32x1xf32> to vector<32x128xf32>
    %8 = arith.addf %4, %7 : vector<32x128xf32>
    %cst_8 = arith.constant 0.000000e+00 : f32
    %9 = vector.broadcast %cst_8 : f32 to vector<32x128xf32>
    %10 = arith.cmpf oge, %8, %9 : vector<32x128xf32>
    %cst_9 = arith.constant 1.000000e-01 : f32
    %11 = vector.broadcast %cst_9 : f32 to vector<32x128xf32>
    %12 = arith.mulf %11, %8 : vector<32x128xf32>
    %13 = arith.select %10, %8, %12 : vector<32x128xi1>, vector<32x128xf32>
    %14 = arith.truncf %13 : vector<32x128xf32> to vector<32x128xbf16>
    %c0_10 = arith.constant 0 : index
    %c0_11 = arith.constant 0 : index
    %c0_12 = arith.constant 0 : index
    %15 = vector.load %arg6[%c0_10, %c0_11, %c0_12] : memref<1x32x128xbf16, #tpu.memory_space<vmem>>, vector<1x32x128xbf16>
    %16 = vector.shape_cast %15 : vector<1x32x128xbf16> to vector<32x128xbf16>
    %17 = vector.shape_cast %14 : vector<32x128xbf16> to vector<1x32x128xbf16>
    tpu.vector_store %arg6[%c0_10, %c0_11, %c0_12], %17 {strides = array<i32>} : memref<1x32x128xbf16, #tpu.memory_space<vmem>>, vector<1x32x128xbf16>,
    return
  }
  func.func @transform_0(%arg0: i32, %arg1: i32, %arg2: memref<5xi32, #tpu.memory_space<smem>>) -> (i32, i32, i32) {
    %0 = arith.index_cast %arg1 : i32 to index
    %1 = memref.load %arg2[%0] : memref<5xi32, #tpu.memory_space<smem>>
    %c0_i32 = arith.constant 0 : i32
    %c0_i32_0 = arith.constant 0 : i32
    %c0_i32_1 = arith.constant 0 : i32
    return %1, %c0_i32, %c0_i32_0 : i32, i32, i32
  }
  func.func @transform_1(%arg0: i32, %arg1: i32, %arg2: memref<5xi32, #tpu.memory_space<smem>>) -> (i32, i32, i32) {
    %c0_i32 = arith.constant 0 : i32
    %c0_i32_0 = arith.constant 0 : i32
    return %arg0, %c0_i32, %arg1 : i32, i32, i32
  }
  func.func @transform_2(%arg0: i32, %arg1: i32, %arg2: memref<5xi32, #tpu.memory_space<smem>>) -> (i32, i32, i32) {
    %0 = arith.index_cast %arg1 : i32 to index
    %1 = memref.load %arg2[%0] : memref<5xi32, #tpu.memory_space<smem>>
    %c0_i32 = arith.constant 0 : i32
    %c0_i32_0 = arith.constant 0 : i32
    %c0_i32_1 = arith.constant 0 : i32
    return %1, %c0_i32, %c0_i32_0 : i32, i32, i32
  }
  func.func @transform_3(%arg0: i32, %arg1: i32, %arg2: memref<5xi32, #tpu.memory_space<smem>>) -> (i32, i32, i32) {
    %c0_i32 = arith.constant 0 : i32
    %c0_i32_0 = arith.constant 0 : i32
    return %arg0, %c0_i32, %arg1 : i32, i32, i32
  }
}

module attributes {stable_mosaic.version = 11 : i64} {
  func.func @_grouped_conv_kernel(%arg0: i32, %arg1: i32, %arg2: memref<1xi32, #tpu.memory_space<smem>>, %arg3: memref<1x8x288xbf16, #tpu.memory_space<vmem>>, %arg4: memref<1x288x256xbf16, #tpu.memory_space<vmem>>, %arg5: memref<1x8x1xf32, #tpu.memory_space<vmem>>, %arg6: memref<1x8x256xbf16, #tpu.memory_space<vmem>>) attributes {dimension_semantics = [#tpu.dimension_semantics<parallel>, #tpu.dimension_semantics<arbitrary>], iteration_bounds = array<i64: 4, 1>, scalar_prefetch = 1 : i64, scratch_operands = 0 : i64, tpu.core_type = #tpu.core_type<tc>, window_params = [{transform_indices = @transform_0, window_bounds = array<i64: 1, 8, 288>}, {transform_indices = @transform_1, window_bounds = array<i64: 1, 288, 256>}, {transform_indices = @transform_2, window_bounds = array<i64: 1, 8, 1>}, {transform_indices = @transform_3, window_bounds = array<i64: 1, 8, 256>}]} {
    %c0 = arith.constant 0 : index
    %c0_0 = arith.constant 0 : index
    %c0_1 = arith.constant 0 : index
    %0 = vector.load %arg3[%c0, %c0_0, %c0_1] : memref<1x8x288xbf16, #tpu.memory_space<vmem>>, vector<1x8x288xbf16>
    %1 = vector.shape_cast %0 : vector<1x8x288xbf16> to vector<8x288xbf16>
    %c0_2 = arith.constant 0 : index
    %c0_3 = arith.constant 0 : index
    %c0_4 = arith.constant 0 : index
    %2 = vector.load %arg4[%c0_2, %c0_3, %c0_4] : memref<1x288x256xbf16, #tpu.memory_space<vmem>>, vector<1x288x256xbf16>
    %3 = vector.shape_cast %2 : vector<1x288x256xbf16> to vector<288x256xbf16>
    %cst = arith.constant dense<0.000000e+00> : vector<8x256xf32>
    %4 = tpu.matmul %1, %3, %cst {dimension_numbers = #tpu.dot_dimension_numbers<[1], [0], [0], [1], [0, 0, 1, 1], [], []>} : vector<8x288xbf16>, vector<288x256xbf16>, vector<8x256xf32> -> vector<8x256xf32>
    %c0_5 = arith.constant 0 : index
    %c0_6 = arith.constant 0 : index
    %c0_7 = arith.constant 0 : index
    %5 = vector.load %arg5[%c0_5, %c0_6, %c0_7] : memref<1x8x1xf32, #tpu.memory_space<vmem>>, vector<1x8x1xf32>
    %6 = vector.shape_cast %5 : vector<1x8x1xf32> to vector<8x1xf32>
    %7 = vector.broadcast %6 : vector<8x1xf32> to vector<8x256xf32>
    %8 = arith.addf %4, %7 : vector<8x256xf32>
    %9 = arith.truncf %8 : vector<8x256xf32> to vector<8x256xbf16>
    %c0_8 = arith.constant 0 : index
    %c0_9 = arith.constant 0 : index
    %c0_10 = arith.constant 0 : index
    %10 = vector.load %arg6[%c0_8, %c0_9, %c0_10] : memref<1x8x256xbf16, #tpu.memory_space<vmem>>, vector<1x8x256xbf16>
    %11 = vector.shape_cast %10 : vector<1x8x256xbf16> to vector<8x256xbf16>
    %12 = vector.shape_cast %9 : vector<8x256xbf16> to vector<1x8x256xbf16>
    tpu.vector_store %arg6[%c0_8, %c0_9, %c0_10], %12 {strides = array<i32>} : memref<1x8x256xbf16, #tpu.memory_space<vmem>>, vector<1x8x256xbf16>,
    return
  }
  func.func @transform_0(%arg0: i32, %arg1: i32, %arg2: memref<1xi32, #tpu.memory_space<smem>>) -> (i32, i32, i32) {
    %0 = arith.index_cast %arg1 : i32 to index
    %1 = memref.load %arg2[%0] : memref<1xi32, #tpu.memory_space<smem>>
    %c0_i32 = arith.constant 0 : i32
    %c0_i32_0 = arith.constant 0 : i32
    %c0_i32_1 = arith.constant 0 : i32
    return %1, %c0_i32, %c0_i32_0 : i32, i32, i32
  }
  func.func @transform_1(%arg0: i32, %arg1: i32, %arg2: memref<1xi32, #tpu.memory_space<smem>>) -> (i32, i32, i32) {
    %c0_i32 = arith.constant 0 : i32
    %c0_i32_0 = arith.constant 0 : i32
    return %arg0, %c0_i32, %arg1 : i32, i32, i32
  }
  func.func @transform_2(%arg0: i32, %arg1: i32, %arg2: memref<1xi32, #tpu.memory_space<smem>>) -> (i32, i32, i32) {
    %0 = arith.index_cast %arg1 : i32 to index
    %1 = memref.load %arg2[%0] : memref<1xi32, #tpu.memory_space<smem>>
    %c0_i32 = arith.constant 0 : i32
    %c0_i32_0 = arith.constant 0 : i32
    %c0_i32_1 = arith.constant 0 : i32
    return %1, %c0_i32, %c0_i32_0 : i32, i32, i32
  }
  func.func @transform_3(%arg0: i32, %arg1: i32, %arg2: memref<1xi32, #tpu.memory_space<smem>>) -> (i32, i32, i32) {
    %c0_i32 = arith.constant 0 : i32
    %c0_i32_0 = arith.constant 0 : i32
    return %arg0, %c0_i32, %arg1 : i32, i32, i32
  }
}

module attributes {stable_mosaic.version = 11 : i64} {
  func.func @_spec_kernel(%arg0: i32, %arg1: i32, %arg2: memref<1x17x64xbf16, #tpu.memory_space<vmem>>, %arg3: memref<2x64x128xbf16, #tpu.memory_space<vmem>>, %arg4: memref<1x2x17x128xbf16, #tpu.memory_space<vmem>>) attributes {dimension_semantics = [#tpu.dimension_semantics<parallel>, #tpu.dimension_semantics<arbitrary>], iteration_bounds = array<i64: 4, 1>, scalar_prefetch = 0 : i64, scratch_operands = 0 : i64, tpu.core_type = #tpu.core_type<tc>, window_params = [{transform_indices = @transform_0, window_bounds = array<i64: 1, 17, 64>}, {pipeline_mode = #tpu.pipeline_mode<synchronous>, transform_indices = @transform_1, window_bounds = array<i64: 2, 64, 128>}, {transform_indices = @transform_2, window_bounds = array<i64: 1, 2, 17, 128>}]} {
    %c0 = arith.constant 0 : index
    %c0_0 = arith.constant 0 : index
    %c0_1 = arith.constant 0 : index
    %0 = vector.load %arg2[%c0, %c0_0, %c0_1] : memref<1x17x64xbf16, #tpu.memory_space<vmem>>, vector<1x17x64xbf16>
    %1 = vector.shape_cast %0 : vector<1x17x64xbf16> to vector<17x64xbf16>
    %c0_2 = arith.constant 0 : index
    %c0_3 = arith.constant 0 : index
    %c0_4 = arith.constant 0 : index
    %2 = vector.load %arg3[%c0_2, %c0_3, %c0_4] : memref<2x64x128xbf16, #tpu.memory_space<vmem>>, vector<1x64x128xbf16>
    %3 = vector.shape_cast %2 : vector<1x64x128xbf16> to vector<64x128xbf16>
    %cst = arith.constant dense<0.000000e+00> : vector<17x128xf32>
    %4 = tpu.matmul %1, %3, %cst {dimension_numbers = #tpu.dot_dimension_numbers<[1], [0], [0], [1], [0, 0, 1, 1], [], []>} : vector<17x64xbf16>, vector<64x128xbf16>, vector<17x128xf32> -> vector<17x128xf32>
    %5 = arith.truncf %4 : vector<17x128xf32> to vector<17x128xbf16>
    %c0_5 = arith.constant 0 : index
    %c0_6 = arith.constant 0 : index
    %c0_7 = arith.constant 0 : index
    %c0_8 = arith.constant 0 : index
    %6 = vector.load %arg4[%c0_5, %c0_6, %c0_7, %c0_8] : memref<1x2x17x128xbf16, #tpu.memory_space<vmem>>, vector<1x1x17x128xbf16>
    %7 = vector.shape_cast %6 : vector<1x1x17x128xbf16> to vector<17x128xbf16>
    %8 = vector.shape_cast %5 : vector<17x128xbf16> to vector<1x1x17x128xbf16>
    tpu.vector_store %arg4[%c0_5, %c0_6, %c0_7, %c0_8], %8 {strides = array<i32>} : memref<1x2x17x128xbf16, #tpu.memory_space<vmem>>, vector<1x1x17x128xbf16>,
    %c1 = arith.constant 1 : index
    %c0_9 = arith.constant 0 : index
    %c0_10 = arith.constant 0 : index
    %9 = vector.load %arg3[%c1, %c0_9, %c0_10] : memref<2x64x128xbf16, #tpu.memory_space<vmem>>, vector<1x64x128xbf16>
    %10 = vector.shape_cast %9 : vector<1x64x128xbf16> to vector<64x128xbf16>
    %cst_11 = arith.constant dense<0.000000e+00> : vector<17x128xf32>
    %11 = tpu.matmul %1, %10, %cst_11 {dimension_numbers = #tpu.dot_dimension_numbers<[1], [0], [0], [1], [0, 0, 1, 1], [], []>} : vector<17x64xbf16>, vector<64x128xbf16>, vector<17x128xf32> -> vector<17x128xf32>
    %12 = arith.truncf %11 : vector<17x128xf32> to vector<17x128xbf16>
    %c0_12 = arith.constant 0 : index
    %c1_13 = arith.constant 1 : index
    %c0_14 = arith.constant 0 : index
    %c0_15 = arith.constant 0 : index
    %13 = vector.load %arg4[%c0_12, %c1_13, %c0_14, %c0_15] : memref<1x2x17x128xbf16, #tpu.memory_space<vmem>>, vector<1x1x17x128xbf16>
    %14 = vector.shape_cast %13 : vector<1x1x17x128xbf16> to vector<17x128xbf16>
    %15 = vector.shape_cast %12 : vector<17x128xbf16> to vector<1x1x17x128xbf16>
    tpu.vector_store %arg4[%c0_12, %c1_13, %c0_14, %c0_15], %15 {strides = array<i32>} : memref<1x2x17x128xbf16, #tpu.memory_space<vmem>>, vector<1x1x17x128xbf16>,
    return
  }
  func.func @transform_0(%arg0: i32, %arg1: i32) -> (i32, i32, i32) {
    %c0_i32 = arith.constant 0 : i32
    %c0_i32_0 = arith.constant 0 : i32
    return %arg0, %arg1, %c0_i32 : i32, i32, i32
  }
  func.func @transform_1(%arg0: i32, %arg1: i32) -> (i32, i32, i32) {
    %c0_i32 = arith.constant 0 : i32
    %c0_i32_0 = arith.constant 0 : i32
    %c0_i32_1 = arith.constant 0 : i32
    %c0_i32_2 = arith.constant 0 : i32
    return %c0_i32, %c0_i32_0, %c0_i32_1 : i32, i32, i32
  }
  func.func @transform_2(%arg0: i32, %arg1: i32) -> (i32, i32, i32, i32) {
    %c0_i32 = arith.constant 0 : i32
    %c0_i32_0 = arith.constant 0 : i32
    %c0_i32_1 = arith.constant 0 : i32
    return %arg0, %c0_i32, %arg1, %c0_i32_0 : i32, i32, i32, i32
  }
}

module attributes {stable_mosaic.version = 11 : i64} {
  func.func @_grouped_conv_kernel(%arg0: i32, %arg1: i32, %arg2: memref<1xi32, #tpu.memory_space<smem>>, %arg3: memref<1x8x288xbf16, #tpu.memory_space<vmem>>, %arg4: memref<1x288x128xbf16, #tpu.memory_space<vmem>>, %arg5: memref<1x8x1xf32, #tpu.memory_space<vmem>>, %arg6: memref<1x8x128xbf16, #tpu.memory_space<vmem>>) attributes {dimension_semantics = [#tpu.dimension_semantics<parallel>, #tpu.dimension_semantics<arbitrary>], iteration_bounds = array<i64: 4, 1>, scalar_prefetch = 1 : i64, scratch_operands = 0 : i64, tpu.core_type = #tpu.core_type<tc>, window_params = [{transform_indices = @transform_0, window_bounds = array<i64: 1, 8, 288>}, {transform_indices = @transform_1, window_bounds = array<i64: 1, 288, 128>}, {transform_indices = @transform_2, window_bounds = array<i64: 1, 8, 1>}, {transform_indices = @transform_3, window_bounds = array<i64: 1, 8, 128>}]} {
    %c0 = arith.constant 0 : index
    %c0_0 = arith.constant 0 : index
    %c0_1 = arith.constant 0 : index
    %0 = vector.load %arg3[%c0, %c0_0, %c0_1] : memref<1x8x288xbf16, #tpu.memory_space<vmem>>, vector<1x8x288xbf16>
    %1 = vector.shape_cast %0 : vector<1x8x288xbf16> to vector<8x288xbf16>
    %c0_2 = arith.constant 0 : index
    %c0_3 = arith.constant 0 : index
    %c0_4 = arith.constant 0 : index
    %2 = vector.load %arg4[%c0_2, %c0_3, %c0_4] : memref<1x288x128xbf16, #tpu.memory_space<vmem>>, vector<1x288x128xbf16>
    %3 = vector.shape_cast %2 : vector<1x288x128xbf16> to vector<288x128xbf16>
    %cst = arith.constant dense<0.000000e+00> : vector<8x128xf32>
    %4 = tpu.matmul %1, %3, %cst {dimension_numbers = #tpu.dot_dimension_numbers<[1], [0], [0], [1], [0, 0, 1, 1], [], []>} : vector<8x288xbf16>, vector<288x128xbf16>, vector<8x128xf32> -> vector<8x128xf32>
    %c0_5 = arith.constant 0 : index
    %c0_6 = arith.constant 0 : index
    %c0_7 = arith.constant 0 : index
    %5 = vector.load %arg5[%c0_5, %c0_6, %c0_7] : memref<1x8x1xf32, #tpu.memory_space<vmem>>, vector<1x8x1xf32>
    %6 = vector.shape_cast %5 : vector<1x8x1xf32> to vector<8x1xf32>
    %7 = vector.broadcast %6 : vector<8x1xf32> to vector<8x128xf32>
    %8 = arith.addf %4, %7 : vector<8x128xf32>
    %9 = arith.truncf %8 : vector<8x128xf32> to vector<8x128xbf16>
    %c0_8 = arith.constant 0 : index
    %c0_9 = arith.constant 0 : index
    %c0_10 = arith.constant 0 : index
    %10 = vector.load %arg6[%c0_8, %c0_9, %c0_10] : memref<1x8x128xbf16, #tpu.memory_space<vmem>>, vector<1x8x128xbf16>
    %11 = vector.shape_cast %10 : vector<1x8x128xbf16> to vector<8x128xbf16>
    %12 = vector.shape_cast %9 : vector<8x128xbf16> to vector<1x8x128xbf16>
    tpu.vector_store %arg6[%c0_8, %c0_9, %c0_10], %12 {strides = array<i32>} : memref<1x8x128xbf16, #tpu.memory_space<vmem>>, vector<1x8x128xbf16>,
    return
  }
  func.func @transform_0(%arg0: i32, %arg1: i32, %arg2: memref<1xi32, #tpu.memory_space<smem>>) -> (i32, i32, i32) {
    %0 = arith.index_cast %arg1 : i32 to index
    %1 = memref.load %arg2[%0] : memref<1xi32, #tpu.memory_space<smem>>
    %c0_i32 = arith.constant 0 : i32
    %c0_i32_0 = arith.constant 0 : i32
    %c0_i32_1 = arith.constant 0 : i32
    return %1, %c0_i32, %c0_i32_0 : i32, i32, i32
  }
  func.func @transform_1(%arg0: i32, %arg1: i32, %arg2: memref<1xi32, #tpu.memory_space<smem>>) -> (i32, i32, i32) {
    %c0_i32 = arith.constant 0 : i32
    %c0_i32_0 = arith.constant 0 : i32
    return %arg0, %c0_i32, %arg1 : i32, i32, i32
  }
  func.func @transform_2(%arg0: i32, %arg1: i32, %arg2: memref<1xi32, #tpu.memory_space<smem>>) -> (i32, i32, i32) {
    %0 = arith.index_cast %arg1 : i32 to index
    %1 = memref.load %arg2[%0] : memref<1xi32, #tpu.memory_space<smem>>
    %c0_i32 = arith.constant 0 : i32
    %c0_i32_0 = arith.constant 0 : i32
    %c0_i32_1 = arith.constant 0 : i32
    return %1, %c0_i32, %c0_i32_0 : i32, i32, i32
  }
  func.func @transform_3(%arg0: i32, %arg1: i32, %arg2: memref<1xi32, #tpu.memory_space<smem>>) -> (i32, i32, i32) {
    %c0_i32 = arith.constant 0 : i32
    %c0_i32_0 = arith.constant 0 : i32
    return %arg0, %c0_i32, %arg1 : i32, i32, i32
  }
}

</mosaic_0001>

<llo_original>
// kernel: multi_resolution_discriminator_forward.21
$region0: #{multi_resolution_discriminator_forward.21}
  #allocation0 [shape = 'u32[]', space=smem, size = 0x4, offset = 0x4, fixed_abs, tag = 'smem constant byte address 0x4 - core index']
  #allocation1 [shape = 'u32[144,128]{1,0:T(1,128)}', space=vmem, size = 0x12000, scoped, tag = 'internal scratch']
  %s0 = inlined_call_operand.vmem [shape: bf16[4,33,32], index: 0, kind: input, shape index: {}]
  %s1 = inlined_call_operand.vmem [shape: bf16[2,32,128], index: 1, kind: input, shape index: {}]
  %s2 = inlined_call_operand.vmem [shape: bf16[4,2,33,128], index: 2, kind: output, shape index: {}]
  %s3 = sld [smem:[#allocation0]]
  $region41: #{multi_resolution_discriminator_forward.21} parent=0
    _
  %s5 = ssub.s32 1, %s3
  %s6 = scalar_select 0, %s5, %s3
  loop: start=0, step=1, limit=6
  $region2: #{multi_resolution_discriminator_forward.21} parent=0 // loop_pre_header
    _
  $region3: #{multi_resolution_discriminator_forward.21} parent=0 // loop_header
    %s8 = sphi 0, %s12
    %p9 = scmp.ge.s32.totalorder %s8, 6
    %s15 = sphi 0, %s27
    %s16 = sphi 0, %s23
    %s17 = sphi 0, %s15
    %s18 = sphi 0, %s16
    %s19 = sphi 0, %s17
    %s20 = sphi 0, %s18
    %s32 = sphi 0, %s34
    %s35 = sphi 0, %s32
    %s36 = sphi 0, %s35
    %s52 = sphi 0, %s36
    %s56 = sphi 0, %s56
    %s58 = sphi 0, %s56
    %s59 = sphi 0, %s58
    %s73 = sphi 0, %s59
    %s81 = sphi 0, %s83
    %s84 = sphi 0, %s81
    %s85 = sphi 0, %s84
    %s101 = sphi 0, %s85
  $region4: #{multi_resolution_discriminator_forward.21} parent=0 // loop_header_branch
    %11 = sbr.rel (%p9) target = $region8
  $region5: #{multi_resolution_discriminator_forward.21} parent=0 // loop_body
    %s13 = ssub.s32 %s8, 1
    %s14 = ssub.s32 %s8, 2
    %s21 = sadd.s32 1, %s16
    %p22 = scmp.ge.s32.totalorder %s21, 1
    %s23 = scalar_select %p22, 0, %s21
    %s24 = sadd.s32 1, %s15
    %s25 = scalar_select %p22, %s24, %s15
    %p26 = scmp.ge.s32.totalorder %s25, 4
    %s27 = scalar_select %p26, 0, %s25
    %s28 = ssub.s32 %s15, %s27
    %s29 = ssub.s32 %s16, %s23
    %s30 = sor.u32 %s28, %s29
    %p31 = scmp.eq.s32.totalorder %s30, 0
    %s33 = sadd.s32 %s32, 1
    %s34 = scalar_select %p31, %s32, %s33
    %p37 = pneg %p31
    %p38 = scmp.eq.s32.totalorder %s8, 3
    %p39 = por %p37, %p38
    %p40 = scmp.ne.s32.totalorder %s32, %s35
    %p41 = scmp.eq.s32.totalorder %s8, 0
    %p42 = por %p40, %p41
    %p43 = scmp.ne.s32.totalorder %s32, %s35
    %p44 = scmp.eq.s32.totalorder %s13, 3
    %p45 = por %p43, %p44
    %p46 = scmp.ne.s32.totalorder %s35, %s36
    %p47 = scmp.eq.s32.totalorder %s13, 0
    %p48 = por %p46, %p47
    %p49 = scmp.ne.s32.totalorder %s35, %s36
    %p50 = scmp.eq.s32.totalorder %s14, 3
    %p51 = por %p49, %p50
    %p53 = scmp.ne.s32.totalorder %s36, %s52
    %p54 = scmp.eq.s32.totalorder %s14, 0
    %p55 = por %p53, %p54
    %s57 = sadd.s32 %s56, 1
    %p60 = scmp.eq.s32.totalorder %s8, 3
    %p61 = scmp.ne.s32.totalorder %s56, %s58
    %p62 = scmp.eq.s32.totalorder %s8, 0
    %p63 = por %p61, %p62
    %p64 = scmp.ne.s32.totalorder %s56, %s58
    %p65 = scmp.eq.s32.totalorder %s13, 3
    %p66 = por %p64, %p65
    %p67 = scmp.ne.s32.totalorder %s58, %s59
    %p68 = scmp.eq.s32.totalorder %s13, 0
    %p69 = por %p67, %p68
    %p70 = scmp.ne.s32.totalorder %s58, %s59
    %p71 = scmp.eq.s32.totalorder %s14, 3
    %p72 = por %p70, %p71
    %p74 = scmp.ne.s32.totalorder %s59, %s73
    %p75 = scmp.eq.s32.totalorder %s14, 0
    %p76 = por %p74, %p75
    %s77 = ssub.s32 %s15, %s27
    %s78 = ssub.s32 %s16, %s23
    %s79 = sor.u32 %s77, %s78
    %p80 = scmp.eq.s32.totalorder %s79, 0
    %s82 = sadd.s32 %s81, 1
    %s83 = scalar_select %p80, %s81, %s82
    %p86 = pneg %p80
    %p87 = scmp.eq.s32.totalorder %s8, 3
    %p88 = por %p86, %p87
    %p89 = scmp.ne.s32.totalorder %s81, %s84
    %p90 = scmp.eq.s32.totalorder %s8, 0
    %p91 = por %p89, %p90
    %p92 = scmp.ne.s32.totalorder %s81, %s84
    %p93 = scmp.eq.s32.totalorder %s13, 3
    %p94 = por %p92, %p93
    %p95 = scmp.ne.s32.totalorder %s84, %s85
    %p96 = scmp.eq.s32.totalorder %s13, 0
    %p97 = por %p95, %p96
    %p98 = scmp.ne.s32.totalorder %s84, %s85
    %p99 = scmp.eq.s32.totalorder %s14, 3
    %p100 = por %p98, %p99
    %p102 = scmp.ne.s32.totalorder %s85, %s101
    %p103 = scmp.eq.s32.totalorder %s14, 0
    %p104 = por %p102, %p103
    %p105 = scmp.le.s32.totalorder 1, %s8
    %p106 = scmp.lt.s32.totalorder %s8, 5
    %p107 = pnand %p105, %p106
    %p108 = pneg %p107
    // Predicated region
    $region9: #{multi_resolution_discriminator_forward.21} parent=5 // pred_check
      _
    $region10: #{multi_resolution_discriminator_forward.21} parent=5 // pred_check_branch
      %110 = sbr.rel (%p107) target = $region12
    $region11: #{multi_resolution_discriminator_forward.21} parent=5 // pred_region
      %s111 = ssub.s32 %s8, 1
      // Predicated region
      $region13: #{multi_resolution_discriminator_forward.21} parent=11 // pred_check
        %p112 = pneg %p69
      $region14: #{multi_resolution_discriminator_forward.21} parent=11 // pred_check_branch
        %114 = sbr.rel (%p112) target = $region16
      $region15: #{multi_resolution_discriminator_forward.21} parent=11 // pred_region
        _
      $region16: #{multi_resolution_discriminator_forward.21} parent=11 // pred_fallthru
        _
    $region12: #{multi_resolution_discriminator_forward.21} parent=5 // pred_fallthru
      _
    %p115 = scmp.lt.s32.totalorder %s8, 4
    // Predicated region
    $region17: #{multi_resolution_discriminator_forward.21} parent=5 // pred_check
      %p116 = pneg %p115
    $region18: #{multi_resolution_discriminator_forward.21} parent=5 // pred_check_branch
      %118 = sbr.rel (%p116) target = $region20
    $region19: #{multi_resolution_discriminator_forward.21} parent=5 // pred_region
      // Predicated region
      $region21: #{multi_resolution_discriminator_forward.21} parent=19 // pred_check
        %p119 = pneg %p42
      $region22: #{multi_resolution_discriminator_forward.21} parent=19 // pred_check_branch
        %121 = sbr.rel (%p119) target = $region24
      $region23: #{multi_resolution_discriminator_forward.21} parent=19 // pred_region
        %s122 = smul.u32 5, %s16
        %p123 = scmp.lt.s32.totalorder %s15, 3
        %s124 = scalar_select %p123, %s15, 3
        %p125 = scmp.lt.s32.totalorder %s122, 4
        %s126 = scalar_select %p125, %s122, 4
        %s127 = smul.addr %s124, 5
        %s128 = sadd.s32 %s126, %s127
        %s129 = smul.addr %s128, 4
        %s130 = scalar_lea.vmem %s0, %s129
        %s131 = smul.u32 5, %s16
      $region24: #{multi_resolution_discriminator_forward.21} parent=19 // pred_fallthru
        _
    $region20: #{multi_resolution_discriminator_forward.21} parent=5 // pred_fallthru
      _
    %p132 = scmp.le.s32.totalorder 1, %s8
    %p133 = scmp.lt.s32.totalorder %s8, 5
    %p134 = pnand %p132, %p133
    %p135 = pneg %p134
    // Predicated region
    $region25: #{multi_resolution_discriminator_forward.21} parent=5 // pred_check
      _
    $region26: #{multi_resolution_discriminator_forward.21} parent=5 // pred_check_branch
      %137 = sbr.rel (%p134) target = $region28
    $region27: #{multi_resolution_discriminator_forward.21} parent=5 // pred_region
      %s138 = ssub.s32 %s8, 1
      %s139 = smul.u32 5, %s18
      %p140 = scmp.lt.s32.totalorder %s17, 3
      %s141 = scalar_select %p140, %s17, 3
      %p142 = scmp.lt.s32.totalorder %s139, 4
      %s143 = scalar_select %p142, %s139, 4
      %s144 = smul.addr %s141, 5
      %s145 = sadd.s32 %s143, %s144
      %s146 = smul.addr %s145, 4
      %s147 = scalar_lea.vmem %s0, %s146
      %p148 = pneg %p48
      %p149 = pneg %p45
      %p150 = pneg %p69
      %p151 = pneg %p66
      %p152 = pneg %p97
      %p153 = pneg %p94
      %s154 = smul.u32 5, %s18
      %p155 = scmp.lt.s32.totalorder %s17, 3
      %s156 = scalar_select %p155, %s17, 3
      %p157 = scmp.lt.s32.totalorder %s154, 4
      %s158 = scalar_select %p157, %s154, 4
      %s159 = smul.addr %s156, 10
      %s160 = sadd.s32 %s158, %s159
      %s161 = smul.addr %s160, 4
      %s162 = scalar_lea.vmem %s2, %s161
      %s163 = smul.u32 5, %s18
      %p164 = scmp.lt.s32.totalorder %s17, 3
      %s165 = scalar_select %p164, %s17, 3
      %p166 = scmp.lt.s32.totalorder %s163, 4
      %s167 = scalar_select %p166, %s163, 4
      %s168 = smul.addr %s165, 5
      %s169 = sadd.s32 %s167, %s168
      %s170 = smul.addr %s169, 4
      %s171 = scalar_lea.vmem %s0, %s170
      %s172 = smul.u32 5, %s18
      %s173 = smul.u32 5, %s18
      %p174 = scmp.lt.s32.totalorder %s17, 3
      %s175 = scalar_select %p174, %s17, 3
      %p176 = scmp.lt.s32.totalorder %s173, 4
      %s177 = scalar_select %p176, %s173, 4
      %s178 = smul.addr %s175, 10
      %s179 = sadd.s32 %s177, %s178
      %s180 = smul.addr %s179, 4
      %s181 = scalar_lea.vmem %s2, %s180
      %s182 = smul.u32 5, %s18
      %v184 = vld [vmem:[%s171] sm:$0xf]
      %v185 = vld [vmem:[%s171 + $0x4] sm:$0xf]
      %v186 = vld [vmem:[%s171 + $0x8] sm:$0xf]
      %v187 = vld [vmem:[%s171 + $0xc] sm:$0xf]
      %v188 = vld [vmem:[%s171 + $0x10] sm:$0x1]
      %v189 = vld [vmem:[%s1] sm:$0xf]
      %v190 = vld [vmem:[%s1 + $0x4] sm:$0xf]
      %v191 = vld [vmem:[%s1 + $0x8] sm:$0xf]
      %v192 = vld [vmem:[%s1 + $0xc] sm:$0xf]
      %v198 = vunpack.c.l.b16 %v184
      %v199 = vunpack.c.l.b16 %v185
      %v200 = vunpack.c.l.b16 %v186
      %v201 = vunpack.c.l.b16 %v187
      %v202 = vunpack.c.l.b16 %v188
      %v203 = vpack.c.b16 %v199, %v198
      %v204 = vpack.c.b16 %v201, %v200
      %v205 = vpack.c.b16 %v202, %v202
      %v210 = vunpack.c.l.b16 %v189
      %v211 = vunpack.c.l.b16 %v190
      %v212 = vunpack.c.l.b16 %v191
      %v213 = vunpack.c.l.b16 %v192
      %v214 = vpack.c.b16 %v211, %v210
      %v215 = vpack.c.b16 %v213, %v212
      %vm218 = vcmask 261120
      %v220 = vsel %vm218, %v203, 0
      %v223 = vsel %vm218, %v204, 0
      %v226 = vsel %vm218, %v205, 0
      %228 = vmatprep.subr.bf16.mxu0 0
      %229 = vmatpush1.bf16.msra.mxu0 0
      %230 = vmatprep.subr.bf16.mxu0 0
      %231 = vmatpush1.bf16.msra.mxu0 0
      %232 = vmatprep.subr.bf16.mxu0 0
      %233 = vmatpush1.bf16.msra.mxu0 0
      %234 = vmatprep.subr.bf16.mxu0 0
      %235 = vmatpush1.bf16.msra.mxu0 0
      %236 = vmatprep.subr.bf16.mxu0 0
      %237 = vmatpush1.bf16.msra.mxu0 0
      %238 = vmatprep.subr.bf16.mxu0 0
      %239 = vmatpush1.bf16.msra.mxu0 0
      %240 = vmatprep.subr.bf16.mxu0 0
      %241 = vmatpush1.bf16.msra.mxu0 %v215
      %242 = vmatprep.subr.bf16.mxu0 0
      %243 = vmatpush1.bf16.msra.mxu0 %v214
      %244 = vmatprep.subr.bf16.mxu0 0
      %245 = vmatpush2.bf16.msra.mxu0 0
      %246 = vmatprep.subr.bf16.mxu0 0
      %247 = vmatpush2.bf16.msra.mxu0 0
      %248 = vmatprep.subr.bf16.mxu0 0
      %249 = vmatpush2.bf16.msra.mxu0 0
      %250 = vmatprep.subr.bf16.mxu0 0
      %251 = vmatpush2.bf16.msra.mxu0 0
      %252 = vmatprep.subr.bf16.mxu0 0
      %253 = vmatpush2.bf16.msra.mxu0 0
      %254 = vmatprep.subr.bf16.mxu0 0
      %255 = vmatpush2.bf16.msra.mxu0 0
      %256 = vmatprep.subr.bf16.mxu0 0
      %257 = vmatpush2.bf16.msra.mxu0 0
      %258 = vmatprep.subr.bf16.mxu0 0
      %259 = vmatpush2.bf16.msra.mxu0 0
      %260 = vmatprep.mubr.bf16.mxu0 0
      %261 = vmatmul.mubr.bf16.gmra.mxu0 %v220
      %v262 = vpop.f32.mrf.mxu0
      %v263 = vadd.f32 0.0, %v262
      %v264 = vpop.f32.mrf.mxu0
      %v265 = vpop.f32.mrf.mxu0
      %v266 = vadd.f32 0.0, %v265
      %v267 = vpop.f32.mrf.mxu0
      %268 = vmatprep.mubr.bf16.mxu0 0
      %269 = vmatmul.mubr.bf16.gmra.mxu0 %v223
      %v270 = vpop.f32.mrf.mxu0
      %v271 = vadd.f32 0.0, %v270
      %v272 = vpop.f32.mrf.mxu0
      %v273 = vpop.f32.mrf.mxu0
      %v274 = vadd.f32 0.0, %v273
      %v275 = vpop.f32.mrf.mxu0
      %276 = vmatprep.mubr.bf16.mxu0 0
      %277 = vmatmul.mubr.bf16.gmra.mxu0 %v226
      %v278 = vpop.f32.mrf.mxu0
      %v279 = vadd.f32 0.0, %v278
      %v280 = vpop.f32.mrf.mxu0
      %v281 = vpop.f32.mrf.mxu0
      %v282 = vpop.f32.mrf.mxu0
      %283 = vdwg.mxu0
      %v284 = vpack.c.bf16 %v266, %v263
      %v285 = vpack.c.bf16 %v274, %v271
      %v286 = vpack.c.bf16 %v279, %v279
      %v290 = vunpack.c.l.b16 %v284
      %v291 = vunpack.c.h.b16 %v284
      %v292 = vunpack.c.l.b16 %v285
      %v293 = vunpack.c.h.b16 %v285
      %v294 = vunpack.c.l.b16 %v286
      %v295 = vpack.c.b16 %v290, %v290
      %v296 = vpack.c.b16 %v291, %v291
      %v297 = vpack.c.b16 %v292, %v292
      %v298 = vpack.c.b16 %v293, %v293
      %v299 = vpack.c.b16 %v294, %v294
      %305 = vst [vmem:[%s181] sm:$0xf] %v295
      %306 = vst [vmem:[%s181 + $0x4] sm:$0xf] %v296
      %307 = vst [vmem:[%s181 + $0x8] sm:$0xf] %v297
      %308 = vst [vmem:[%s181 + $0xc] sm:$0xf] %v298
      %vm309 = vcmask 1040384
      %vm310 = vsmask.f32 256
      %vm311 = vmand %vm309, %vm310
      %v312 = vld [vmem:[%s181 + $0x10] sm:$0x1]
      %v313 = vsel %vm311, %v299, %v312
      %314 = vst [vmem:[%s181 + $0x10] sm:$0x1] %v313
      %s315 = scalar_lea.vmem %s1, 16
      %v316 = vld [vmem:[%s315] sm:$0xf]
      %v317 = vld [vmem:[%s315 + $0x4] sm:$0xf]
      %v318 = vld [vmem:[%s315 + $0x8] sm:$0xf]
      %v319 = vld [vmem:[%s315 + $0xc] sm:$0xf]
      %v324 = vunpack.c.l.b16 %v316
      %v325 = vunpack.c.l.b16 %v317
      %v326 = vunpack.c.l.b16 %v318
      %v327 = vunpack.c.l.b16 %v319
      %v328 = vpack.c.b16 %v325, %v324
      %v329 = vpack.c.b16 %v327, %v326
      %332 = vmatprep.subr.bf16.mxu0 0
      %333 = vmatpush1.bf16.msra.mxu0 0
      %334 = vmatprep.subr.bf16.mxu0 0
      %335 = vmatpush1.bf16.msra.mxu0 0
      %336 = vmatprep.subr.bf16.mxu0 0
      %337 = vmatpush1.bf16.msra.mxu0 0
      %338 = vmatprep.subr.bf16.mxu0 0
      %339 = vmatpush1.bf16.msra.mxu0 0
      %340 = vmatprep.subr.bf16.mxu0 0
      %341 = vmatpush1.bf16.msra.mxu0 0
      %342 = vmatprep.subr.bf16.mxu0 0
      %343 = vmatpush1.bf16.msra.mxu0 0
      %344 = vmatprep.subr.bf16.mxu0 0
      %345 = vmatpush1.bf16.msra.mxu0 %v329
      %346 = vmatprep.subr.bf16.mxu0 0
      %347 = vmatpush1.bf16.msra.mxu0 %v328
      %348 = vmatprep.subr.bf16.mxu0 0
      %349 = vmatpush2.bf16.msra.mxu0 0
      %350 = vmatprep.subr.bf16.mxu0 0
      %351 = vmatpush2.bf16.msra.mxu0 0
      %352 = vmatprep.subr.bf16.mxu0 0
      %353 = vmatpush2.bf16.msra.mxu0 0
      %354 = vmatprep.subr.bf16.mxu0 0
      %355 = vmatpush2.bf16.msra.mxu0 0
      %356 = vmatprep.subr.bf16.mxu0 0
      %357 = vmatpush2.bf16.msra.mxu0 0
      %358 = vmatprep.subr.bf16.mxu0 0
      %359 = vmatpush2.bf16.msra.mxu0 0
      %360 = vmatprep.subr.bf16.mxu0 0
      %361 = vmatpush2.bf16.msra.mxu0 0
      %362 = vmatprep.subr.bf16.mxu0 0
      %363 = vmatpush2.bf16.msra.mxu0 0
      %364 = vmatprep.mubr.bf16.mxu0 0
      %365 = vmatmul.mubr.bf16.gmra.mxu0 %v220
      %v366 = vpop.f32.mrf.mxu0
      %v367 = vadd.f32 0.0, %v366
      %v368 = vpop.f32.mrf.mxu0
      %v369 = vpop.f32.mrf.mxu0
      %v370 = vadd.f32 0.0, %v369
      %v371 = vpop.f32.mrf.mxu0
      %372 = vmatprep.mubr.bf16.mxu0 0
      %373 = vmatmul.mubr.bf16.gmra.mxu0 %v223
      %v374 = vpop.f32.mrf.mxu0
      %v375 = vadd.f32 0.0, %v374
      %v376 = vpop.f32.mrf.mxu0
      %v377 = vpop.f32.mrf.mxu0
      %v378 = vadd.f32 0.0, %v377
      %v379 = vpop.f32.mrf.mxu0
      %380 = vmatprep.mubr.bf16.mxu0 0
      %381 = vmatmul.mubr.bf16.gmra.mxu0 %v226
      %v382 = vpop.f32.mrf.mxu0
      %v383 = vadd.f32 0.0, %v382
      %v384 = vpop.f32.mrf.mxu0
      %v385 = vpop.f32.mrf.mxu0
      %v386 = vpop.f32.mrf.mxu0
      %387 = vdwg.mxu0
      %v388 = vpack.c.bf16 %v370, %v367
      %v389 = vpack.c.bf16 %v378, %v375
      %v390 = vpack.c.bf16 %v383, %v383
      %v394 = vunpack.c.l.b16 %v388
      %v395 = vunpack.c.h.b16 %v388
      %v396 = vunpack.c.l.b16 %v389
      %v397 = vunpack.c.h.b16 %v389
      %v398 = vunpack.c.l.b16 %v390
      %v399 = vpack.c.b16 %v394, %v394
      %v400 = vpack.c.b16 %v395, %v395
      %v401 = vpack.c.b16 %v396, %v396
      %v402 = vpack.c.b16 %v397, %v397
      %v403 = vpack.c.b16 %v398, %v398
      %s409 = scalar_lea.vmem %s181, 20
      %410 = vst [vmem:[%s409] sm:$0xf] %v399
      %411 = vst [vmem:[%s409 + $0x4] sm:$0xf] %v400
      %412 = vst [vmem:[%s409 + $0x8] sm:$0xf] %v401
      %413 = vst [vmem:[%s409 + $0xc] sm:$0xf] %v402
      %v414 = vld [vmem:[%s409 + $0x10] sm:$0x1]
      %v415 = vsel %vm311, %v403, %v414
      %416 = vst [vmem:[%s409 + $0x10] sm:$0x1] %v415
      %s417 = smul.u32 5, %s18
      %p418 = scmp.lt.s32.totalorder %s17, 3
      %s419 = scalar_select %p418, %s17, 3
      %p420 = scmp.lt.s32.totalorder %s417, 4
      %s421 = scalar_select %p420, %s417, 4
      %s422 = smul.addr %s419, 10
      %s423 = sadd.s32 %s421, %s422
      %s424 = smul.addr %s423, 4
      %s425 = scalar_lea.vmem %s2, %s424
      // Predicated region
      $region29: #{multi_resolution_discriminator_forward.21} parent=27 // pred_check
        %p426 = pneg %p94
      $region30: #{multi_resolution_discriminator_forward.21} parent=27 // pred_check_branch
        %428 = sbr.rel (%p426) target = $region32
      $region31: #{multi_resolution_discriminator_forward.21} parent=27 // pred_region
        %s429 = smul.u32 5, %s18
      $region32: #{multi_resolution_discriminator_forward.21} parent=27 // pred_fallthru
        _
    $region28: #{multi_resolution_discriminator_forward.21} parent=5 // pred_fallthru
      _
    %p430 = scmp.le.s32.totalorder 2, %s8
    // Predicated region
    $region33: #{multi_resolution_discriminator_forward.21} parent=5 // pred_check
      %p431 = pneg %p430
    $region34: #{multi_resolution_discriminator_forward.21} parent=5 // pred_check_branch
      %433 = sbr.rel (%p431) target = $region36
    $region35: #{multi_resolution_discriminator_forward.21} parent=5 // pred_region
      %s434 = ssub.s32 %s8, 2
      // Predicated region
      $region37: #{multi_resolution_discriminator_forward.21} parent=35 // pred_check
        %p435 = pneg %p100
      $region38: #{multi_resolution_discriminator_forward.21} parent=35 // pred_check_branch
        %437 = sbr.rel (%p435) target = $region40
      $region39: #{multi_resolution_discriminator_forward.21} parent=35 // pred_region
        %s438 = smul.u32 5, %s20
        %p439 = scmp.lt.s32.totalorder %s19, 3
        %s440 = scalar_select %p439, %s19, 3
        %p441 = scmp.lt.s32.totalorder %s438, 4
        %s442 = scalar_select %p441, %s438, 4
        %s443 = smul.addr %s440, 10
        %s444 = sadd.s32 %s442, %s443
        %s445 = smul.addr %s444, 4
        %s446 = scalar_lea.vmem %s2, %s445
      $region40: #{multi_resolution_discriminator_forward.21} parent=35 // pred_fallthru
        _
    $region36: #{multi_resolution_discriminator_forward.21} parent=5 // pred_fallthru
      _
  $region6: #{multi_resolution_discriminator_forward.21} parent=0 // loop_footer
    %s12 = sadd.s32 1, %s8
  $region7: #{multi_resolution_discriminator_forward.21} parent=0 // loop_footer_branch
    %7 = sbr.rel target = $region3
  $region8: #{multi_resolution_discriminator_forward.21} parent=0 // loop_exit
    _

// kernel: multi_resolution_discriminator_forward.22
$region0: #{multi_resolution_discriminator_forward.22}
  #allocation0 [shape = 'u32[]', space=smem, size = 0x4, offset = 0x4, fixed_abs, tag = 'smem constant byte address 0x4 - core index']
  #allocation1 [shape = 'u32[144,128]{1,0:T(1,128)}', space=vmem, size = 0x12000, scoped, tag = 'internal scratch']
  #allocation2 [shape = 's32[1]{0}', space=sflag, size = 0x4, scoped, tag = 'scoped memory for multi_resolution_discriminator_forward.22']
  #allocation3 [shape = 'u8[512]{0}', space=smem, size = 0x200, scoped, tag = 'prefetched SMEM operand 0']
  %s0 = inlined_call_operand.vmem [shape: s32[5], index: 0, kind: input, shape index: {}]
  %s1 = inlined_call_operand.vmem [shape: bf16[5,32,54], index: 1, kind: input, shape index: {}]
  %s2 = inlined_call_operand.vmem [shape: bf16[4,54,1280], index: 2, kind: input, shape index: {}]
  %s3 = inlined_call_operand.vmem [shape: f32[5,32,1], index: 3, kind: input, shape index: {}]
  %s4 = inlined_call_operand.vmem [shape: bf16[4,32,1280], index: 4, kind: output, shape index: {}]
  %s5 = sld [smem:[#allocation0]]
  $region117: #{multi_resolution_discriminator_forward.22} parent=0
    _
  %s7 = ssub.s32 1, %s5
  %s8 = scalar_select 0, %s7, %s5
  %s9 = sshll.u32 %s0, 4
  %s10 = int_to_ptr.vmem [resolvable:$true] %s9
  %12 = dma.vmem_to_smem %s10, 16, [#allocation3], [#allocation2]
  %13 = dma.done [#allocation2], 16
  %14 = sfence
  $region1: #{multi_resolution_discriminator_forward.22} parent=0
    #allocation4 [shape = 'u8[57344]{0}', space=vmem, size = 0xe000, scoped, tag = 'input window, operand 2']
    #allocation5 [shape = 'u8[32768]{0}', space=vmem, size = 0x8000, scoped, tag = 'output window, operand 0']
    loop: start=0, step=1, limit=22
    $region2: #{multi_resolution_discriminator_forward.22} parent=1 // loop_pre_header
      _
    $region3: #{multi_resolution_discriminator_forward.22} parent=1 // loop_header
      %s16 = sphi 0, %s20
      %p17 = scmp.ge.s32.totalorder %s16, 22
      %s23 = sphi 0, %s35
      %s24 = sphi 0, %s31
      %s25 = sphi 0, %s23
      %s26 = sphi 0, %s24
      %s27 = sphi 0, %s25
      %s28 = sphi 0, %s26
      %s40 = sphi 0, %s42
      %s43 = sphi 0, %s40
      %s44 = sphi 0, %s43
      %s60 = sphi 0, %s44
      %s68 = sphi 0, %s70
      %s71 = sphi 0, %s68
      %s72 = sphi 0, %s71
      %s88 = sphi 0, %s72
      %s96 = sphi 0, %s98
      %s99 = sphi 0, %s96
      %s100 = sphi 0, %s99
      %s116 = sphi 0, %s100
      %s124 = sphi 0, %s126
      %s127 = sphi 0, %s124
      %s128 = sphi 0, %s127
      %s144 = sphi 0, %s128
    $region4: #{multi_resolution_discriminator_forward.22} parent=1 // loop_header_branch
      %19 = sbr.rel (%p17) target = $region8
    $region5: #{multi_resolution_discriminator_forward.22} parent=1 // loop_body
      %s21 = ssub.s32 %s16, 1
      %s22 = ssub.s32 %s16, 2
      %s29 = sadd.s32 1, %s24
      %p30 = scmp.ge.s32.totalorder %s29, 5
      %s31 = scalar_select %p30, 0, %s29
      %s32 = sadd.s32 1, %s23
      %s33 = scalar_select %p30, %s32, %s23
      %p34 = scmp.ge.s32.totalorder %s33, 4
      %s35 = scalar_select %p34, 0, %s33
      %s36 = sld [smem:[#allocation3 + %s24]]
      %s37 = sld [smem:[#allocation3 + %s31]]
      %s38 = ssub.s32 %s36, %s37
      %p39 = scmp.eq.s32.totalorder %s38, 0
      %s41 = sadd.s32 %s40, 1
      %s42 = scalar_select %p39, %s40, %s41
      %p45 = pneg %p39
      %p46 = scmp.eq.s32.totalorder %s16, 19
      %p47 = por %p45, %p46
      %p48 = scmp.ne.s32.totalorder %s40, %s43
      %p49 = scmp.eq.s32.totalorder %s16, 0
      %p50 = por %p48, %p49
      %p51 = scmp.ne.s32.totalorder %s40, %s43
      %p52 = scmp.eq.s32.totalorder %s21, 19
      %p53 = por %p51, %p52
      %p54 = scmp.ne.s32.totalorder %s43, %s44
      %p55 = scmp.eq.s32.totalorder %s21, 0
      %p56 = por %p54, %p55
      %p57 = scmp.ne.s32.totalorder %s43, %s44
      %p58 = scmp.eq.s32.totalorder %s22, 19
      %p59 = por %p57, %p58
      %p61 = scmp.ne.s32.totalorder %s44, %s60
      %p62 = scmp.eq.s32.totalorder %s22, 0
      %p63 = por %p61, %p62
      %s64 = ssub.s32 %s23, %s35
      %s65 = ssub.s32 %s24, %s31
      %s66 = sor.u32 %s64, %s65
      %p67 = scmp.eq.s32.totalorder %s66, 0
      %s69 = sadd.s32 %s68, 1
      %s70 = scalar_select %p67, %s68, %s69
      %p73 = pneg %p67
      %p74 = scmp.eq.s32.totalorder %s16, 19
      %p75 = por %p73, %p74
      %p76 = scmp.ne.s32.totalorder %s68, %s71
      %p77 = scmp.eq.s32.totalorder %s16, 0
      %p78 = por %p76, %p77
      %p79 = scmp.ne.s32.totalorder %s68, %s71
      %p80 = scmp.eq.s32.totalorder %s21, 19
      %p81 = por %p79, %p80
      %p82 = scmp.ne.s32.totalorder %s71, %s72
      %p83 = scmp.eq.s32.totalorder %s21, 0
      %p84 = por %p82, %p83
      %p85 = scmp.ne.s32.totalorder %s71, %s72
      %p86 = scmp.eq.s32.totalorder %s22, 19
      %p87 = por %p85, %p86
      %p89 = scmp.ne.s32.totalorder %s72, %s88
      %p90 = scmp.eq.s32.totalorder %s22, 0
      %p91 = por %p89, %p90
      %s92 = sld [smem:[#allocation3 + %s24]]
      %s93 = sld [smem:[#allocation3 + %s31]]
      %s94 = ssub.s32 %s92, %s93
      %p95 = scmp.eq.s32.totalorder %s94, 0
      %s97 = sadd.s32 %s96, 1
      %s98 = scalar_select %p95, %s96, %s97
      %p101 = pneg %p95
      %p102 = scmp.eq.s32.totalorder %s16, 19
      %p103 = por %p101, %p102
      %p104 = scmp.ne.s32.totalorder %s96, %s99
      %p105 = scmp.eq.s32.totalorder %s16, 0
      %p106 = por %p104, %p105
      %p107 = scmp.ne.s32.totalorder %s96, %s99
      %p108 = scmp.eq.s32.totalorder %s21, 19
      %p109 = por %p107, %p108
      %p110 = scmp.ne.s32.totalorder %s99, %s100
      %p111 = scmp.eq.s32.totalorder %s21, 0
      %p112 = por %p110, %p111
      %p113 = scmp.ne.s32.totalorder %s99, %s100
      %p114 = scmp.eq.s32.totalorder %s22, 19
      %p115 = por %p113, %p114
      %p117 = scmp.ne.s32.totalorder %s100, %s116
      %p118 = scmp.eq.s32.totalorder %s22, 0
      %p119 = por %p117, %p118
      %s120 = ssub.s32 %s23, %s35
      %s121 = ssub.s32 %s24, %s31
      %s122 = sor.u32 %s120, %s121
      %p123 = scmp.eq.s32.totalorder %s122, 0
      %s125 = sadd.s32 %s124, 1
      %s126 = scalar_select %p123, %s124, %s125
      %p129 = pneg %p123
      %p130 = scmp.eq.s32.totalorder %s16, 19
      %p131 = por %p129, %p130
      %p132 = scmp.ne.s32.totalorder %s124, %s127
      %p133 = scmp.eq.s32.totalorder %s16, 0
      %p134 = por %p132, %p133
      %p135 = scmp.ne.s32.totalorder %s124, %s127
      %p136 = scmp.eq.s32.totalorder %s21, 19
      %p137 = por %p135, %p136
      %p138 = scmp.ne.s32.totalorder %s127, %s128
      %p139 = scmp.eq.s32.totalorder %s21, 0
      %p140 = por %p138, %p139
      %p141 = scmp.ne.s32.totalorder %s127, %s128
      %p142 = scmp.eq.s32.totalorder %s22, 19
      %p143 = por %p141, %p142
      %p145 = scmp.ne.s32.totalorder %s128, %s144
      %p146 = scmp.eq.s32.totalorder %s22, 0
      %p147 = por %p145, %p146
      %p148 = scmp.le.s32.totalorder 1, %s16
      %p149 = scmp.lt.s32.totalorder %s16, 21
      %p150 = pnand %p148, %p149
      %p151 = pneg %p150
      // Predicated region
      $region9: #{multi_resolution_discriminator_forward.22} parent=5 // pred_check
        _
      $region10: #{multi_resolution_discriminator_forward.22} parent=5 // pred_check_branch
        %153 = sbr.rel (%p150) target = $region12
      $region11: #{multi_resolution_discriminator_forward.22} parent=5 // pred_region
        %s154 = ssub.s32 %s16, 1
      $region12: #{multi_resolution_discriminator_forward.22} parent=5 // pred_fallthru
        _
      %p155 = scmp.lt.s32.totalorder %s16, 20
      // Predicated region
      $region13: #{multi_resolution_discriminator_forward.22} parent=5 // pred_check
        %p156 = pneg %p155
      $region14: #{multi_resolution_discriminator_forward.22} parent=5 // pred_check_branch
        %158 = sbr.rel (%p156) target = $region16
      $region15: #{multi_resolution_discriminator_forward.22} parent=5 // pred_region
        // Predicated region
        $region17: #{multi_resolution_discriminator_forward.22} parent=15 // pred_check
          %p159 = pneg %p50
        $region18: #{multi_resolution_discriminator_forward.22} parent=15 // pred_check_branch
          %161 = sbr.rel (%p159) target = $region20
        $region19: #{multi_resolution_discriminator_forward.22} parent=15 // pred_region
          %s162 = sld [smem:[#allocation3 + %s24]]
          %p163 = scmp.lt.s32.totalorder %s162, 4
          %s164 = scalar_select %p163, %s162, 4
          %s165 = smul.addr %s164, 4
          %s166 = smul.addr %s165, 4
          %s167 = scalar_lea.vmem %s1, %s166
          %s168 = sld [smem:[#allocation3 + %s24]]
        $region20: #{multi_resolution_discriminator_forward.22} parent=15 // pred_fallthru
          _
        // Predicated region
        $region21: #{multi_resolution_discriminator_forward.22} parent=15 // pred_check
          %p169 = pneg %p78
        $region22: #{multi_resolution_discriminator_forward.22} parent=15 // pred_check_branch
          %171 = sbr.rel (%p169) target = $region24
        $region23: #{multi_resolution_discriminator_forward.22} parent=15 // pred_region
          %s172 = sand.u32 %s68, 1
          %s173 = sand.u32 %s68, 1
          %s174 = smul.addr %s173, 56
          %s175 = scalar_lea.vmem [#allocation4], %s174
          %s176 = smul.u32 2, %s24
          %s177 = smul.addr %s23, 70
          %s178 = sadd.s32 %s176, %s177
          %s179 = smul.addr %s178, 4
          %s180 = scalar_lea.vmem %s2, %s179
          // Predicated region
          $region25: #{multi_resolution_discriminator_forward.22} parent=23 // pred_check
            _
          $region26: #{multi_resolution_discriminator_forward.22} parent=23 // pred_check_branch
            %182 = sbr.rel (0) target = $region28
          $region27: #{multi_resolution_discriminator_forward.22} parent=23 // pred_region
            // Predicated region
            $region29: #{multi_resolution_discriminator_forward.22} parent=27 // pred_check
              _
            $region30: #{multi_resolution_discriminator_forward.22} parent=27 // pred_check_branch
              %184 = sbr.rel (0) target = $region32
            $region31: #{multi_resolution_discriminator_forward.22} parent=27 // pred_region
              // Predicated region
              $region44: #{multi_resolution_discriminator_forward.22} parent=31 // pred_check
                _
              $region45: #{multi_resolution_discriminator_forward.22} parent=31 // pred_check_branch
                %212 = sbr.rel (0) target = $region47
              $region46: #{multi_resolution_discriminator_forward.22} parent=31 // pred_region
                loop: start=0, step=1, limit=1
                $region48: #{multi_resolution_discriminator_forward.22} parent=46 // loop_pre_header
                  _
                $region49: #{multi_resolution_discriminator_forward.22} parent=46 // loop_header
                  %s214 = sphi 0, %s218
                  %p215 = scmp.ge.s32.totalorder %s214, 1
                  %s219 = sphi %s180, %s180
                  %s220 = sphi %s175, %s175
                $region50: #{multi_resolution_discriminator_forward.22} parent=46 // loop_header_branch
                  %217 = sbr.rel (%p215) target = $region54
                $region51: #{multi_resolution_discriminator_forward.22} parent=46 // loop_body
                  %v221 = vld [vmem:[%s219] sm:$0xff]
                  %222 = vst [vmem:[%s220] sm:$0xff] %v221
                  %v223 = vld [vmem:[%s219 + $0x28] sm:$0xff]
                  %224 = vst [vmem:[%s220 + $0x8] sm:$0xff] %v223
                  %v225 = vld [vmem:[%s219 + $0x50] sm:$0xff]
                  %226 = vst [vmem:[%s220 + $0x10] sm:$0xff] %v225
                  %v227 = vld [vmem:[%s219 + $0x78] sm:$0xff]
                  %228 = vst [vmem:[%s220 + $0x18] sm:$0xff] %v227
                  %v229 = vld [vmem:[%s219 + $0xa0] sm:$0xff]
                  %230 = vst [vmem:[%s220 + $0x20] sm:$0xff] %v229
                  %v231 = vld [vmem:[%s219 + $0xc8] sm:$0xff]
                  %232 = vst [vmem:[%s220 + $0x28] sm:$0xff] %v231
                  %v233 = vld [vmem:[%s219 + $0xf0] sm:$0xff]
                  %234 = vst [vmem:[%s220 + $0x30] sm:$0xff] %v233
                $region52: #{multi_resolution_discriminator_forward.22} parent=46 // loop_footer
                  %s218 = sadd.s32 1, %s214
                $region53: #{multi_resolution_discriminator_forward.22} parent=46 // loop_footer_branch
                  %213 = sbr.rel target = $region49
                $region54: #{multi_resolution_discriminator_forward.22} parent=46 // loop_exit
                  _
              $region47: #{multi_resolution_discriminator_forward.22} parent=31 // pred_fallthru
                _
              // Predicated region
              $region55: #{multi_resolution_discriminator_forward.22} parent=31 // pred_check
                _
              $region56: #{multi_resolution_discriminator_forward.22} parent=31 // pred_check_branch
                %236 = sbr.rel target = $region58
              $region57: #{multi_resolution_discriminator_forward.22} parent=31 // pred_region
                _
              $region58: #{multi_resolution_discriminator_forward.22} parent=31 // pred_fallthru
                _
            $region32: #{multi_resolution_discriminator_forward.22} parent=27 // pred_fallthru
              _
            // Predicated region
            $region33: #{multi_resolution_discriminator_forward.22} parent=27 // pred_check
              _
            $region34: #{multi_resolution_discriminator_forward.22} parent=27 // pred_check_branch
              %186 = sbr.rel target = $region36
            $region35: #{multi_resolution_discriminator_forward.22} parent=27 // pred_region
              %s188 = ssub.s32 256, 1
              loop: start=0, step=1, limit=1
              $region37: #{multi_resolution_discriminator_forward.22} parent=35 // loop_pre_header
                _
              $region38: #{multi_resolution_discriminator_forward.22} parent=35 // loop_header
                %s190 = sphi 0, %s194
                %p191 = scmp.ge.s32.totalorder %s190, 1
                %s195 = sphi %s180, %s180
                %s196 = sphi %s175, %s175
              $region39: #{multi_resolution_discriminator_forward.22} parent=35 // loop_header_branch
                %193 = sbr.rel (%p191) target = $region43
              $region40: #{multi_resolution_discriminator_forward.22} parent=35 // loop_body
                %v197 = vld [vmem:[%s195] sm:%s188]
                %198 = vst [vmem:[%s196] sm:%s188] %v197
                %v199 = vld [vmem:[%s195 + $0x28] sm:%s188]
                %200 = vst [vmem:[%s196 + $0x8] sm:%s188] %v199
                %v201 = vld [vmem:[%s195 + $0x50] sm:%s188]
                %202 = vst [vmem:[%s196 + $0x10] sm:%s188] %v201
                %v203 = vld [vmem:[%s195 + $0x78] sm:%s188]
                %204 = vst [vmem:[%s196 + $0x18] sm:%s188] %v203
                %v205 = vld [vmem:[%s195 + $0xa0] sm:%s188]
                %206 = vst [vmem:[%s196 + $0x20] sm:%s188] %v205
                %v207 = vld [vmem:[%s195 + $0xc8] sm:%s188]
                %208 = vst [vmem:[%s196 + $0x28] sm:%s188] %v207
                %v209 = vld [vmem:[%s195 + $0xf0] sm:%s188]
                %210 = vst [vmem:[%s196 + $0x30] sm:%s188] %v209
              $region41: #{multi_resolution_discriminator_forward.22} parent=35 // loop_footer
                %s194 = sadd.s32 1, %s190
              $region42: #{multi_resolution_discriminator_forward.22} parent=35 // loop_footer_branch
                %189 = sbr.rel target = $region38
              $region43: #{multi_resolution_discriminator_forward.22} parent=35 // loop_exit
                _
            $region36: #{multi_resolution_discriminator_forward.22} parent=27 // pred_fallthru
              _
          $region28: #{multi_resolution_discriminator_forward.22} parent=23 // pred_fallthru
            _
          %237 = vnop
        $region24: #{multi_resolution_discriminator_forward.22} parent=15 // pred_fallthru
          _
        // Predicated region
        $region59: #{multi_resolution_discriminator_forward.22} parent=15 // pred_check
          %p238 = pneg %p106
        $region60: #{multi_resolution_discriminator_forward.22} parent=15 // pred_check_branch
          %240 = sbr.rel (%p238) target = $region62
        $region61: #{multi_resolution_discriminator_forward.22} parent=15 // pred_region
          %s241 = sld [smem:[#allocation3 + %s24]]
          %p242 = scmp.lt.s32.totalorder %s241, 4
          %s243 = scalar_select %p242, %s241, 4
          %s244 = smul.addr %s243, 4
          %s245 = smul.addr %s244, 8
          %s246 = scalar_lea.vmem %s3, %s245
          %s247 = sld [smem:[#allocation3 + %s24]]
        $region62: #{multi_resolution_discriminator_forward.22} parent=15 // pred_fallthru
          _
      $region16: #{multi_resolution_discriminator_forward.22} parent=5 // pred_fallthru
        _
      %p248 = scmp.le.s32.totalorder 1, %s16
      %p249 = scmp.lt.s32.totalorder %s16, 21
      %p250 = pnand %p248, %p249
      %p251 = pneg %p250
      // Predicated region
      $region63: #{multi_resolution_discriminator_forward.22} parent=5 // pred_check
        _
      $region64: #{multi_resolution_discriminator_forward.22} parent=5 // pred_check_branch
        %253 = sbr.rel (%p250) target = $region66
      $region65: #{multi_resolution_discriminator_forward.22} parent=5 // pred_region
        %s254 = ssub.s32 %s16, 1
        %s255 = sand.u32 %s71, 1
        %s256 = sand.u32 %s71, 1
        %s257 = smul.addr %s256, 56
        %s258 = scalar_lea.vmem [#allocation4], %s257
        // Predicated region
        $region67: #{multi_resolution_discriminator_forward.22} parent=65 // pred_check
          %p259 = pneg %p84
        $region68: #{multi_resolution_discriminator_forward.22} parent=65 // pred_check_branch
          %261 = sbr.rel (%p259) target = $region70
        $region69: #{multi_resolution_discriminator_forward.22} parent=65 // pred_region
          _
        $region70: #{multi_resolution_discriminator_forward.22} parent=65 // pred_fallthru
          _
        %s262 = sld [smem:[#allocation3 + %s26]]
        %p263 = scmp.lt.s32.totalorder %s262, 4
        %s264 = scalar_select %p263, %s262, 4
        %s265 = smul.addr %s264, 4
        %s266 = smul.addr %s265, 4
        %s267 = scalar_lea.vmem %s1, %s266
        %p268 = pneg %p56
        %p269 = pneg %p53
        %s270 = sand.u32 %s71, 1
        %s271 = sand.u32 %s71, 1
        %s272 = smul.addr %s271, 56
        %s273 = scalar_lea.vmem [#allocation4], %s272
        %p274 = pneg %p84
        %p275 = pneg %p81
        %s276 = sld [smem:[#allocation3 + %s26]]
        %p277 = scmp.lt.s32.totalorder %s276, 4
        %s278 = scalar_select %p277, %s276, 4
        %s279 = smul.addr %s278, 4
        %s280 = smul.addr %s279, 8
        %s281 = scalar_lea.vmem %s3, %s280
        %p282 = pneg %p112
        %p283 = pneg %p109
        %p284 = pneg %p140
        %p285 = pneg %p137
        %s286 = sand.u32 %s127, 1
        %s287 = sand.u32 %s127, 1
        %s288 = smul.addr %s287, 32
        %s289 = scalar_lea.vmem [#allocation5], %s288
        %s290 = sld [smem:[#allocation3 + %s26]]
        %p291 = scmp.lt.s32.totalorder %s290, 4
        %s292 = scalar_select %p291, %s290, 4
        %s293 = smul.addr %s292, 4
        %s294 = smul.addr %s293, 4
        %s295 = scalar_lea.vmem %s1, %s294
        %s296 = sld [smem:[#allocation3 + %s26]]
        %s297 = smul.u32 2, %s26
        %s298 = sld [smem:[#allocation3 + %s26]]
        %p299 = scmp.lt.s32.totalorder %s298, 4
        %s300 = scalar_select %p299, %s298, 4
        %s301 = smul.addr %s300, 4
        %s302 = smul.addr %s301, 8
        %s303 = scalar_lea.vmem %s3, %s302
        %s304 = sld [smem:[#allocation3 + %s26]]
        %s305 = smul.u32 2, %s26
        %v307 = vld [vmem:[%s295] sm:$0xf]
        %v308 = vld [vmem:[%s295 + $0x4] sm:$0xf]
        %v309 = vld [vmem:[%s295 + $0x8] sm:$0xf]
        %v310 = vld [vmem:[%s295 + $0xc] sm:$0xf]
        %v311 = vld [vmem:[%s258] sm:$0xff]
        %v312 = vld [vmem:[%s258 + $0x8] sm:$0xff]
        %v313 = vld [vmem:[%s258 + $0x10] sm:$0xff]
        %v314 = vld [vmem:[%s258 + $0x18] sm:$0xff]
        %v315 = vld [vmem:[%s258 + $0x20] sm:$0xff]
        %v316 = vld [vmem:[%s258 + $0x28] sm:$0xff]
        %v317 = vld [vmem:[%s258 + $0x30] sm:$0x77]
        %v318 = vld [vmem:[%s303] sm:$0xff]
        %v319 = vld [vmem:[%s303 + $0x8] sm:$0xff]
        %v320 = vld [vmem:[%s303 + $0x10] sm:$0xff]
        %v321 = vld [vmem:[%s303 + $0x18] sm:$0xff]
        %323 = vset.pattern.permute.xlu0 0
        %324 = vperm.xlu0 %323, %v318
        %v325 = vpop.permute.xlu0 %324
        %328 = vset.pattern.permute.xlu0 0
        %329 = vperm.xlu0 %328, %v319
        %v330 = vpop.permute.xlu0 %329
        %333 = vset.pattern.permute.xlu0 0
        %334 = vperm.xlu0 %333, %v320
        %v335 = vpop.permute.xlu0 %334
        %338 = vset.pattern.permute.xlu0 0
        %339 = vperm.xlu0 %338, %v321
        %v340 = vpop.permute.xlu0 %339
        %v346 = vunpack.c.l.b16 %v307
        %v347 = vunpack.c.l.b16 %v308
        %v348 = vunpack.c.l.b16 %v309
        %v349 = vunpack.c.l.b16 %v310
        %v350 = vpack.c.b16 %v347, %v346
        %v351 = vpack.c.b16 %v349, %v348
        %v359 = vunpack.c.l.b16 %v311
        %v360 = vunpack.c.h.b16 %v311
        %v361 = vunpack.c.l.b16 %v312
        %v362 = vunpack.c.h.b16 %v312
        %v363 = vunpack.c.l.b16 %v313
        %v364 = vunpack.c.h.b16 %v313
        %v365 = vunpack.c.l.b16 %v314
        %v366 = vunpack.c.h.b16 %v314
        %v367 = vunpack.c.l.b16 %v315
        %v368 = vunpack.c.h.b16 %v315
        %v369 = vunpack.c.l.b16 %v316
        %v370 = vunpack.c.h.b16 %v316
        %v371 = vunpack.c.l.b16 %v317
        %v372 = vunpack.c.h.b16 %v317
        %v373 = vpack.c.b16 %v361, %v359
        %v374 = vpack.c.b16 %v362, %v360
        %v375 = vpack.c.b16 %v365, %v363
        %v376 = vpack.c.b16 %v366, %v364
        %v377 = vpack.c.b16 %v369, %v367
        %v378 = vpack.c.b16 %v370, %v368
        %v379 = vpack.c.b16 %v371, %v371
        %v380 = vpack.c.b16 %v372, %v372
        %vm387 = vcmask 441344
        %v389 = vsel %vm387, %v350, 0
        %v392 = vsel %vm387, %v351, 0
        %vm394 = vcmask 1042432
        %v396 = vsel %vm394, %v379, 0
        %v399 = vsel %vm394, %v380, 0
        %401 = vmatprep.subr.bf16.mxu0 0
        %402 = vmatpush1.bf16.msra.mxu0 0
        %403 = vmatprep.subr.bf16.mxu0 0
        %404 = vmatpush1.bf16.msra.mxu0 0
        %405 = vmatprep.subr.bf16.mxu0 0
        %406 = vmatpush1.bf16.msra.mxu0 0
        %407 = vmatprep.subr.bf16.mxu0 0
        %408 = vmatpush1.bf16.msra.mxu0 0
        %409 = vmatprep.subr.bf16.mxu0 %v399
        %410 = vmatpush1.bf16.msra.mxu0 %v396
        %411 = vmatprep.subr.bf16.mxu0 %v378
        %412 = vmatpush1.bf16.msra.mxu0 %v377
        %413 = vmatprep.subr.bf16.mxu0 %v376
        %414 = vmatpush1.bf16.msra.mxu0 %v375
        %415 = vmatprep.subr.bf16.mxu0 %v374
        %416 = vmatpush1.bf16.msra.mxu0 %v373
        %417 = vmatprep.subr.bf16.mxu0 0
        %418 = vmatpush2.bf16.msra.mxu0 0
        %419 = vmatprep.subr.bf16.mxu0 0
        %420 = vmatpush2.bf16.msra.mxu0 0
        %421 = vmatprep.subr.bf16.mxu0 0
        %422 = vmatpush2.bf16.msra.mxu0 0
        %423 = vmatprep.subr.bf16.mxu0 0
        %424 = vmatpush2.bf16.msra.mxu0 0
        %425 = vmatprep.subr.bf16.mxu0 0
        %426 = vmatpush2.bf16.msra.mxu0 0
        %427 = vmatprep.subr.bf16.mxu0 0
        %428 = vmatpush2.bf16.msra.mxu0 0
        %429 = vmatprep.subr.bf16.mxu0 0
        %430 = vmatpush2.bf16.msra.mxu0 0
        %431 = vmatprep.subr.bf16.mxu0 0
        %432 = vmatpush2.bf16.msra.mxu0 0
        %433 = vmatprep.mubr.bf16.mxu0 0
        %434 = vmatmul.mubr.bf16.gmra.mxu0 %v389
        %v435 = vpop.f32.mrf.mxu0
        %v436 = vadd.f32 %v325, %v435
        %v437 = vpop.f32.mrf.mxu0
        %v438 = vadd.f32 %v325, %v437
        %v439 = vpop.f32.mrf.mxu0
        %v440 = vadd.f32 %v330, %v439
        %v441 = vpop.f32.mrf.mxu0
        %v442 = vadd.f32 %v330, %v441
        %443 = vmatprep.mubr.bf16.mxu0 0
        %444 = vmatmul.mubr.bf16.gmra.mxu0 %v392
        %v445 = vpop.f32.mrf.mxu0
        %v446 = vadd.f32 %v335, %v445
        %v447 = vpop.f32.mrf.mxu0
        %v448 = vadd.f32 %v335, %v447
        %v449 = vpop.f32.mrf.mxu0
        %v450 = vadd.f32 %v340, %v449
        %v451 = vpop.f32.mrf.mxu0
        %v452 = vadd.f32 %v340, %v451
        %453 = vdwg.mxu0
        %vm454 = vcmp.ge.f32.partialorder %v436, 0.0
        %vm455 = vcmp.ge.f32.partialorder %v438, 0.0
        %vm456 = vcmp.ge.f32.partialorder %v440, 0.0
        %vm457 = vcmp.ge.f32.partialorder %v442, 0.0
        %vm458 = vcmp.ge.f32.partialorder %v446, 0.0
        %vm459 = vcmp.ge.f32.partialorder %v448, 0.0
        %vm460 = vcmp.ge.f32.partialorder %v450, 0.0
        %vm461 = vcmp.ge.f32.partialorder %v452, 0.0
        %v462 = vmul.f32 %v436, 0.1
        %v463 = vmul.f32 %v438, 0.1
        %v464 = vmul.f32 %v440, 0.1
        %v465 = vmul.f32 %v442, 0.1
        %v466 = vmul.f32 %v446, 0.1
        %v467 = vmul.f32 %v448, 0.1
        %v468 = vmul.f32 %v450, 0.1
        %v469 = vmul.f32 %v452, 0.1
        %v470 = vsel %vm454, %v436, %v462
        %v471 = vsel %vm455, %v438, %v463
        %v472 = vsel %vm456, %v440, %v464
        %v473 = vsel %vm457, %v442, %v465
        %v474 = vsel %vm458, %v446, %v466
        %v475 = vsel %vm459, %v448, %v467
        %v476 = vsel %vm460, %v450, %v468
        %v477 = vsel %vm461, %v452, %v469
        %v478 = vpack.c.bf16 %v472, %v470
        %v479 = vpack.c.bf16 %v473, %v471
        %v480 = vpack.c.bf16 %v476, %v474
        %v481 = vpack.c.bf16 %v477, %v475
        %v486 = vunpack.c.l.b16 %v478
        %v487 = vunpack.c.l.b16 %v479
        %v488 = vunpack.c.h.b16 %v478
        %v489 = vunpack.c.h.b16 %v479
        %v490 = vunpack.c.l.b16 %v480
        %v491 = vunpack.c.l.b16 %v481
        %v492 = vunpack.c.h.b16 %v480
        %v493 = vunpack.c.h.b16 %v481
        %v494 = vpack.c.b16 %v487, %v486
        %v495 = vpack.c.b16 %v489, %v488
        %v496 = vpack.c.b16 %v491, %v490
        %v497 = vpack.c.b16 %v493, %v492
        %502 = vst [vmem:[%s289] sm:$0xff] %v494
        %503 = vst [vmem:[%s289 + $0x8] sm:$0xff] %v495
        %504 = vst [vmem:[%s289 + $0x10] sm:$0xff] %v496
        %505 = vst [vmem:[%s289 + $0x18] sm:$0xff] %v497
        %s506 = sand.u32 %s127, 1
        %s507 = sand.u32 %s127, 1
        %s508 = smul.addr %s507, 32
        %s509 = scalar_lea.vmem [#allocation5], %s508
        // Predicated region
        $region71: #{multi_resolution_discriminator_forward.22} parent=65 // pred_check
          %p510 = pneg %p137
        $region72: #{multi_resolution_discriminator_forward.22} parent=65 // pred_check_branch
          %512 = sbr.rel (%p510) target = $region74
        $region73: #{multi_resolution_discriminator_forward.22} parent=65 // pred_region
          %s513 = smul.u32 2, %s26
          %s514 = smul.addr %s25, 40
          %s515 = sadd.s32 %s513, %s514
          %s516 = smul.addr %s515, 4
          %s517 = scalar_lea.vmem %s4, %s516
          // Predicated region
          $region75: #{multi_resolution_discriminator_forward.22} parent=73 // pred_check
            _
          $region76: #{multi_resolution_discriminator_forward.22} parent=73 // pred_check_branch
            %519 = sbr.rel (0) target = $region78
          $region77: #{multi_resolution_discriminator_forward.22} parent=73 // pred_region
            // Predicated region
            $region79: #{multi_resolution_discriminator_forward.22} parent=77 // pred_check
              _
            $region80: #{multi_resolution_discriminator_forward.22} parent=77 // pred_check_branch
              %521 = sbr.rel (0) target = $region82
            $region81: #{multi_resolution_discriminator_forward.22} parent=77 // pred_region
              // Predicated region
              $region94: #{multi_resolution_discriminator_forward.22} parent=81 // pred_check
                _
              $region95: #{multi_resolution_discriminator_forward.22} parent=81 // pred_check_branch
                %543 = sbr.rel (0) target = $region97
              $region96: #{multi_resolution_discriminator_forward.22} parent=81 // pred_region
                loop: start=0, step=1, limit=1
                $region98: #{multi_resolution_discriminator_forward.22} parent=96 // loop_pre_header
                  _
                $region99: #{multi_resolution_discriminator_forward.22} parent=96 // loop_header
                  %s545 = sphi 0, %s549
                  %p546 = scmp.ge.s32.totalorder %s545, 1
                  %s550 = sphi %s509, %s509
                  %s551 = sphi %s517, %s517
                $region100: #{multi_resolution_discriminator_forward.22} parent=96 // loop_header_branch
                  %548 = sbr.rel (%p546) target = $region104
                $region101: #{multi_resolution_discriminator_forward.22} parent=96 // loop_body
                  %v552 = vld [vmem:[%s550] sm:$0xff]
                  %553 = vst [vmem:[%s551] sm:$0xff] %v552
                  %v554 = vld [vmem:[%s550 + $0x8] sm:$0xff]
                  %555 = vst [vmem:[%s551 + $0x28] sm:$0xff] %v554
                  %v556 = vld [vmem:[%s550 + $0x10] sm:$0xff]
                  %557 = vst [vmem:[%s551 + $0x50] sm:$0xff] %v556
                  %v558 = vld [vmem:[%s550 + $0x18] sm:$0xff]
                  %559 = vst [vmem:[%s551 + $0x78] sm:$0xff] %v558
                $region102: #{multi_resolution_discriminator_forward.22} parent=96 // loop_footer
                  %s549 = sadd.s32 1, %s545
                $region103: #{multi_resolution_discriminator_forward.22} parent=96 // loop_footer_branch
                  %544 = sbr.rel target = $region99
                $region104: #{multi_resolution_discriminator_forward.22} parent=96 // loop_exit
                  _
              $region97: #{multi_resolution_discriminator_forward.22} parent=81 // pred_fallthru
                _
              // Predicated region
              $region105: #{multi_resolution_discriminator_forward.22} parent=81 // pred_check
                _
              $region106: #{multi_resolution_discriminator_forward.22} parent=81 // pred_check_branch
                %561 = sbr.rel target = $region108
              $region107: #{multi_resolution_discriminator_forward.22} parent=81 // pred_region
                _
              $region108: #{multi_resolution_discriminator_forward.22} parent=81 // pred_fallthru
                _
            $region82: #{multi_resolution_discriminator_forward.22} parent=77 // pred_fallthru
              _
            // Predicated region
            $region83: #{multi_resolution_discriminator_forward.22} parent=77 // pred_check
              _
            $region84: #{multi_resolution_discriminator_forward.22} parent=77 // pred_check_branch
              %523 = sbr.rel target = $region86
            $region85: #{multi_resolution_discriminator_forward.22} parent=77 // pred_region
              %s525 = ssub.s32 256, 1
              loop: start=0, step=1, limit=1
              $region87: #{multi_resolution_discriminator_forward.22} parent=85 // loop_pre_header
                _
              $region88: #{multi_resolution_discriminator_forward.22} parent=85 // loop_header
                %s527 = sphi 0, %s531
                %p528 = scmp.ge.s32.totalorder %s527, 1
                %s532 = sphi %s509, %s509
                %s533 = sphi %s517, %s517
              $region89: #{multi_resolution_discriminator_forward.22} parent=85 // loop_header_branch
                %530 = sbr.rel (%p528) target = $region93
              $region90: #{multi_resolution_discriminator_forward.22} parent=85 // loop_body
                %v534 = vld [vmem:[%s532] sm:%s525]
                %535 = vst [vmem:[%s533] sm:%s525] %v534
                %v536 = vld [vmem:[%s532 + $0x8] sm:%s525]
                %537 = vst [vmem:[%s533 + $0x28] sm:%s525] %v536
                %v538 = vld [vmem:[%s532 + $0x10] sm:%s525]
                %539 = vst [vmem:[%s533 + $0x50] sm:%s525] %v538
                %v540 = vld [vmem:[%s532 + $0x18] sm:%s525]
                %541 = vst [vmem:[%s533 + $0x78] sm:%s525] %v540
              $region91: #{multi_resolution_discriminator_forward.22} parent=85 // loop_footer
                %s531 = sadd.s32 1, %s527
              $region92: #{multi_resolution_discriminator_forward.22} parent=85 // loop_footer_branch
                %526 = sbr.rel target = $region88
              $region93: #{multi_resolution_discriminator_forward.22} parent=85 // loop_exit
                _
            $region86: #{multi_resolution_discriminator_forward.22} parent=77 // pred_fallthru
              _
          $region78: #{multi_resolution_discriminator_forward.22} parent=73 // pred_fallthru
            _
          %562 = vnop
        $region74: #{multi_resolution_discriminator_forward.22} parent=65 // pred_fallthru
          _
      $region66: #{multi_resolution_discriminator_forward.22} parent=5 // pred_fallthru
        _
      %p563 = scmp.le.s32.totalorder 2, %s16
      // Predicated region
      $region109: #{multi_resolution_discriminator_forward.22} parent=5 // pred_check
        %p564 = pneg %p563
      $region110: #{multi_resolution_discriminator_forward.22} parent=5 // pred_check_branch
        %566 = sbr.rel (%p564) target = $region112
      $region111: #{multi_resolution_discriminator_forward.22} parent=5 // pred_region
        %s567 = ssub.s32 %s16, 2
        // Predicated region
        $region113: #{multi_resolution_discriminator_forward.22} parent=111 // pred_check
          %p568 = pneg %p143
        $region114: #{multi_resolution_discriminator_forward.22} parent=111 // pred_check_branch
          %570 = sbr.rel (%p568) target = $region116
        $region115: #{multi_resolution_discriminator_forward.22} parent=111 // pred_region
          %s571 = sand.u32 %s128, 1
          %s572 = sand.u32 %s128, 1
          %s573 = smul.addr %s572, 32
          %s574 = scalar_lea.vmem [#allocation5], %s573
        $region116: #{multi_resolution_discriminator_forward.22} parent=111 // pred_fallthru
          _
      $region112: #{multi_resolution_discriminator_forward.22} parent=5 // pred_fallthru
        _
    $region6: #{multi_resolution_discriminator_forward.22} parent=1 // loop_footer
      %s20 = sadd.s32 1, %s16
    $region7: #{multi_resolution_discriminator_forward.22} parent=1 // loop_footer_branch
      %15 = sbr.rel target = $region3
    $region8: #{multi_resolution_discriminator_forward.22} parent=1 // loop_exit
      _

// kernel: multi_resolution_discriminator_forward.23
$region0: #{multi_resolution_discriminator_forward.23}
  #allocation0 [shape = 'u32[]', space=smem, size = 0x4, offset = 0x4, fixed_abs, tag = 'smem constant byte address 0x4 - core index']
  #allocation1 [shape = 'u32[144,128]{1,0:T(1,128)}', space=vmem, size = 0x12000, scoped, tag = 'internal scratch']
  #allocation2 [shape = 's32[1]{0}', space=sflag, size = 0x4, scoped, tag = 'scoped memory for multi_resolution_discriminator_forward.23']
  #allocation3 [shape = 'u8[512]{0}', space=smem, size = 0x200, scoped, tag = 'prefetched SMEM operand 0']
  %s0 = inlined_call_operand.vmem [shape: s32[5], index: 0, kind: input, shape index: {}]
  %s1 = inlined_call_operand.vmem [shape: bf16[5,32,864], index: 1, kind: input, shape index: {}]
  %s2 = inlined_call_operand.vmem [shape: bf16[4,864,640], index: 2, kind: input, shape index: {}]
  %s3 = inlined_call_operand.vmem [shape: f32[5,32,1], index: 3, kind: input, shape index: {}]
  %s4 = inlined_call_operand.vmem [shape: bf16[4,32,640], index: 4, kind: output, shape index: {}]
  %s5 = sld [smem:[#allocation0]]
  $region123: #{multi_resolution_discriminator_forward.23} parent=0
    _
  %s7 = ssub.s32 1, %s5
  %s8 = scalar_select 0, %s7, %s5
  %s9 = sshll.u32 %s0, 4
  %s10 = int_to_ptr.vmem [resolvable:$true] %s9
  %12 = dma.vmem_to_smem %s10, 16, [#allocation3], [#allocation2]
  %13 = dma.done [#allocation2], 16
  %14 = sfence
  $region1: #{multi_resolution_discriminator_forward.23} parent=0
    #allocation4 [shape = 'u8[442368]{0}', space=vmem, size = 0x6c000, scoped, tag = 'input window, operand 2']
    #allocation5 [shape = 'u8[16384]{0}', space=vmem, size = 0x4000, scoped, tag = 'output window, operand 0']
    loop: start=0, step=1, limit=22
    $region2: #{multi_resolution_discriminator_forward.23} parent=1 // loop_pre_header
      _
    $region3: #{multi_resolution_discriminator_forward.23} parent=1 // loop_header
      %s16 = sphi 0, %s20
      %p17 = scmp.ge.s32.totalorder %s16, 22
      %s23 = sphi 0, %s35
      %s24 = sphi 0, %s31
      %s25 = sphi 0, %s23
      %s26 = sphi 0, %s24
      %s27 = sphi 0, %s25
      %s28 = sphi 0, %s26
      %s40 = sphi 0, %s42
      %s43 = sphi 0, %s40
      %s44 = sphi 0, %s43
      %s60 = sphi 0, %s44
      %s68 = sphi 0, %s70
      %s71 = sphi 0, %s68
      %s72 = sphi 0, %s71
      %s88 = sphi 0, %s72
      %s96 = sphi 0, %s98
      %s99 = sphi 0, %s96
      %s100 = sphi 0, %s99
      %s116 = sphi 0, %s100
      %s124 = sphi 0, %s126
      %s127 = sphi 0, %s124
      %s128 = sphi 0, %s127
      %s144 = sphi 0, %s128
    $region4: #{multi_resolution_discriminator_forward.23} parent=1 // loop_header_branch
      %19 = sbr.rel (%p17) target = $region8
    $region5: #{multi_resolution_discriminator_forward.23} parent=1 // loop_body
      %s21 = ssub.s32 %s16, 1
      %s22 = ssub.s32 %s16, 2
      %s29 = sadd.s32 1, %s24
      %p30 = scmp.ge.s32.totalorder %s29, 5
      %s31 = scalar_select %p30, 0, %s29
      %s32 = sadd.s32 1, %s23
      %s33 = scalar_select %p30, %s32, %s23
      %p34 = scmp.ge.s32.totalorder %s33, 4
      %s35 = scalar_select %p34, 0, %s33
      %s36 = sld [smem:[#allocation3 + %s24]]
      %s37 = sld [smem:[#allocation3 + %s31]]
      %s38 = ssub.s32 %s36, %s37
      %p39 = scmp.eq.s32.totalorder %s38, 0
      %s41 = sadd.s32 %s40, 1
      %s42 = scalar_select %p39, %s40, %s41
      %p45 = pneg %p39
      %p46 = scmp.eq.s32.totalorder %s16, 19
      %p47 = por %p45, %p46
      %p48 = scmp.ne.s32.totalorder %s40, %s43
      %p49 = scmp.eq.s32.totalorder %s16, 0
      %p50 = por %p48, %p49
      %p51 = scmp.ne.s32.totalorder %s40, %s43
      %p52 = scmp.eq.s32.totalorder %s21, 19
      %p53 = por %p51, %p52
      %p54 = scmp.ne.s32.totalorder %s43, %s44
      %p55 = scmp.eq.s32.totalorder %s21, 0
      %p56 = por %p54, %p55
      %p57 = scmp.ne.s32.totalorder %s43, %s44
      %p58 = scmp.eq.s32.totalorder %s22, 19
      %p59 = por %p57, %p58
      %p61 = scmp.ne.s32.totalorder %s44, %s60
      %p62 = scmp.eq.s32.totalorder %s22, 0
      %p63 = por %p61, %p62
      %s64 = ssub.s32 %s23, %s35
      %s65 = ssub.s32 %s24, %s31
      %s66 = sor.u32 %s64, %s65
      %p67 = scmp.eq.s32.totalorder %s66, 0
      %s69 = sadd.s32 %s68, 1
      %s70 = scalar_select %p67, %s68, %s69
      %p73 = pneg %p67
      %p74 = scmp.eq.s32.totalorder %s16, 19
      %p75 = por %p73, %p74
      %p76 = scmp.ne.s32.totalorder %s68, %s71
      %p77 = scmp.eq.s32.totalorder %s16, 0
      %p78 = por %p76, %p77
      %p79 = scmp.ne.s32.totalorder %s68, %s71
      %p80 = scmp.eq.s32.totalorder %s21, 19
      %p81 = por %p79, %p80
      %p82 = scmp.ne.s32.totalorder %s71, %s72
      %p83 = scmp.eq.s32.totalorder %s21, 0
      %p84 = por %p82, %p83
      %p85 = scmp.ne.s32.totalorder %s71, %s72
      %p86 = scmp.eq.s32.totalorder %s22, 19
      %p87 = por %p85, %p86
      %p89 = scmp.ne.s32.totalorder %s72, %s88
      %p90 = scmp.eq.s32.totalorder %s22, 0
      %p91 = por %p89, %p90
      %s92 = sld [smem:[#allocation3 + %s24]]
      %s93 = sld [smem:[#allocation3 + %s31]]
      %s94 = ssub.s32 %s92, %s93
      %p95 = scmp.eq.s32.totalorder %s94, 0
      %s97 = sadd.s32 %s96, 1
      %s98 = scalar_select %p95, %s96, %s97
      %p101 = pneg %p95
      %p102 = scmp.eq.s32.totalorder %s16, 19
      %p103 = por %p101, %p102
      %p104 = scmp.ne.s32.totalorder %s96, %s99
      %p105 = scmp.eq.s32.totalorder %s16, 0
      %p106 = por %p104, %p105
      %p107 = scmp.ne.s32.totalorder %s96, %s99
      %p108 = scmp.eq.s32.totalorder %s21, 19
      %p109 = por %p107, %p108
      %p110 = scmp.ne.s32.totalorder %s99, %s100
      %p111 = scmp.eq.s32.totalorder %s21, 0
      %p112 = por %p110, %p111
      %p113 = scmp.ne.s32.totalorder %s99, %s100
      %p114 = scmp.eq.s32.totalorder %s22, 19
      %p115 = por %p113, %p114
      %p117 = scmp.ne.s32.totalorder %s100, %s116
      %p118 = scmp.eq.s32.totalorder %s22, 0
      %p119 = por %p117, %p118
      %s120 = ssub.s32 %s23, %s35
      %s121 = ssub.s32 %s24, %s31
      %s122 = sor.u32 %s120, %s121
      %p123 = scmp.eq.s32.totalorder %s122, 0
      %s125 = sadd.s32 %s124, 1
      %s126 = scalar_select %p123, %s124, %s125
      %p129 = pneg %p123
      %p130 = scmp.eq.s32.totalorder %s16, 19
      %p131 = por %p129, %p130
      %p132 = scmp.ne.s32.totalorder %s124, %s127
      %p133 = scmp.eq.s32.totalorder %s16, 0
      %p134 = por %p132, %p133
      %p135 = scmp.ne.s32.totalorder %s124, %s127
      %p136 = scmp.eq.s32.totalorder %s21, 19
      %p137 = por %p135, %p136
      %p138 = scmp.ne.s32.totalorder %s127, %s128
      %p139 = scmp.eq.s32.totalorder %s21, 0
      %p140 = por %p138, %p139
      %p141 = scmp.ne.s32.totalorder %s127, %s128
      %p142 = scmp.eq.s32.totalorder %s22, 19
      %p143 = por %p141, %p142
      %p145 = scmp.ne.s32.totalorder %s128, %s144
      %p146 = scmp.eq.s32.totalorder %s22, 0
      %p147 = por %p145, %p146
      %p148 = scmp.le.s32.totalorder 1, %s16
      %p149 = scmp.lt.s32.totalorder %s16, 21
      %p150 = pnand %p148, %p149
      %p151 = pneg %p150
      // Predicated region
      $region9: #{multi_resolution_discriminator_forward.23} parent=5 // pred_check
        _
      $region10: #{multi_resolution_discriminator_forward.23} parent=5 // pred_check_branch
        %153 = sbr.rel (%p150) target = $region12
      $region11: #{multi_resolution_discriminator_forward.23} parent=5 // pred_region
        %s154 = ssub.s32 %s16, 1
      $region12: #{multi_resolution_discriminator_forward.23} parent=5 // pred_fallthru
        _
      %p155 = scmp.lt.s32.totalorder %s16, 20
      // Predicated region
      $region13: #{multi_resolution_discriminator_forward.23} parent=5 // pred_check
        %p156 = pneg %p155
      $region14: #{multi_resolution_discriminator_forward.23} parent=5 // pred_check_branch
        %158 = sbr.rel (%p156) target = $region16
      $region15: #{multi_resolution_discriminator_forward.23} parent=5 // pred_region
        // Predicated region
        $region17: #{multi_resolution_discriminator_forward.23} parent=15 // pred_check
          %p159 = pneg %p50
        $region18: #{multi_resolution_discriminator_forward.23} parent=15 // pred_check_branch
          %161 = sbr.rel (%p159) target = $region20
        $region19: #{multi_resolution_discriminator_forward.23} parent=15 // pred_region
          %s162 = sld [smem:[#allocation3 + %s24]]
          %p163 = scmp.lt.s32.totalorder %s162, 4
          %s164 = scalar_select %p163, %s162, 4
          %s165 = smul.addr %s164, 28
          %s166 = smul.addr %s165, 4
          %s167 = scalar_lea.vmem %s1, %s166
          %s168 = sld [smem:[#allocation3 + %s24]]
        $region20: #{multi_resolution_discriminator_forward.23} parent=15 // pred_fallthru
          _
        // Predicated region
        $region21: #{multi_resolution_discriminator_forward.23} parent=15 // pred_check
          %p169 = pneg %p78
        $region22: #{multi_resolution_discriminator_forward.23} parent=15 // pred_check_branch
          %171 = sbr.rel (%p169) target = $region24
        $region23: #{multi_resolution_discriminator_forward.23} parent=15 // pred_region
          %s172 = sand.u32 %s68, 1
          %s173 = sand.u32 %s68, 1
          %s174 = smul.addr %s173, 432
          %s175 = scalar_lea.vmem [#allocation4], %s174
          %s176 = smul.addr %s23, 540
          %s177 = sadd.s32 %s24, %s176
          %s178 = smul.addr %s177, 4
          %s179 = scalar_lea.vmem %s2, %s178
          // Predicated region
          $region25: #{multi_resolution_discriminator_forward.23} parent=23 // pred_check
            _
          $region26: #{multi_resolution_discriminator_forward.23} parent=23 // pred_check_branch
            %181 = sbr.rel (0) target = $region28
          $region27: #{multi_resolution_discriminator_forward.23} parent=23 // pred_region
            // Predicated region
            $region29: #{multi_resolution_discriminator_forward.23} parent=27 // pred_check
              _
            $region30: #{multi_resolution_discriminator_forward.23} parent=27 // pred_check_branch
              %183 = sbr.rel target = $region32
            $region31: #{multi_resolution_discriminator_forward.23} parent=27 // pred_region
              // Predicated region
              $region44: #{multi_resolution_discriminator_forward.23} parent=31 // pred_check
                _
              $region45: #{multi_resolution_discriminator_forward.23} parent=31 // pred_check_branch
                %413 = sbr.rel (0) target = $region47
              $region46: #{multi_resolution_discriminator_forward.23} parent=31 // pred_region
                loop: start=0, step=1, limit=1
                $region48: #{multi_resolution_discriminator_forward.23} parent=46 // loop_pre_header
                  _
                $region49: #{multi_resolution_discriminator_forward.23} parent=46 // loop_header
                  %s415 = sphi 0, %s419
                  %p416 = scmp.ge.s32.totalorder %s415, 1
                  %s420 = sphi %s179, %s179
                  %s421 = sphi %s175, %s175
                $region50: #{multi_resolution_discriminator_forward.23} parent=46 // loop_header_branch
                  %418 = sbr.rel (%p416) target = $region54
                $region51: #{multi_resolution_discriminator_forward.23} parent=46 // loop_body
                  _
                $region52: #{multi_resolution_discriminator_forward.23} parent=46 // loop_footer
                  %s419 = sadd.s32 1, %s415
                $region53: #{multi_resolution_discriminator_forward.23} parent=46 // loop_footer_branch
                  %414 = sbr.rel target = $region49
                $region54: #{multi_resolution_discriminator_forward.23} parent=46 // loop_exit
                  _
                %s423 = ssub.s32 16, 1
                loop: start=0, step=1, limit=1
                $region55: #{multi_resolution_discriminator_forward.23} parent=46 // loop_pre_header
                  _
                $region56: #{multi_resolution_discriminator_forward.23} parent=46 // loop_header
                  %s425 = sphi 0, %s429
                  %p426 = scmp.ge.s32.totalorder %s425, 1
                  %s430 = sphi %s179, %s179
                  %s431 = sphi %s175, %s175
                $region57: #{multi_resolution_discriminator_forward.23} parent=46 // loop_header_branch
                  %428 = sbr.rel (%p426) target = $region61
                $region58: #{multi_resolution_discriminator_forward.23} parent=46 // loop_body
                  %v432 = vld [vmem:[%s430] sm:%s423]
                  %433 = vst [vmem:[%s431] sm:%s423] %v432
                  %v434 = vld [vmem:[%s430 + $0x14] sm:%s423]
                  %435 = vst [vmem:[%s431 + $0x4] sm:%s423] %v434
                  %v436 = vld [vmem:[%s430 + $0x28] sm:%s423]
                  %437 = vst [vmem:[%s431 + $0x8] sm:%s423] %v436
                  %v438 = vld [vmem:[%s430 + $0x3c] sm:%s423]
                  %439 = vst [vmem:[%s431 + $0xc] sm:%s423] %v438
                  %v440 = vld [vmem:[%s430 + $0x50] sm:%s423]
                  %441 = vst [vmem:[%s431 + $0x10] sm:%s423] %v440
                  %v442 = vld [vmem:[%s430 + $0x64] sm:%s423]
                  %443 = vst [vmem:[%s431 + $0x14] sm:%s423] %v442
                  %v444 = vld [vmem:[%s430 + $0x78] sm:%s423]
                  %445 = vst [vmem:[%s431 + $0x18] sm:%s423] %v444
                  %v446 = vld [vmem:[%s430 + $0x8c] sm:%s423]
                  %447 = vst [vmem:[%s431 + $0x1c] sm:%s423] %v446
                  %v448 = vld [vmem:[%s430 + $0xa0] sm:%s423]
                  %449 = vst [vmem:[%s431 + $0x20] sm:%s423] %v448
                  %v450 = vld [vmem:[%s430 + $0xb4] sm:%s423]
                  %451 = vst [vmem:[%s431 + $0x24] sm:%s423] %v450
                  %v452 = vld [vmem:[%s430 + $0xc8] sm:%s423]
                  %453 = vst [vmem:[%s431 + $0x28] sm:%s423] %v452
                  %v454 = vld [vmem:[%s430 + $0xdc] sm:%s423]
                  %455 = vst [vmem:[%s431 + $0x2c] sm:%s423] %v454
                  %v456 = vld [vmem:[%s430 + $0xf0] sm:%s423]
                  %457 = vst [vmem:[%s431 + $0x30] sm:%s423] %v456
                  %v458 = vld [vmem:[%s430 + $0x104] sm:%s423]
                  %459 = vst [vmem:[%s431 + $0x34] sm:%s423] %v458
                  %v460 = vld [vmem:[%s430 + $0x118] sm:%s423]
                  %461 = vst [vmem:[%s431 + $0x38] sm:%s423] %v460
                  %v462 = vld [vmem:[%s430 + $0x12c] sm:%s423]
                  %463 = vst [vmem:[%s431 + $0x3c] sm:%s423] %v462
                  %v464 = vld [vmem:[%s430 + $0x140] sm:%s423]
                  %465 = vst [vmem:[%s431 + $0x40] sm:%s423] %v464
                  %v466 = vld [vmem:[%s430 + $0x154] sm:%s423]
                  %467 = vst [vmem:[%s431 + $0x44] sm:%s423] %v466
                  %v468 = vld [vmem:[%s430 + $0x168] sm:%s423]
                  %469 = vst [vmem:[%s431 + $0x48] sm:%s423] %v468
                  %v470 = vld [vmem:[%s430 + $0x17c] sm:%s423]
                  %471 = vst [vmem:[%s431 + $0x4c] sm:%s423] %v470
                  %v472 = vld [vmem:[%s430 + $0x190] sm:%s423]
                  %473 = vst [vmem:[%s431 + $0x50] sm:%s423] %v472
                  %v474 = vld [vmem:[%s430 + $0x1a4] sm:%s423]
                  %475 = vst [vmem:[%s431 + $0x54] sm:%s423] %v474
                  %v476 = vld [vmem:[%s430 + $0x1b8] sm:%s423]
                  %477 = vst [vmem:[%s431 + $0x58] sm:%s423] %v476
                  %v478 = vld [vmem:[%s430 + $0x1cc] sm:%s423]
                  %479 = vst [vmem:[%s431 + $0x5c] sm:%s423] %v478
                  %v480 = vld [vmem:[%s430 + $0x1e0] sm:%s423]
                  %481 = vst [vmem:[%s431 + $0x60] sm:%s423] %v480
                  %v482 = vld [vmem:[%s430 + $0x1f4] sm:%s423]
                  %483 = vst [vmem:[%s431 + $0x64] sm:%s423] %v482
                  %v484 = vld [vmem:[%s430 + $0x208] sm:%s423]
                  %485 = vst [vmem:[%s431 + $0x68] sm:%s423] %v484
                  %v486 = vld [vmem:[%s430 + $0x21c] sm:%s423]
                  %487 = vst [vmem:[%s431 + $0x6c] sm:%s423] %v486
                  %v488 = vld [vmem:[%s430 + $0x230] sm:%s423]
                  %489 = vst [vmem:[%s431 + $0x70] sm:%s423] %v488
                  %v490 = vld [vmem:[%s430 + $0x244] sm:%s423]
                  %491 = vst [vmem:[%s431 + $0x74] sm:%s423] %v490
                  %v492 = vld [vmem:[%s430 + $0x258] sm:%s423]
                  %493 = vst [vmem:[%s431 + $0x78] sm:%s423] %v492
                  %v494 = vld [vmem:[%s430 + $0x26c] sm:%s423]
                  %495 = vst [vmem:[%s431 + $0x7c] sm:%s423] %v494
                  %v496 = vld [vmem:[%s430 + $0x280] sm:%s423]
                  %497 = vst [vmem:[%s431 + $0x80] sm:%s423] %v496
                  %v498 = vld [vmem:[%s430 + $0x294] sm:%s423]
                  %499 = vst [vmem:[%s431 + $0x84] sm:%s423] %v498
                  %v500 = vld [vmem:[%s430 + $0x2a8] sm:%s423]
                  %501 = vst [vmem:[%s431 + $0x88] sm:%s423] %v500
                  %v502 = vld [vmem:[%s430 + $0x2bc] sm:%s423]
                  %503 = vst [vmem:[%s431 + $0x8c] sm:%s423] %v502
                  %v504 = vld [vmem:[%s430 + $0x2d0] sm:%s423]
                  %505 = vst [vmem:[%s431 + $0x90] sm:%s423] %v504
                  %v506 = vld [vmem:[%s430 + $0x2e4] sm:%s423]
                  %507 = vst [vmem:[%s431 + $0x94] sm:%s423] %v506
                  %v508 = vld [vmem:[%s430 + $0x2f8] sm:%s423]
                  %509 = vst [vmem:[%s431 + $0x98] sm:%s423] %v508
                  %v510 = vld [vmem:[%s430 + $0x30c] sm:%s423]
                  %511 = vst [vmem:[%s431 + $0x9c] sm:%s423] %v510
                  %v512 = vld [vmem:[%s430 + $0x320] sm:%s423]
                  %513 = vst [vmem:[%s431 + $0xa0] sm:%s423] %v512
                  %v514 = vld [vmem:[%s430 + $0x334] sm:%s423]
                  %515 = vst [vmem:[%s431 + $0xa4] sm:%s423] %v514
                  %v516 = vld [vmem:[%s430 + $0x348] sm:%s423]
                  %517 = vst [vmem:[%s431 + $0xa8] sm:%s423] %v516
                  %v518 = vld [vmem:[%s430 + $0x35c] sm:%s423]
                  %519 = vst [vmem:[%s431 + $0xac] sm:%s423] %v518
                  %v520 = vld [vmem:[%s430 + $0x370] sm:%s423]
                  %521 = vst [vmem:[%s431 + $0xb0] sm:%s423] %v520
                  %v522 = vld [vmem:[%s430 + $0x384] sm:%s423]
                  %523 = vst [vmem:[%s431 + $0xb4] sm:%s423] %v522
                  %v524 = vld [vmem:[%s430 + $0x398] sm:%s423]
                  %525 = vst [vmem:[%s431 + $0xb8] sm:%s423] %v524
                  %v526 = vld [vmem:[%s430 + $0x3ac] sm:%s423]
                  %527 = vst [vmem:[%s431 + $0xbc] sm:%s423] %v526
                  %v528 = vld [vmem:[%s430 + $0x3c0] sm:%s423]
                  %529 = vst [vmem:[%s431 + $0xc0] sm:%s423] %v528
                  %v530 = vld [vmem:[%s430 + $0x3d4] sm:%s423]
                  %531 = vst [vmem:[%s431 + $0xc4] sm:%s423] %v530
                  %v532 = vld [vmem:[%s430 + $0x3e8] sm:%s423]
                  %533 = vst [vmem:[%s431 + $0xc8] sm:%s423] %v532
                  %v534 = vld [vmem:[%s430 + $0x3fc] sm:%s423]
                  %535 = vst [vmem:[%s431 + $0xcc] sm:%s423] %v534
                  %v536 = vld [vmem:[%s430 + $0x410] sm:%s423]
                  %537 = vst [vmem:[%s431 + $0xd0] sm:%s423] %v536
                  %v538 = vld [vmem:[%s430 + $0x424] sm:%s423]
                  %539 = vst [vmem:[%s431 + $0xd4] sm:%s423] %v538
                  %v540 = vld [vmem:[%s430 + $0x438] sm:%s423]
                  %541 = vst [vmem:[%s431 + $0xd8] sm:%s423] %v540
                  %v542 = vld [vmem:[%s430 + $0x44c] sm:%s423]
                  %543 = vst [vmem:[%s431 + $0xdc] sm:%s423] %v542
                  %v544 = vld [vmem:[%s430 + $0x460] sm:%s423]
                  %545 = vst [vmem:[%s431 + $0xe0] sm:%s423] %v544
                  %v546 = vld [vmem:[%s430 + $0x474] sm:%s423]
                  %547 = vst [vmem:[%s431 + $0xe4] sm:%s423] %v546
                  %v548 = vld [vmem:[%s430 + $0x488] sm:%s423]
                  %549 = vst [vmem:[%s431 + $0xe8] sm:%s423] %v548
                  %v550 = vld [vmem:[%s430 + $0x49c] sm:%s423]
                  %551 = vst [vmem:[%s431 + $0xec] sm:%s423] %v550
                  %v552 = vld [vmem:[%s430 + $0x4b0] sm:%s423]
                  %553 = vst [vmem:[%s431 + $0xf0] sm:%s423] %v552
                  %v554 = vld [vmem:[%s430 + $0x4c4] sm:%s423]
                  %555 = vst [vmem:[%s431 + $0xf4] sm:%s423] %v554
                  %v556 = vld [vmem:[%s430 + $0x4d8] sm:%s423]
                  %557 = vst [vmem:[%s431 + $0xf8] sm:%s423] %v556
                  %v558 = vld [vmem:[%s430 + $0x4ec] sm:%s423]
                  %559 = vst [vmem:[%s431 + $0xfc] sm:%s423] %v558
                  %v560 = vld [vmem:[%s430 + $0x500] sm:%s423]
                  %561 = vst [vmem:[%s431 + $0x100] sm:%s423] %v560
                  %v562 = vld [vmem:[%s430 + $0x514] sm:%s423]
                  %563 = vst [vmem:[%s431 + $0x104] sm:%s423] %v562
                  %v564 = vld [vmem:[%s430 + $0x528] sm:%s423]
                  %565 = vst [vmem:[%s431 + $0x108] sm:%s423] %v564
                  %v566 = vld [vmem:[%s430 + $0x53c] sm:%s423]
                  %567 = vst [vmem:[%s431 + $0x10c] sm:%s423] %v566
                  %v568 = vld [vmem:[%s430 + $0x550] sm:%s423]
                  %569 = vst [vmem:[%s431 + $0x110] sm:%s423] %v568
                  %v570 = vld [vmem:[%s430 + $0x564] sm:%s423]
                  %571 = vst [vmem:[%s431 + $0x114] sm:%s423] %v570
                  %v572 = vld [vmem:[%s430 + $0x578] sm:%s423]
                  %573 = vst [vmem:[%s431 + $0x118] sm:%s423] %v572
                  %v574 = vld [vmem:[%s430 + $0x58c] sm:%s423]
                  %575 = vst [vmem:[%s431 + $0x11c] sm:%s423] %v574
                  %v576 = vld [vmem:[%s430 + $0x5a0] sm:%s423]
                  %577 = vst [vmem:[%s431 + $0x120] sm:%s423] %v576
                  %v578 = vld [vmem:[%s430 + $0x5b4] sm:%s423]
                  %579 = vst [vmem:[%s431 + $0x124] sm:%s423] %v578
                  %v580 = vld [vmem:[%s430 + $0x5c8] sm:%s423]
                  %581 = vst [vmem:[%s431 + $0x128] sm:%s423] %v580
                  %v582 = vld [vmem:[%s430 + $0x5dc] sm:%s423]
                  %583 = vst [vmem:[%s431 + $0x12c] sm:%s423] %v582
                  %v584 = vld [vmem:[%s430 + $0x5f0] sm:%s423]
                  %585 = vst [vmem:[%s431 + $0x130] sm:%s423] %v584
                  %v586 = vld [vmem:[%s430 + $0x604] sm:%s423]
                  %587 = vst [vmem:[%s431 + $0x134] sm:%s423] %v586
                  %v588 = vld [vmem:[%s430 + $0x618] sm:%s423]
                  %589 = vst [vmem:[%s431 + $0x138] sm:%s423] %v588
                  %v590 = vld [vmem:[%s430 + $0x62c] sm:%s423]
                  %591 = vst [vmem:[%s431 + $0x13c] sm:%s423] %v590
                  %v592 = vld [vmem:[%s430 + $0x640] sm:%s423]
                  %593 = vst [vmem:[%s431 + $0x140] sm:%s423] %v592
                  %v594 = vld [vmem:[%s430 + $0x654] sm:%s423]
                  %595 = vst [vmem:[%s431 + $0x144] sm:%s423] %v594
                  %v596 = vld [vmem:[%s430 + $0x668] sm:%s423]
                  %597 = vst [vmem:[%s431 + $0x148] sm:%s423] %v596
                  %v598 = vld [vmem:[%s430 + $0x67c] sm:%s423]
                  %599 = vst [vmem:[%s431 + $0x14c] sm:%s423] %v598
                  %v600 = vld [vmem:[%s430 + $0x690] sm:%s423]
                  %601 = vst [vmem:[%s431 + $0x150] sm:%s423] %v600
                  %v602 = vld [vmem:[%s430 + $0x6a4] sm:%s423]
                  %603 = vst [vmem:[%s431 + $0x154] sm:%s423] %v602
                  %v604 = vld [vmem:[%s430 + $0x6b8] sm:%s423]
                  %605 = vst [vmem:[%s431 + $0x158] sm:%s423] %v604
                  %v606 = vld [vmem:[%s430 + $0x6cc] sm:%s423]
                  %607 = vst [vmem:[%s431 + $0x15c] sm:%s423] %v606
                  %v608 = vld [vmem:[%s430 + $0x6e0] sm:%s423]
                  %609 = vst [vmem:[%s431 + $0x160] sm:%s423] %v608
                  %v610 = vld [vmem:[%s430 + $0x6f4] sm:%s423]
                  %611 = vst [vmem:[%s431 + $0x164] sm:%s423] %v610
                  %v612 = vld [vmem:[%s430 + $0x708] sm:%s423]
                  %613 = vst [vmem:[%s431 + $0x168] sm:%s423] %v612
                  %v614 = vld [vmem:[%s430 + $0x71c] sm:%s423]
                  %615 = vst [vmem:[%s431 + $0x16c] sm:%s423] %v614
                  %v616 = vld [vmem:[%s430 + $0x730] sm:%s423]
                  %617 = vst [vmem:[%s431 + $0x170] sm:%s423] %v616
                  %v618 = vld [vmem:[%s430 + $0x744] sm:%s423]
                  %619 = vst [vmem:[%s431 + $0x174] sm:%s423] %v618
                  %v620 = vld [vmem:[%s430 + $0x758] sm:%s423]
                  %621 = vst [vmem:[%s431 + $0x178] sm:%s423] %v620
                  %v622 = vld [vmem:[%s430 + $0x76c] sm:%s423]
                  %623 = vst [vmem:[%s431 + $0x17c] sm:%s423] %v622
                  %v624 = vld [vmem:[%s430 + $0x780] sm:%s423]
                  %625 = vst [vmem:[%s431 + $0x180] sm:%s423] %v624
                  %v626 = vld [vmem:[%s430 + $0x794] sm:%s423]
                  %627 = vst [vmem:[%s431 + $0x184] sm:%s423] %v626
                  %v628 = vld [vmem:[%s430 + $0x7a8] sm:%s423]
                  %629 = vst [vmem:[%s431 + $0x188] sm:%s423] %v628
                  %v630 = vld [vmem:[%s430 + $0x7bc] sm:%s423]
                  %631 = vst [vmem:[%s431 + $0x18c] sm:%s423] %v630
                  %v632 = vld [vmem:[%s430 + $0x7d0] sm:%s423]
                  %633 = vst [vmem:[%s431 + $0x190] sm:%s423] %v632
                  %v634 = vld [vmem:[%s430 + $0x7e4] sm:%s423]
                  %635 = vst [vmem:[%s431 + $0x194] sm:%s423] %v634
                  %v636 = vld [vmem:[%s430 + $0x7f8] sm:%s423]
                  %637 = vst [vmem:[%s431 + $0x198] sm:%s423] %v636
                  %v638 = vld [vmem:[%s430 + $0x80c] sm:%s423]
                  %639 = vst [vmem:[%s431 + $0x19c] sm:%s423] %v638
                  %v640 = vld [vmem:[%s430 + $0x820] sm:%s423]
                  %641 = vst [vmem:[%s431 + $0x1a0] sm:%s423] %v640
                  %v642 = vld [vmem:[%s430 + $0x834] sm:%s423]
                  %643 = vst [vmem:[%s431 + $0x1a4] sm:%s423] %v642
                  %v644 = vld [vmem:[%s430 + $0x848] sm:%s423]
                  %645 = vst [vmem:[%s431 + $0x1a8] sm:%s423] %v644
                  %v646 = vld [vmem:[%s430 + $0x85c] sm:%s423]
                  %647 = vst [vmem:[%s431 + $0x1ac] sm:%s423] %v646
                $region59: #{multi_resolution_discriminator_forward.23} parent=46 // loop_footer
                  %s429 = sadd.s32 1, %s425
                $region60: #{multi_resolution_discriminator_forward.23} parent=46 // loop_footer_branch
                  %424 = sbr.rel target = $region56
                $region61: #{multi_resolution_discriminator_forward.23} parent=46 // loop_exit
                  _
              $region47: #{multi_resolution_discriminator_forward.23} parent=31 // pred_fallthru
                _
            $region32: #{multi_resolution_discriminator_forward.23} parent=27 // pred_fallthru
              _
            // Predicated region
            $region33: #{multi_resolution_discriminator_forward.23} parent=27 // pred_check
              _
            $region34: #{multi_resolution_discriminator_forward.23} parent=27 // pred_check_branch
              %185 = sbr.rel (0) target = $region36
            $region35: #{multi_resolution_discriminator_forward.23} parent=27 // pred_region
              %s187 = ssub.s32 16, 1
              loop: start=0, step=1, limit=1
              $region37: #{multi_resolution_discriminator_forward.23} parent=35 // loop_pre_header
                _
              $region38: #{multi_resolution_discriminator_forward.23} parent=35 // loop_header
                %s189 = sphi 0, %s193
                %p190 = scmp.ge.s32.totalorder %s189, 1
                %s194 = sphi %s179, %s179
                %s195 = sphi %s175, %s175
              $region39: #{multi_resolution_discriminator_forward.23} parent=35 // loop_header_branch
                %192 = sbr.rel (%p190) target = $region43
              $region40: #{multi_resolution_discriminator_forward.23} parent=35 // loop_body
                %v196 = vld [vmem:[%s194] sm:%s187]
                %197 = vst [vmem:[%s195] sm:%s187] %v196
                %v198 = vld [vmem:[%s194 + $0x14] sm:%s187]
                %199 = vst [vmem:[%s195 + $0x4] sm:%s187] %v198
                %v200 = vld [vmem:[%s194 + $0x28] sm:%s187]
                %201 = vst [vmem:[%s195 + $0x8] sm:%s187] %v200
                %v202 = vld [vmem:[%s194 + $0x3c] sm:%s187]
                %203 = vst [vmem:[%s195 + $0xc] sm:%s187] %v202
                %v204 = vld [vmem:[%s194 + $0x50] sm:%s187]
                %205 = vst [vmem:[%s195 + $0x10] sm:%s187] %v204
                %v206 = vld [vmem:[%s194 + $0x64] sm:%s187]
                %207 = vst [vmem:[%s195 + $0x14] sm:%s187] %v206
                %v208 = vld [vmem:[%s194 + $0x78] sm:%s187]
                %209 = vst [vmem:[%s195 + $0x18] sm:%s187] %v208
                %v210 = vld [vmem:[%s194 + $0x8c] sm:%s187]
                %211 = vst [vmem:[%s195 + $0x1c] sm:%s187] %v210
                %v212 = vld [vmem:[%s194 + $0xa0] sm:%s187]
                %213 = vst [vmem:[%s195 + $0x20] sm:%s187] %v212
                %v214 = vld [vmem:[%s194 + $0xb4] sm:%s187]
                %215 = vst [vmem:[%s195 + $0x24] sm:%s187] %v214
                %v216 = vld [vmem:[%s194 + $0xc8] sm:%s187]
                %217 = vst [vmem:[%s195 + $0x28] sm:%s187] %v216
                %v218 = vld [vmem:[%s194 + $0xdc] sm:%s187]
                %219 = vst [vmem:[%s195 + $0x2c] sm:%s187] %v218
                %v220 = vld [vmem:[%s194 + $0xf0] sm:%s187]
                %221 = vst [vmem:[%s195 + $0x30] sm:%s187] %v220
                %v222 = vld [vmem:[%s194 + $0x104] sm:%s187]
                %223 = vst [vmem:[%s195 + $0x34] sm:%s187] %v222
                %v224 = vld [vmem:[%s194 + $0x118] sm:%s187]
                %225 = vst [vmem:[%s195 + $0x38] sm:%s187] %v224
                %v226 = vld [vmem:[%s194 + $0x12c] sm:%s187]
                %227 = vst [vmem:[%s195 + $0x3c] sm:%s187] %v226
                %v228 = vld [vmem:[%s194 + $0x140] sm:%s187]
                %229 = vst [vmem:[%s195 + $0x40] sm:%s187] %v228
                %v230 = vld [vmem:[%s194 + $0x154] sm:%s187]
                %231 = vst [vmem:[%s195 + $0x44] sm:%s187] %v230
                %v232 = vld [vmem:[%s194 + $0x168] sm:%s187]
                %233 = vst [vmem:[%s195 + $0x48] sm:%s187] %v232
                %v234 = vld [vmem:[%s194 + $0x17c] sm:%s187]
                %235 = vst [vmem:[%s195 + $0x4c] sm:%s187] %v234
                %v236 = vld [vmem:[%s194 + $0x190] sm:%s187]
                %237 = vst [vmem:[%s195 + $0x50] sm:%s187] %v236
                %v238 = vld [vmem:[%s194 + $0x1a4] sm:%s187]
                %239 = vst [vmem:[%s195 + $0x54] sm:%s187] %v238
                %v240 = vld [vmem:[%s194 + $0x1b8] sm:%s187]
                %241 = vst [vmem:[%s195 + $0x58] sm:%s187] %v240
                %v242 = vld [vmem:[%s194 + $0x1cc] sm:%s187]
                %243 = vst [vmem:[%s195 + $0x5c] sm:%s187] %v242
                %v244 = vld [vmem:[%s194 + $0x1e0] sm:%s187]
                %245 = vst [vmem:[%s195 + $0x60] sm:%s187] %v244
                %v246 = vld [vmem:[%s194 + $0x1f4] sm:%s187]
                %247 = vst [vmem:[%s195 + $0x64] sm:%s187] %v246
                %v248 = vld [vmem:[%s194 + $0x208] sm:%s187]
                %249 = vst [vmem:[%s195 + $0x68] sm:%s187] %v248
                %v250 = vld [vmem:[%s194 + $0x21c] sm:%s187]
                %251 = vst [vmem:[%s195 + $0x6c] sm:%s187] %v250
                %v252 = vld [vmem:[%s194 + $0x230] sm:%s187]
                %253 = vst [vmem:[%s195 + $0x70] sm:%s187] %v252
                %v254 = vld [vmem:[%s194 + $0x244] sm:%s187]
                %255 = vst [vmem:[%s195 + $0x74] sm:%s187] %v254
                %v256 = vld [vmem:[%s194 + $0x258] sm:%s187]
                %257 = vst [vmem:[%s195 + $0x78] sm:%s187] %v256
                %v258 = vld [vmem:[%s194 + $0x26c] sm:%s187]
                %259 = vst [vmem:[%s195 + $0x7c] sm:%s187] %v258
                %v260 = vld [vmem:[%s194 + $0x280] sm:%s187]
                %261 = vst [vmem:[%s195 + $0x80] sm:%s187] %v260
                %v262 = vld [vmem:[%s194 + $0x294] sm:%s187]
                %263 = vst [vmem:[%s195 + $0x84] sm:%s187] %v262
                %v264 = vld [vmem:[%s194 + $0x2a8] sm:%s187]
                %265 = vst [vmem:[%s195 + $0x88] sm:%s187] %v264
                %v266 = vld [vmem:[%s194 + $0x2bc] sm:%s187]
                %267 = vst [vmem:[%s195 + $0x8c] sm:%s187] %v266
                %v268 = vld [vmem:[%s194 + $0x2d0] sm:%s187]
                %269 = vst [vmem:[%s195 + $0x90] sm:%s187] %v268
                %v270 = vld [vmem:[%s194 + $0x2e4] sm:%s187]
                %271 = vst [vmem:[%s195 + $0x94] sm:%s187] %v270
                %v272 = vld [vmem:[%s194 + $0x2f8] sm:%s187]
                %273 = vst [vmem:[%s195 + $0x98] sm:%s187] %v272
                %v274 = vld [vmem:[%s194 + $0x30c] sm:%s187]
                %275 = vst [vmem:[%s195 + $0x9c] sm:%s187] %v274
                %v276 = vld [vmem:[%s194 + $0x320] sm:%s187]
                %277 = vst [vmem:[%s195 + $0xa0] sm:%s187] %v276
                %v278 = vld [vmem:[%s194 + $0x334] sm:%s187]
                %279 = vst [vmem:[%s195 + $0xa4] sm:%s187] %v278
                %v280 = vld [vmem:[%s194 + $0x348] sm:%s187]
                %281 = vst [vmem:[%s195 + $0xa8] sm:%s187] %v280
                %v282 = vld [vmem:[%s194 + $0x35c] sm:%s187]
                %283 = vst [vmem:[%s195 + $0xac] sm:%s187] %v282
                %v284 = vld [vmem:[%s194 + $0x370] sm:%s187]
                %285 = vst [vmem:[%s195 + $0xb0] sm:%s187] %v284
                %v286 = vld [vmem:[%s194 + $0x384] sm:%s187]
                %287 = vst [vmem:[%s195 + $0xb4] sm:%s187] %v286
                %v288 = vld [vmem:[%s194 + $0x398] sm:%s187]
                %289 = vst [vmem:[%s195 + $0xb8] sm:%s187] %v288
                %v290 = vld [vmem:[%s194 + $0x3ac] sm:%s187]
                %291 = vst [vmem:[%s195 + $0xbc] sm:%s187] %v290
                %v292 = vld [vmem:[%s194 + $0x3c0] sm:%s187]
                %293 = vst [vmem:[%s195 + $0xc0] sm:%s187] %v292
                %v294 = vld [vmem:[%s194 + $0x3d4] sm:%s187]
                %295 = vst [vmem:[%s195 + $0xc4] sm:%s187] %v294
                %v296 = vld [vmem:[%s194 + $0x3e8] sm:%s187]
                %297 = vst [vmem:[%s195 + $0xc8] sm:%s187] %v296
                %v298 = vld [vmem:[%s194 + $0x3fc] sm:%s187]
                %299 = vst [vmem:[%s195 + $0xcc] sm:%s187] %v298
                %v300 = vld [vmem:[%s194 + $0x410] sm:%s187]
                %301 = vst [vmem:[%s195 + $0xd0] sm:%s187] %v300
                %v302 = vld [vmem:[%s194 + $0x424] sm:%s187]
                %303 = vst [vmem:[%s195 + $0xd4] sm:%s187] %v302
                %v304 = vld [vmem:[%s194 + $0x438] sm:%s187]
                %305 = vst [vmem:[%s195 + $0xd8] sm:%s187] %v304
                %v306 = vld [vmem:[%s194 + $0x44c] sm:%s187]
                %307 = vst [vmem:[%s195 + $0xdc] sm:%s187] %v306
                %v308 = vld [vmem:[%s194 + $0x460] sm:%s187]
                %309 = vst [vmem:[%s195 + $0xe0] sm:%s187] %v308
                %v310 = vld [vmem:[%s194 + $0x474] sm:%s187]
                %311 = vst [vmem:[%s195 + $0xe4] sm:%s187] %v310
                %v312 = vld [vmem:[%s194 + $0x488] sm:%s187]
                %313 = vst [vmem:[%s195 + $0xe8] sm:%s187] %v312
                %v314 = vld [vmem:[%s194 + $0x49c] sm:%s187]
                %315 = vst [vmem:[%s195 + $0xec] sm:%s187] %v314
                %v316 = vld [vmem:[%s194 + $0x4b0] sm:%s187]
                %317 = vst [vmem:[%s195 + $0xf0] sm:%s187] %v316
                %v318 = vld [vmem:[%s194 + $0x4c4] sm:%s187]
                %319 = vst [vmem:[%s195 + $0xf4] sm:%s187] %v318
                %v320 = vld [vmem:[%s194 + $0x4d8] sm:%s187]
                %321 = vst [vmem:[%s195 + $0xf8] sm:%s187] %v320
                %v322 = vld [vmem:[%s194 + $0x4ec] sm:%s187]
                %323 = vst [vmem:[%s195 + $0xfc] sm:%s187] %v322
                %v324 = vld [vmem:[%s194 + $0x500] sm:%s187]
                %325 = vst [vmem:[%s195 + $0x100] sm:%s187] %v324
                %v326 = vld [vmem:[%s194 + $0x514] sm:%s187]
                %327 = vst [vmem:[%s195 + $0x104] sm:%s187] %v326
                %v328 = vld [vmem:[%s194 + $0x528] sm:%s187]
                %329 = vst [vmem:[%s195 + $0x108] sm:%s187] %v328
                %v330 = vld [vmem:[%s194 + $0x53c] sm:%s187]
                %331 = vst [vmem:[%s195 + $0x10c] sm:%s187] %v330
                %v332 = vld [vmem:[%s194 + $0x550] sm:%s187]
                %333 = vst [vmem:[%s195 + $0x110] sm:%s187] %v332
                %v334 = vld [vmem:[%s194 + $0x564] sm:%s187]
                %335 = vst [vmem:[%s195 + $0x114] sm:%s187] %v334
                %v336 = vld [vmem:[%s194 + $0x578] sm:%s187]
                %337 = vst [vmem:[%s195 + $0x118] sm:%s187] %v336
                %v338 = vld [vmem:[%s194 + $0x58c] sm:%s187]
                %339 = vst [vmem:[%s195 + $0x11c] sm:%s187] %v338
                %v340 = vld [vmem:[%s194 + $0x5a0] sm:%s187]
                %341 = vst [vmem:[%s195 + $0x120] sm:%s187] %v340
                %v342 = vld [vmem:[%s194 + $0x5b4] sm:%s187]
                %343 = vst [vmem:[%s195 + $0x124] sm:%s187] %v342
                %v344 = vld [vmem:[%s194 + $0x5c8] sm:%s187]
                %345 = vst [vmem:[%s195 + $0x128] sm:%s187] %v344
                %v346 = vld [vmem:[%s194 + $0x5dc] sm:%s187]
                %347 = vst [vmem:[%s195 + $0x12c] sm:%s187] %v346
                %v348 = vld [vmem:[%s194 + $0x5f0] sm:%s187]
                %349 = vst [vmem:[%s195 + $0x130] sm:%s187] %v348
                %v350 = vld [vmem:[%s194 + $0x604] sm:%s187]
                %351 = vst [vmem:[%s195 + $0x134] sm:%s187] %v350
                %v352 = vld [vmem:[%s194 + $0x618] sm:%s187]
                %353 = vst [vmem:[%s195 + $0x138] sm:%s187] %v352
                %v354 = vld [vmem:[%s194 + $0x62c] sm:%s187]
                %355 = vst [vmem:[%s195 + $0x13c] sm:%s187] %v354
                %v356 = vld [vmem:[%s194 + $0x640] sm:%s187]
                %357 = vst [vmem:[%s195 + $0x140] sm:%s187] %v356
                %v358 = vld [vmem:[%s194 + $0x654] sm:%s187]
                %359 = vst [vmem:[%s195 + $0x144] sm:%s187] %v358
                %v360 = vld [vmem:[%s194 + $0x668] sm:%s187]
                %361 = vst [vmem:[%s195 + $0x148] sm:%s187] %v360
                %v362 = vld [vmem:[%s194 + $0x67c] sm:%s187]
                %363 = vst [vmem:[%s195 + $0x14c] sm:%s187] %v362
                %v364 = vld [vmem:[%s194 + $0x690] sm:%s187]
                %365 = vst [vmem:[%s195 + $0x150] sm:%s187] %v364
                %v366 = vld [vmem:[%s194 + $0x6a4] sm:%s187]
                %367 = vst [vmem:[%s195 + $0x154] sm:%s187] %v366
                %v368 = vld [vmem:[%s194 + $0x6b8] sm:%s187]
                %369 = vst [vmem:[%s195 + $0x158] sm:%s187] %v368
                %v370 = vld [vmem:[%s194 + $0x6cc] sm:%s187]
                %371 = vst [vmem:[%s195 + $0x15c] sm:%s187] %v370
                %v372 = vld [vmem:[%s194 + $0x6e0] sm:%s187]
                %373 = vst [vmem:[%s195 + $0x160] sm:%s187] %v372
                %v374 = vld [vmem:[%s194 + $0x6f4] sm:%s187]
                %375 = vst [vmem:[%s195 + $0x164] sm:%s187] %v374
                %v376 = vld [vmem:[%s194 + $0x708] sm:%s187]
                %377 = vst [vmem:[%s195 + $0x168] sm:%s187] %v376
                %v378 = vld [vmem:[%s194 + $0x71c] sm:%s187]
                %379 = vst [vmem:[%s195 + $0x16c] sm:%s187] %v378
                %v380 = vld [vmem:[%s194 + $0x730] sm:%s187]
                %381 = vst [vmem:[%s195 + $0x170] sm:%s187] %v380
                %v382 = vld [vmem:[%s194 + $0x744] sm:%s187]
                %383 = vst [vmem:[%s195 + $0x174] sm:%s187] %v382
                %v384 = vld [vmem:[%s194 + $0x758] sm:%s187]
                %385 = vst [vmem:[%s195 + $0x178] sm:%s187] %v384
                %v386 = vld [vmem:[%s194 + $0x76c] sm:%s187]
                %387 = vst [vmem:[%s195 + $0x17c] sm:%s187] %v386
                %v388 = vld [vmem:[%s194 + $0x780] sm:%s187]
                %389 = vst [vmem:[%s195 + $0x180] sm:%s187] %v388
                %v390 = vld [vmem:[%s194 + $0x794] sm:%s187]
                %391 = vst [vmem:[%s195 + $0x184] sm:%s187] %v390
                %v392 = vld [vmem:[%s194 + $0x7a8] sm:%s187]
                %393 = vst [vmem:[%s195 + $0x188] sm:%s187] %v392
                %v394 = vld [vmem:[%s194 + $0x7bc] sm:%s187]
                %395 = vst [vmem:[%s195 + $0x18c] sm:%s187] %v394
                %v396 = vld [vmem:[%s194 + $0x7d0] sm:%s187]
                %397 = vst [vmem:[%s195 + $0x190] sm:%s187] %v396
                %v398 = vld [vmem:[%s194 + $0x7e4] sm:%s187]
                %399 = vst [vmem:[%s195 + $0x194] sm:%s187] %v398
                %v400 = vld [vmem:[%s194 + $0x7f8] sm:%s187]
                %401 = vst [vmem:[%s195 + $0x198] sm:%s187] %v400
                %v402 = vld [vmem:[%s194 + $0x80c] sm:%s187]
                %403 = vst [vmem:[%s195 + $0x19c] sm:%s187] %v402
                %v404 = vld [vmem:[%s194 + $0x820] sm:%s187]
                %405 = vst [vmem:[%s195 + $0x1a0] sm:%s187] %v404
                %v406 = vld [vmem:[%s194 + $0x834] sm:%s187]
                %407 = vst [vmem:[%s195 + $0x1a4] sm:%s187] %v406
                %v408 = vld [vmem:[%s194 + $0x848] sm:%s187]
                %409 = vst [vmem:[%s195 + $0x1a8] sm:%s187] %v408
                %v410 = vld [vmem:[%s194 + $0x85c] sm:%s187]
                %411 = vst [vmem:[%s195 + $0x1ac] sm:%s187] %v410
              $region41: #{multi_resolution_discriminator_forward.23} parent=35 // loop_footer
                %s193 = sadd.s32 1, %s189
              $region42: #{multi_resolution_discriminator_forward.23} parent=35 // loop_footer_branch
                %188 = sbr.rel target = $region38
              $region43: #{multi_resolution_discriminator_forward.23} parent=35 // loop_exit
                _
            $region36: #{multi_resolution_discriminator_forward.23} parent=27 // pred_fallthru
              _
          $region28: #{multi_resolution_discriminator_forward.23} parent=23 // pred_fallthru
            _
          %648 = vnop
        $region24: #{multi_resolution_discriminator_forward.23} parent=15 // pred_fallthru
          _
        // Predicated region
        $region62: #{multi_resolution_discriminator_forward.23} parent=15 // pred_check
          %p649 = pneg %p106
        $region63: #{multi_resolution_discriminator_forward.23} parent=15 // pred_check_branch
          %651 = sbr.rel (%p649) target = $region65
        $region64: #{multi_resolution_discriminator_forward.23} parent=15 // pred_region
          %s652 = sld [smem:[#allocation3 + %s24]]
          %p653 = scmp.lt.s32.totalorder %s652, 4
          %s654 = scalar_select %p653, %s652, 4
          %s655 = smul.addr %s654, 4
          %s656 = smul.addr %s655, 8
          %s657 = scalar_lea.vmem %s3, %s656
          %s658 = sld [smem:[#allocation3 + %s24]]
        $region65: #{multi_resolution_discriminator_forward.23} parent=15 // pred_fallthru
          _
      $region16: #{multi_resolution_discriminator_forward.23} parent=5 // pred_fallthru
        _
      %p659 = scmp.le.s32.totalorder 1, %s16
      %p660 = scmp.lt.s32.totalorder %s16, 21
      %p661 = pnand %p659, %p660
      %p662 = pneg %p661
      // Predicated region
      $region66: #{multi_resolution_discriminator_forward.23} parent=5 // pred_check
        _
      $region67: #{multi_resolution_discriminator_forward.23} parent=5 // pred_check_branch
        %664 = sbr.rel (%p661) target = $region69
      $region68: #{multi_resolution_discriminator_forward.23} parent=5 // pred_region
        %s665 = ssub.s32 %s16, 1
        %s666 = sand.u32 %s71, 1
        %s667 = sand.u32 %s71, 1
        %s668 = smul.addr %s667, 432
        %s669 = scalar_lea.vmem [#allocation4], %s668
        // Predicated region
        $region70: #{multi_resolution_discriminator_forward.23} parent=68 // pred_check
          %p670 = pneg %p84
        $region71: #{multi_resolution_discriminator_forward.23} parent=68 // pred_check_branch
          %672 = sbr.rel (%p670) target = $region73
        $region72: #{multi_resolution_discriminator_forward.23} parent=68 // pred_region
          _
        $region73: #{multi_resolution_discriminator_forward.23} parent=68 // pred_fallthru
          _
        %s673 = sld [smem:[#allocation3 + %s26]]
        %p674 = scmp.lt.s32.totalorder %s673, 4
        %s675 = scalar_select %p674, %s673, 4
        %s676 = smul.addr %s675, 28
        %s677 = smul.addr %s676, 4
        %s678 = scalar_lea.vmem %s1, %s677
        %p679 = pneg %p56
        %p680 = pneg %p53
        %s681 = sand.u32 %s71, 1
        %s682 = sand.u32 %s71, 1
        %s683 = smul.addr %s682, 432
        %s684 = scalar_lea.vmem [#allocation4], %s683
        %p685 = pneg %p84
        %p686 = pneg %p81
        %s687 = sld [smem:[#allocation3 + %s26]]
        %p688 = scmp.lt.s32.totalorder %s687, 4
        %s689 = scalar_select %p688, %s687, 4
        %s690 = smul.addr %s689, 4
        %s691 = smul.addr %s690, 8
        %s692 = scalar_lea.vmem %s3, %s691
        %p693 = pneg %p112
        %p694 = pneg %p109
        %p695 = pneg %p140
        %p696 = pneg %p137
        %s697 = sand.u32 %s127, 1
        %s698 = sand.u32 %s127, 1
        %s699 = smul.addr %s698, 16
        %s700 = scalar_lea.vmem [#allocation5], %s699
        %s701 = sld [smem:[#allocation3 + %s26]]
        %p702 = scmp.lt.s32.totalorder %s701, 4
        %s703 = scalar_select %p702, %s701, 4
        %s704 = smul.addr %s703, 28
        %s705 = smul.addr %s704, 4
        %s706 = scalar_lea.vmem %s1, %s705
        %s707 = sld [smem:[#allocation3 + %s26]]
        %s708 = sld [smem:[#allocation3 + %s26]]
        %p709 = scmp.lt.s32.totalorder %s708, 4
        %s710 = scalar_select %p709, %s708, 4
        %s711 = smul.addr %s710, 4
        %s712 = smul.addr %s711, 8
        %s713 = scalar_lea.vmem %s3, %s712
        %s714 = sld [smem:[#allocation3 + %s26]]
        %v716 = vld [vmem:[%s706] sm:$0xff]
        %v717 = vld [vmem:[%s706 + $0x8] sm:$0xff]
        %v718 = vld [vmem:[%s706 + $0x10] sm:$0xff]
        %v719 = vld [vmem:[%s706 + $0x18] sm:$0xf]
        %v720 = vld [vmem:[%s706 + $0x1c] sm:$0xff]
        %v721 = vld [vmem:[%s706 + $0x24] sm:$0xff]
        %v722 = vld [vmem:[%s706 + $0x2c] sm:$0xff]
        %v723 = vld [vmem:[%s706 + $0x34] sm:$0xf]
        %v724 = vld [vmem:[%s706 + $0x38] sm:$0xff]
        %v725 = vld [vmem:[%s706 + $0x40] sm:$0xff]
        %v726 = vld [vmem:[%s706 + $0x48] sm:$0xff]
        %v727 = vld [vmem:[%s706 + $0x50] sm:$0xf]
        %v728 = vld [vmem:[%s706 + $0x54] sm:$0xff]
        %v729 = vld [vmem:[%s706 + $0x5c] sm:$0xff]
        %v730 = vld [vmem:[%s706 + $0x64] sm:$0xff]
        %v731 = vld [vmem:[%s706 + $0x6c] sm:$0xf]
        %v732 = vld [vmem:[%s669] sm:$0xf]
        %v733 = vld [vmem:[%s669 + $0x4] sm:$0xf]
        %v734 = vld [vmem:[%s669 + $0x8] sm:$0xf]
        %v735 = vld [vmem:[%s669 + $0xc] sm:$0xf]
        %v736 = vld [vmem:[%s669 + $0x10] sm:$0xf]
        %v737 = vld [vmem:[%s669 + $0x14] sm:$0xf]
        %v738 = vld [vmem:[%s669 + $0x18] sm:$0xf]
        %v739 = vld [vmem:[%s669 + $0x1c] sm:$0xf]
        %v740 = vld [vmem:[%s669 + $0x20] sm:$0xf]
        %v741 = vld [vmem:[%s669 + $0x24] sm:$0xf]
        %v742 = vld [vmem:[%s669 + $0x28] sm:$0xf]
        %v743 = vld [vmem:[%s669 + $0x2c] sm:$0xf]
        %v744 = vld [vmem:[%s669 + $0x30] sm:$0xf]
        %v745 = vld [vmem:[%s669 + $0x34] sm:$0xf]
        %v746 = vld [vmem:[%s669 + $0x38] sm:$0xf]
        %v747 = vld [vmem:[%s669 + $0x3c] sm:$0xf]
        %v748 = vld [vmem:[%s669 + $0x40] sm:$0xf]
        %v749 = vld [vmem:[%s669 + $0x44] sm:$0xf]
        %v750 = vld [vmem:[%s669 + $0x48] sm:$0xf]
        %v751 = vld [vmem:[%s669 + $0x4c] sm:$0xf]
        %v752 = vld [vmem:[%s669 + $0x50] sm:$0xf]
        %v753 = vld [vmem:[%s669 + $0x54] sm:$0xf]
        %v754 = vld [vmem:[%s669 + $0x58] sm:$0xf]
        %v755 = vld [vmem:[%s669 + $0x5c] sm:$0xf]
        %v756 = vld [vmem:[%s669 + $0x60] sm:$0xf]
        %v757 = vld [vmem:[%s669 + $0x64] sm:$0xf]
        %v758 = vld [vmem:[%s669 + $0x68] sm:$0xf]
        %v759 = vld [vmem:[%s669 + $0x6c] sm:$0xf]
        %v760 = vld [vmem:[%s669 + $0x70] sm:$0xf]
        %v761 = vld [vmem:[%s669 + $0x74] sm:$0xf]
        %v762 = vld [vmem:[%s669 + $0x78] sm:$0xf]
        %v763 = vld [vmem:[%s669 + $0x7c] sm:$0xf]
        %v764 = vld [vmem:[%s669 + $0x80] sm:$0xf]
        %v765 = vld [vmem:[%s669 + $0x84] sm:$0xf]
        %v766 = vld [vmem:[%s669 + $0x88] sm:$0xf]
        %v767 = vld [vmem:[%s669 + $0x8c] sm:$0xf]
        %v768 = vld [vmem:[%s669 + $0x90] sm:$0xf]
        %v769 = vld [vmem:[%s669 + $0x94] sm:$0xf]
        %v770 = vld [vmem:[%s669 + $0x98] sm:$0xf]
        %v771 = vld [vmem:[%s669 + $0x9c] sm:$0xf]
        %v772 = vld [vmem:[%s669 + $0xa0] sm:$0xf]
        %v773 = vld [vmem:[%s669 + $0xa4] sm:$0xf]
        %v774 = vld [vmem:[%s669 + $0xa8] sm:$0xf]
        %v775 = vld [vmem:[%s669 + $0xac] sm:$0xf]
        %v776 = vld [vmem:[%s669 + $0xb0] sm:$0xf]
        %v777 = vld [vmem:[%s669 + $0xb4] sm:$0xf]
        %v778 = vld [vmem:[%s669 + $0xb8] sm:$0xf]
        %v779 = vld [vmem:[%s669 + $0xbc] sm:$0xf]
        %v780 = vld [vmem:[%s669 + $0xc0] sm:$0xf]
        %v781 = vld [vmem:[%s669 + $0xc4] sm:$0xf]
        %v782 = vld [vmem:[%s669 + $0xc8] sm:$0xf]
        %v783 = vld [vmem:[%s669 + $0xcc] sm:$0xf]
        %v784 = vld [vmem:[%s669 + $0xd0] sm:$0xf]
        %v785 = vld [vmem:[%s669 + $0xd4] sm:$0xf]
        %v786 = vld [vmem:[%s669 + $0xd8] sm:$0xf]
        %v787 = vld [vmem:[%s669 + $0xdc] sm:$0xf]
        %v788 = vld [vmem:[%s669 + $0xe0] sm:$0xf]
        %v789 = vld [vmem:[%s669 + $0xe4] sm:$0xf]
        %v790 = vld [vmem:[%s669 + $0xe8] sm:$0xf]
        %v791 = vld [vmem:[%s669 + $0xec] sm:$0xf]
        %v792 = vld [vmem:[%s669 + $0xf0] sm:$0xf]
        %v793 = vld [vmem:[%s669 + $0xf4] sm:$0xf]
        %v794 = vld [vmem:[%s669 + $0xf8] sm:$0xf]
        %v795 = vld [vmem:[%s669 + $0xfc] sm:$0xf]
        %v796 = vld [vmem:[%s669 + $0x100] sm:$0xf]
        %v797 = vld [vmem:[%s669 + $0x104] sm:$0xf]
        %v798 = vld [vmem:[%s669 + $0x108] sm:$0xf]
        %v799 = vld [vmem:[%s669 + $0x10c] sm:$0xf]
        %v800 = vld [vmem:[%s669 + $0x110] sm:$0xf]
        %v801 = vld [vmem:[%s669 + $0x114] sm:$0xf]
        %v802 = vld [vmem:[%s669 + $0x118] sm:$0xf]
        %v803 = vld [vmem:[%s669 + $0x11c] sm:$0xf]
        %v804 = vld [vmem:[%s669 + $0x120] sm:$0xf]
        %v805 = vld [vmem:[%s669 + $0x124] sm:$0xf]
        %v806 = vld [vmem:[%s669 + $0x128] sm:$0xf]
        %v807 = vld [vmem:[%s669 + $0x12c] sm:$0xf]
        %v808 = vld [vmem:[%s669 + $0x130] sm:$0xf]
        %v809 = vld [vmem:[%s669 + $0x134] sm:$0xf]
        %v810 = vld [vmem:[%s669 + $0x138] sm:$0xf]
        %v811 = vld [vmem:[%s669 + $0x13c] sm:$0xf]
        %v812 = vld [vmem:[%s669 + $0x140] sm:$0xf]
        %v813 = vld [vmem:[%s669 + $0x144] sm:$0xf]
        %v814 = vld [vmem:[%s669 + $0x148] sm:$0xf]
        %v815 = vld [vmem:[%s669 + $0x14c] sm:$0xf]
        %v816 = vld [vmem:[%s669 + $0x150] sm:$0xf]
        %v817 = vld [vmem:[%s669 + $0x154] sm:$0xf]
        %v818 = vld [vmem:[%s669 + $0x158] sm:$0xf]
        %v819 = vld [vmem:[%s669 + $0x15c] sm:$0xf]
        %v820 = vld [vmem:[%s669 + $0x160] sm:$0xf]
        %v821 = vld [vmem:[%s669 + $0x164] sm:$0xf]
        %v822 = vld [vmem:[%s669 + $0x168] sm:$0xf]
        %v823 = vld [vmem:[%s669 + $0x16c] sm:$0xf]
        %v824 = vld [vmem:[%s669 + $0x170] sm:$0xf]
        %v825 = vld [vmem:[%s669 + $0x174] sm:$0xf]
        %v826 = vld [vmem:[%s669 + $0x178] sm:$0xf]
        %v827 = vld [vmem:[%s669 + $0x17c] sm:$0xf]
        %v828 = vld [vmem:[%s669 + $0x180] sm:$0xf]
        %v829 = vld [vmem:[%s669 + $0x184] sm:$0xf]
        %v830 = vld [vmem:[%s669 + $0x188] sm:$0xf]
        %v831 = vld [vmem:[%s669 + $0x18c] sm:$0xf]
        %v832 = vld [vmem:[%s669 + $0x190] sm:$0xf]
        %v833 = vld [vmem:[%s669 + $0x194] sm:$0xf]
        %v834 = vld [vmem:[%s669 + $0x198] sm:$0xf]
        %v835 = vld [vmem:[%s669 + $0x19c] sm:$0xf]
        %v836 = vld [vmem:[%s669 + $0x1a0] sm:$0xf]
        %v837 = vld [vmem:[%s669 + $0x1a4] sm:$0xf]
        %v838 = vld [vmem:[%s669 + $0x1a8] sm:$0xf]
        %v839 = vld [vmem:[%s669 + $0x1ac] sm:$0xf]
        %v840 = vld [vmem:[%s713] sm:$0xff]
        %v841 = vld [vmem:[%s713 + $0x8] sm:$0xff]
        %v842 = vld [vmem:[%s713 + $0x10] sm:$0xff]
        %v843 = vld [vmem:[%s713 + $0x18] sm:$0xff]
        %845 = vset.pattern.permute.xlu0 0
        %846 = vperm.xlu0 %845, %v840
        %v847 = vpop.permute.xlu0 %846
        %850 = vset.pattern.permute.xlu0 0
        %851 = vperm.xlu0 %850, %v841
        %v852 = vpop.permute.xlu0 %851
        %855 = vset.pattern.permute.xlu0 0
        %856 = vperm.xlu0 %855, %v842
        %v857 = vpop.permute.xlu0 %856
        %860 = vset.pattern.permute.xlu0 0
        %861 = vperm.xlu0 %860, %v843
        %v862 = vpop.permute.xlu0 %861
        %v880 = vunpack.c.l.b16 %v716
        %v881 = vunpack.c.h.b16 %v716
        %v882 = vunpack.c.l.b16 %v717
        %v883 = vunpack.c.h.b16 %v717
        %v884 = vunpack.c.l.b16 %v718
        %v885 = vunpack.c.h.b16 %v718
        %v886 = vunpack.c.l.b16 %v719
        %v887 = vunpack.c.l.b16 %v720
        %v888 = vunpack.c.h.b16 %v720
        %v889 = vunpack.c.l.b16 %v721
        %v890 = vunpack.c.h.b16 %v721
        %v891 = vunpack.c.l.b16 %v722
        %v892 = vunpack.c.h.b16 %v722
        %v893 = vunpack.c.l.b16 %v723
        %v894 = vunpack.c.l.b16 %v724
        %v895 = vunpack.c.h.b16 %v724
        %v896 = vunpack.c.l.b16 %v725
        %v897 = vunpack.c.h.b16 %v725
        %v898 = vunpack.c.l.b16 %v726
        %v899 = vunpack.c.h.b16 %v726
        %v900 = vunpack.c.l.b16 %v727
        %v901 = vunpack.c.l.b16 %v728
        %v902 = vunpack.c.h.b16 %v728
        %v903 = vunpack.c.l.b16 %v729
        %v904 = vunpack.c.h.b16 %v729
        %v905 = vunpack.c.l.b16 %v730
        %v906 = vunpack.c.h.b16 %v730
        %v907 = vunpack.c.l.b16 %v731
        %v908 = vpack.c.b16 %v887, %v880
        %v909 = vpack.c.b16 %v888, %v881
        %v910 = vpack.c.b16 %v889, %v882
        %v911 = vpack.c.b16 %v890, %v883
        %v912 = vpack.c.b16 %v891, %v884
        %v913 = vpack.c.b16 %v892, %v885
        %v914 = vpack.c.b16 %v893, %v886
        %v915 = vpack.c.b16 %v901, %v894
        %v916 = vpack.c.b16 %v902, %v895
        %v917 = vpack.c.b16 %v903, %v896
        %v918 = vpack.c.b16 %v904, %v897
        %v919 = vpack.c.b16 %v905, %v898
        %v920 = vpack.c.b16 %v906, %v899
        %v921 = vpack.c.b16 %v907, %v900
        %v1042 = vunpack.c.l.b16 %v732
        %v1043 = vunpack.c.l.b16 %v733
        %v1044 = vunpack.c.l.b16 %v734
        %v1045 = vunpack.c.l.b16 %v735
        %v1046 = vunpack.c.l.b16 %v736
        %v1047 = vunpack.c.l.b16 %v737
        %v1048 = vunpack.c.l.b16 %v738
        %v1049 = vunpack.c.l.b16 %v739
        %v1050 = vunpack.c.l.b16 %v740
        %v1051 = vunpack.c.l.b16 %v741
        %v1052 = vunpack.c.l.b16 %v742
        %v1053 = vunpack.c.l.b16 %v743
        %v1054 = vunpack.c.l.b16 %v744
        %v1055 = vunpack.c.l.b16 %v745
        %v1056 = vunpack.c.l.b16 %v746
        %v1057 = vunpack.c.l.b16 %v747
        %v1058 = vunpack.c.l.b16 %v748
        %v1059 = vunpack.c.l.b16 %v749
        %v1060 = vunpack.c.l.b16 %v750
        %v1061 = vunpack.c.l.b16 %v751
        %v1062 = vunpack.c.l.b16 %v752
        %v1063 = vunpack.c.l.b16 %v753
        %v1064 = vunpack.c.l.b16 %v754
        %v1065 = vunpack.c.l.b16 %v755
        %v1066 = vunpack.c.l.b16 %v756
        %v1067 = vunpack.c.l.b16 %v757
        %v1068 = vunpack.c.l.b16 %v758
        %v1069 = vunpack.c.l.b16 %v759
        %v1070 = vunpack.c.l.b16 %v760
        %v1071 = vunpack.c.l.b16 %v761
        %v1072 = vunpack.c.l.b16 %v762
        %v1073 = vunpack.c.l.b16 %v763
        %v1074 = vunpack.c.l.b16 %v764
        %v1075 = vunpack.c.l.b16 %v765
        %v1076 = vunpack.c.l.b16 %v766
        %v1077 = vunpack.c.l.b16 %v767
        %v1078 = vunpack.c.l.b16 %v768
        %v1079 = vunpack.c.l.b16 %v769
        %v1080 = vunpack.c.l.b16 %v770
        %v1081 = vunpack.c.l.b16 %v771
        %v1082 = vunpack.c.l.b16 %v772
        %v1083 = vunpack.c.l.b16 %v773
        %v1084 = vunpack.c.l.b16 %v774
        %v1085 = vunpack.c.l.b16 %v775
        %v1086 = vunpack.c.l.b16 %v776
        %v1087 = vunpack.c.l.b16 %v777
        %v1088 = vunpack.c.l.b16 %v778
        %v1089 = vunpack.c.l.b16 %v779
        %v1090 = vunpack.c.l.b16 %v780
        %v1091 = vunpack.c.l.b16 %v781
        %v1092 = vunpack.c.l.b16 %v782
        %v1093 = vunpack.c.l.b16 %v783
        %v1094 = vunpack.c.l.b16 %v784
        %v1095 = vunpack.c.l.b16 %v785
        %v1096 = vunpack.c.l.b16 %v786
        %v1097 = vunpack.c.l.b16 %v787
        %v1098 = vunpack.c.l.b16 %v788
        %v1099 = vunpack.c.l.b16 %v789
        %v1100 = vunpack.c.l.b16 %v790
        %v1101 = vunpack.c.l.b16 %v791
        %v1102 = vunpack.c.l.b16 %v792
        %v1103 = vunpack.c.l.b16 %v793
        %v1104 = vunpack.c.l.b16 %v794
        %v1105 = vunpack.c.l.b16 %v795
        %v1106 = vunpack.c.l.b16 %v796
        %v1107 = vunpack.c.l.b16 %v797
        %v1108 = vunpack.c.l.b16 %v798
        %v1109 = vunpack.c.l.b16 %v799
        %v1110 = vunpack.c.l.b16 %v800
        %v1111 = vunpack.c.l.b16 %v801
        %v1112 = vunpack.c.l.b16 %v802
        %v1113 = vunpack.c.l.b16 %v803
        %v1114 = vunpack.c.l.b16 %v804
        %v1115 = vunpack.c.l.b16 %v805
        %v1116 = vunpack.c.l.b16 %v806
        %v1117 = vunpack.c.l.b16 %v807
        %v1118 = vunpack.c.l.b16 %v808
        %v1119 = vunpack.c.l.b16 %v809
        %v1120 = vunpack.c.l.b16 %v810
        %v1121 = vunpack.c.l.b16 %v811
        %v1122 = vunpack.c.l.b16 %v812
        %v1123 = vunpack.c.l.b16 %v813
        %v1124 = vunpack.c.l.b16 %v814
        %v1125 = vunpack.c.l.b16 %v815
        %v1126 = vunpack.c.l.b16 %v816
        %v1127 = vunpack.c.l.b16 %v817
        %v1128 = vunpack.c.l.b16 %v818
        %v1129 = vunpack.c.l.b16 %v819
        %v1130 = vunpack.c.l.b16 %v820
        %v1131 = vunpack.c.l.b16 %v821
        %v1132 = vunpack.c.l.b16 %v822
        %v1133 = vunpack.c.l.b16 %v823
        %v1134 = vunpack.c.l.b16 %v824
        %v1135 = vunpack.c.l.b16 %v825
        %v1136 = vunpack.c.l.b16 %v826
        %v1137 = vunpack.c.l.b16 %v827
        %v1138 = vunpack.c.l.b16 %v828
        %v1139 = vunpack.c.l.b16 %v829
        %v1140 = vunpack.c.l.b16 %v830
        %v1141 = vunpack.c.l.b16 %v831
        %v1142 = vunpack.c.l.b16 %v832
        %v1143 = vunpack.c.l.b16 %v833
        %v1144 = vunpack.c.l.b16 %v834
        %v1145 = vunpack.c.l.b16 %v835
        %v1146 = vunpack.c.l.b16 %v836
        %v1147 = vunpack.c.l.b16 %v837
        %v1148 = vunpack.c.l.b16 %v838
        %v1149 = vunpack.c.l.b16 %v839
        %v1150 = vpack.c.b16 %v1043, %v1042
        %v1151 = vpack.c.b16 %v1045, %v1044
        %v1152 = vpack.c.b16 %v1047, %v1046
        %v1153 = vpack.c.b16 %v1049, %v1048
        %v1154 = vpack.c.b16 %v1051, %v1050
        %v1155 = vpack.c.b16 %v1053, %v1052
        %v1156 = vpack.c.b16 %v1055, %v1054
        %v1157 = vpack.c.b16 %v1057, %v1056
        %v1158 = vpack.c.b16 %v1059, %v1058
        %v1159 = vpack.c.b16 %v1061, %v1060
        %v1160 = vpack.c.b16 %v1063, %v1062
        %v1161 = vpack.c.b16 %v1065, %v1064
        %v1162 = vpack.c.b16 %v1067, %v1066
        %v1163 = vpack.c.b16 %v1069, %v1068
        %v1164 = vpack.c.b16 %v1071, %v1070
        %v1165 = vpack.c.b16 %v1073, %v1072
        %v1166 = vpack.c.b16 %v1075, %v1074
        %v1167 = vpack.c.b16 %v1077, %v1076
        %v1168 = vpack.c.b16 %v1079, %v1078
        %v1169 = vpack.c.b16 %v1081, %v1080
        %v1170 = vpack.c.b16 %v1083, %v1082
        %v1171 = vpack.c.b16 %v1085, %v1084
        %v1172 = vpack.c.b16 %v1087, %v1086
        %v1173 = vpack.c.b16 %v1089, %v1088
        %v1174 = vpack.c.b16 %v1091, %v1090
        %v1175 = vpack.c.b16 %v1093, %v1092
        %v1176 = vpack.c.b16 %v1095, %v1094
        %v1177 = vpack.c.b16 %v1097, %v1096
        %v1178 = vpack.c.b16 %v1099, %v1098
        %v1179 = vpack.c.b16 %v1101, %v1100
        %v1180 = vpack.c.b16 %v1103, %v1102
        %v1181 = vpack.c.b16 %v1105, %v1104
        %v1182 = vpack.c.b16 %v1107, %v1106
        %v1183 = vpack.c.b16 %v1109, %v1108
        %v1184 = vpack.c.b16 %v1111, %v1110
        %v1185 = vpack.c.b16 %v1113, %v1112
        %v1186 = vpack.c.b16 %v1115, %v1114
        %v1187 = vpack.c.b16 %v1117, %v1116
        %v1188 = vpack.c.b16 %v1119, %v1118
        %v1189 = vpack.c.b16 %v1121, %v1120
        %v1190 = vpack.c.b16 %v1123, %v1122
        %v1191 = vpack.c.b16 %v1125, %v1124
        %v1192 = vpack.c.b16 %v1127, %v1126
        %v1193 = vpack.c.b16 %v1129, %v1128
        %v1194 = vpack.c.b16 %v1131, %v1130
        %v1195 = vpack.c.b16 %v1133, %v1132
        %v1196 = vpack.c.b16 %v1135, %v1134
        %v1197 = vpack.c.b16 %v1137, %v1136
        %v1198 = vpack.c.b16 %v1139, %v1138
        %v1199 = vpack.c.b16 %v1141, %v1140
        %v1200 = vpack.c.b16 %v1143, %v1142
        %v1201 = vpack.c.b16 %v1145, %v1144
        %v1202 = vpack.c.b16 %v1147, %v1146
        %v1203 = vpack.c.b16 %v1149, %v1148
        %vm1258 = vcmask 785408
        %v1260 = vsel %vm1258, %v914, 0
        %v1263 = vsel %vm1258, %v921, 0
        %1265 = vmatprep.subr.bf16.mxu0 0
        %1266 = vmatpush1.bf16.msra.mxu0 %v1157
        %1267 = vmatprep.subr.bf16.mxu0 0
        %1268 = vmatpush1.bf16.msra.mxu0 %v1156
        %1269 = vmatprep.subr.bf16.mxu0 0
        %1270 = vmatpush1.bf16.msra.mxu0 %v1155
        %1271 = vmatprep.subr.bf16.mxu0 0
        %1272 = vmatpush1.bf16.msra.mxu0 %v1154
        %1273 = vmatprep.subr.bf16.mxu0 0
        %1274 = vmatpush1.bf16.msra.mxu0 %v1153
        %1275 = vmatprep.subr.bf16.mxu0 0
        %1276 = vmatpush1.bf16.msra.mxu0 %v1152
        %1277 = vmatprep.subr.bf16.mxu0 0
        %1278 = vmatpush1.bf16.msra.mxu0 %v1151
        %1279 = vmatprep.subr.bf16.mxu0 0
        %1280 = vmatpush1.bf16.msra.mxu0 %v1150
        %1281 = vmatprep.subr.bf16.mxu0 0
        %1282 = vmatpush2.bf16.msra.mxu0 %v1165
        %1283 = vmatprep.subr.bf16.mxu0 0
        %1284 = vmatpush2.bf16.msra.mxu0 %v1164
        %1285 = vmatprep.subr.bf16.mxu0 0
        %1286 = vmatpush2.bf16.msra.mxu0 %v1163
        %1287 = vmatprep.subr.bf16.mxu0 0
        %1288 = vmatpush2.bf16.msra.mxu0 %v1162
        %1289 = vmatprep.subr.bf16.mxu0 0
        %1290 = vmatpush2.bf16.msra.mxu0 %v1161
        %1291 = vmatprep.subr.bf16.mxu0 0
        %1292 = vmatpush2.bf16.msra.mxu0 %v1160
        %1293 = vmatprep.subr.bf16.mxu0 0
        %1294 = vmatpush2.bf16.msra.mxu0 %v1159
        %1295 = vmatprep.subr.bf16.mxu0 0
        %1296 = vmatpush2.bf16.msra.mxu0 %v1158
        %1297 = vmatprep.mubr.bf16.mxu0 %v909
        %1298 = vmatmul.mubr.bf16.gmra.mxu0 %v908
        %v1299 = vpop.f32.mrf.mxu0
        %v1300 = vadd.f32 %v847, %v1299
        %v1301 = vpop.f32.mrf.mxu0
        %v1302 = vpop.f32.mrf.mxu0
        %v1303 = vadd.f32 %v852, %v1302
        %v1304 = vpop.f32.mrf.mxu0
        %1305 = vmatprep.mubr.bf16.mxu0 %v916
        %1306 = vmatmul.mubr.bf16.gmra.mxu0 %v915
        %v1307 = vpop.f32.mrf.mxu0
        %v1308 = vadd.f32 %v857, %v1307
        %v1309 = vpop.f32.mrf.mxu0
        %v1310 = vpop.f32.mrf.mxu0
        %v1311 = vadd.f32 %v862, %v1310
        %v1312 = vpop.f32.mrf.mxu0
        %1313 = vdwg.mxu0
        %1314 = vmatprep.subr.bf16.mxu0 0
        %1315 = vmatpush1.bf16.msra.mxu0 %v1173
        %1316 = vmatprep.subr.bf16.mxu0 0
        %1317 = vmatpush1.bf16.msra.mxu0 %v1172
        %1318 = vmatprep.subr.bf16.mxu0 0
        %1319 = vmatpush1.bf16.msra.mxu0 %v1171
        %1320 = vmatprep.subr.bf16.mxu0 0
        %1321 = vmatpush1.bf16.msra.mxu0 %v1170
        %1322 = vmatprep.subr.bf16.mxu0 0
        %1323 = vmatpush1.bf16.msra.mxu0 %v1169
        %1324 = vmatprep.subr.bf16.mxu0 0
        %1325 = vmatpush1.bf16.msra.mxu0 %v1168
        %1326 = vmatprep.subr.bf16.mxu0 0
        %1327 = vmatpush1.bf16.msra.mxu0 %v1167
        %1328 = vmatprep.subr.bf16.mxu0 0
        %1329 = vmatpush1.bf16.msra.mxu0 %v1166
        %1330 = vmatprep.subr.bf16.mxu0 0
        %1331 = vmatpush2.bf16.msra.mxu0 %v1181
        %1332 = vmatprep.subr.bf16.mxu0 0
        %1333 = vmatpush2.bf16.msra.mxu0 %v1180
        %1334 = vmatprep.subr.bf16.mxu0 0
        %1335 = vmatpush2.bf16.msra.mxu0 %v1179
        %1336 = vmatprep.subr.bf16.mxu0 0
        %1337 = vmatpush2.bf16.msra.mxu0 %v1178
        %1338 = vmatprep.subr.bf16.mxu0 0
        %1339 = vmatpush2.bf16.msra.mxu0 %v1177
        %1340 = vmatprep.subr.bf16.mxu0 0
        %1341 = vmatpush2.bf16.msra.mxu0 %v1176
        %1342 = vmatprep.subr.bf16.mxu0 0
        %1343 = vmatpush2.bf16.msra.mxu0 %v1175
        %1344 = vmatprep.subr.bf16.mxu0 0
        %1345 = vmatpush2.bf16.msra.mxu0 %v1174
        %1346 = vmatprep.mubr.bf16.mxu0 %v911
        %1347 = vmatmul.mubr.bf16.gmra.mxu0 %v910
        %v1348 = vpop.f32.mrf.mxu0
        %v1349 = vadd.f32 %v1300, %v1348
        %v1350 = vpop.f32.mrf.mxu0
        %v1351 = vpop.f32.mrf.mxu0
        %v1352 = vadd.f32 %v1303, %v1351
        %v1353 = vpop.f32.mrf.mxu0
        %1354 = vmatprep.mubr.bf16.mxu0 %v918
        %1355 = vmatmul.mubr.bf16.gmra.mxu0 %v917
        %v1356 = vpop.f32.mrf.mxu0
        %v1357 = vadd.f32 %v1308, %v1356
        %v1358 = vpop.f32.mrf.mxu0
        %v1359 = vpop.f32.mrf.mxu0
        %v1360 = vadd.f32 %v1311, %v1359
        %v1361 = vpop.f32.mrf.mxu0
        %1362 = vdwg.mxu0
        %1363 = vmatprep.subr.bf16.mxu0 0
        %1364 = vmatpush1.bf16.msra.mxu0 %v1189
        %1365 = vmatprep.subr.bf16.mxu0 0
        %1366 = vmatpush1.bf16.msra.mxu0 %v1188
        %1367 = vmatprep.subr.bf16.mxu0 0
        %1368 = vmatpush1.bf16.msra.mxu0 %v1187
        %1369 = vmatprep.subr.bf16.mxu0 0
        %1370 = vmatpush1.bf16.msra.mxu0 %v1186
        %1371 = vmatprep.subr.bf16.mxu0 0
        %1372 = vmatpush1.bf16.msra.mxu0 %v1185
        %1373 = vmatprep.subr.bf16.mxu0 0
        %1374 = vmatpush1.bf16.msra.mxu0 %v1184
        %1375 = vmatprep.subr.bf16.mxu0 0
        %1376 = vmatpush1.bf16.msra.mxu0 %v1183
        %1377 = vmatprep.subr.bf16.mxu0 0
        %1378 = vmatpush1.bf16.msra.mxu0 %v1182
        %1379 = vmatprep.subr.bf16.mxu0 0
        %1380 = vmatpush2.bf16.msra.mxu0 %v1197
        %1381 = vmatprep.subr.bf16.mxu0 0
        %1382 = vmatpush2.bf16.msra.mxu0 %v1196
        %1383 = vmatprep.subr.bf16.mxu0 0
        %1384 = vmatpush2.bf16.msra.mxu0 %v1195
        %1385 = vmatprep.subr.bf16.mxu0 0
        %1386 = vmatpush2.bf16.msra.mxu0 %v1194
        %1387 = vmatprep.subr.bf16.mxu0 0
        %1388 = vmatpush2.bf16.msra.mxu0 %v1193
        %1389 = vmatprep.subr.bf16.mxu0 0
        %1390 = vmatpush2.bf16.msra.mxu0 %v1192
        %1391 = vmatprep.subr.bf16.mxu0 0
        %1392 = vmatpush2.bf16.msra.mxu0 %v1191
        %1393 = vmatprep.subr.bf16.mxu0 0
        %1394 = vmatpush2.bf16.msra.mxu0 %v1190
        %1395 = vmatprep.mubr.bf16.mxu0 %v913
        %1396 = vmatmul.mubr.bf16.gmra.mxu0 %v912
        %v1397 = vpop.f32.mrf.mxu0
        %v1398 = vadd.f32 %v1349, %v1397
        %v1399 = vpop.f32.mrf.mxu0
        %v1400 = vpop.f32.mrf.mxu0
        %v1401 = vadd.f32 %v1352, %v1400
        %v1402 = vpop.f32.mrf.mxu0
        %1403 = vmatprep.mubr.bf16.mxu0 %v920
        %1404 = vmatmul.mubr.bf16.gmra.mxu0 %v919
        %v1405 = vpop.f32.mrf.mxu0
        %v1406 = vadd.f32 %v1357, %v1405
        %v1407 = vpop.f32.mrf.mxu0
        %v1408 = vpop.f32.mrf.mxu0
        %v1409 = vadd.f32 %v1360, %v1408
        %v1410 = vpop.f32.mrf.mxu0
        %1411 = vdwg.mxu0
        %1412 = vmatprep.subr.bf16.mxu0 0
        %1413 = vmatpush1.bf16.msra.mxu0 0
        %1414 = vmatprep.subr.bf16.mxu0 0
        %1415 = vmatpush1.bf16.msra.mxu0 0
        %1416 = vmatprep.subr.bf16.mxu0 0
        %1417 = vmatpush1.bf16.msra.mxu0 %v1203
        %1418 = vmatprep.subr.bf16.mxu0 0
        %1419 = vmatpush1.bf16.msra.mxu0 %v1202
        %1420 = vmatprep.subr.bf16.mxu0 0
        %1421 = vmatpush1.bf16.msra.mxu0 %v1201
        %1422 = vmatprep.subr.bf16.mxu0 0
        %1423 = vmatpush1.bf16.msra.mxu0 %v1200
        %1424 = vmatprep.subr.bf16.mxu0 0
        %1425 = vmatpush1.bf16.msra.mxu0 %v1199
        %1426 = vmatprep.subr.bf16.mxu0 0
        %1427 = vmatpush1.bf16.msra.mxu0 %v1198
        %1428 = vmatprep.subr.bf16.mxu0 0
        %1429 = vmatpush2.bf16.msra.mxu0 0
        %1430 = vmatprep.subr.bf16.mxu0 0
        %1431 = vmatpush2.bf16.msra.mxu0 0
        %1432 = vmatprep.subr.bf16.mxu0 0
        %1433 = vmatpush2.bf16.msra.mxu0 0
        %1434 = vmatprep.subr.bf16.mxu0 0
        %1435 = vmatpush2.bf16.msra.mxu0 0
        %1436 = vmatprep.subr.bf16.mxu0 0
        %1437 = vmatpush2.bf16.msra.mxu0 0
        %1438 = vmatprep.subr.bf16.mxu0 0
        %1439 = vmatpush2.bf16.msra.mxu0 0
        %1440 = vmatprep.subr.bf16.mxu0 0
        %1441 = vmatpush2.bf16.msra.mxu0 0
        %1442 = vmatprep.subr.bf16.mxu0 0
        %1443 = vmatpush2.bf16.msra.mxu0 0
        %1444 = vmatprep.mubr.bf16.mxu0 0
        %1445 = vmatmul.mubr.bf16.gmra.mxu0 %v1260
        %v1446 = vpop.f32.mrf.mxu0
        %v1447 = vadd.f32 %v1398, %v1446
        %v1448 = vpop.f32.mrf.mxu0
        %v1449 = vpop.f32.mrf.mxu0
        %v1450 = vadd.f32 %v1401, %v1449
        %v1451 = vpop.f32.mrf.mxu0
        %1452 = vmatprep.mubr.bf16.mxu0 0
        %1453 = vmatmul.mubr.bf16.gmra.mxu0 %v1263
        %v1454 = vpop.f32.mrf.mxu0
        %v1455 = vadd.f32 %v1406, %v1454
        %v1456 = vpop.f32.mrf.mxu0
        %v1457 = vpop.f32.mrf.mxu0
        %v1458 = vadd.f32 %v1409, %v1457
        %v1459 = vpop.f32.mrf.mxu0
        %1460 = vdwg.mxu0
        %vm1461 = vcmp.ge.f32.partialorder %v1447, 0.0
        %vm1462 = vcmp.ge.f32.partialorder %v1450, 0.0
        %vm1463 = vcmp.ge.f32.partialorder %v1455, 0.0
        %vm1464 = vcmp.ge.f32.partialorder %v1458, 0.0
        %v1465 = vmul.f32 %v1447, 0.1
        %v1466 = vmul.f32 %v1450, 0.1
        %v1467 = vmul.f32 %v1455, 0.1
        %v1468 = vmul.f32 %v1458, 0.1
        %v1469 = vsel %vm1461, %v1447, %v1465
        %v1470 = vsel %vm1462, %v1450, %v1466
        %v1471 = vsel %vm1463, %v1455, %v1467
        %v1472 = vsel %vm1464, %v1458, %v1468
        %v1473 = vpack.c.bf16 %v1470, %v1469
        %v1474 = vpack.c.bf16 %v1472, %v1471
        %v1477 = vunpack.c.l.b16 %v1473
        %v1478 = vunpack.c.h.b16 %v1473
        %v1479 = vunpack.c.l.b16 %v1474
        %v1480 = vunpack.c.h.b16 %v1474
        %v1481 = vpack.c.b16 %v1477, %v1477
        %v1482 = vpack.c.b16 %v1478, %v1478
        %v1483 = vpack.c.b16 %v1479, %v1479
        %v1484 = vpack.c.b16 %v1480, %v1480
        %1489 = vst [vmem:[%s700] sm:$0xf] %v1481
        %1490 = vst [vmem:[%s700 + $0x4] sm:$0xf] %v1482
        %1491 = vst [vmem:[%s700 + $0x8] sm:$0xf] %v1483
        %1492 = vst [vmem:[%s700 + $0xc] sm:$0xf] %v1484
        %s1493 = sand.u32 %s127, 1
        %s1494 = sand.u32 %s127, 1
        %s1495 = smul.addr %s1494, 16
        %s1496 = scalar_lea.vmem [#allocation5], %s1495
        // Predicated region
        $region74: #{multi_resolution_discriminator_forward.23} parent=68 // pred_check
          %p1497 = pneg %p137
        $region75: #{multi_resolution_discriminator_forward.23} parent=68 // pred_check_branch
          %1499 = sbr.rel (%p1497) target = $region77
        $region76: #{multi_resolution_discriminator_forward.23} parent=68 // pred_region
          %s1500 = smul.addr %s25, 20
          %s1501 = sadd.s32 %s26, %s1500
          %s1502 = smul.addr %s1501, 4
          %s1503 = scalar_lea.vmem %s4, %s1502
          // Predicated region
          $region78: #{multi_resolution_discriminator_forward.23} parent=76 // pred_check
            _
          $region79: #{multi_resolution_discriminator_forward.23} parent=76 // pred_check_branch
            %1505 = sbr.rel (0) target = $region81
          $region80: #{multi_resolution_discriminator_forward.23} parent=76 // pred_region
            // Predicated region
            $region82: #{multi_resolution_discriminator_forward.23} parent=80 // pred_check
              _
            $region83: #{multi_resolution_discriminator_forward.23} parent=80 // pred_check_branch
              %1507 = sbr.rel target = $region85
            $region84: #{multi_resolution_discriminator_forward.23} parent=80 // pred_region
              // Predicated region
              $region97: #{multi_resolution_discriminator_forward.23} parent=84 // pred_check
                _
              $region98: #{multi_resolution_discriminator_forward.23} parent=84 // pred_check_branch
                %1529 = sbr.rel (0) target = $region100
              $region99: #{multi_resolution_discriminator_forward.23} parent=84 // pred_region
                loop: start=0, step=1, limit=1
                $region101: #{multi_resolution_discriminator_forward.23} parent=99 // loop_pre_header
                  _
                $region102: #{multi_resolution_discriminator_forward.23} parent=99 // loop_header
                  %s1531 = sphi 0, %s1535
                  %p1532 = scmp.ge.s32.totalorder %s1531, 1
                  %s1536 = sphi %s1496, %s1496
                  %s1537 = sphi %s1503, %s1503
                $region103: #{multi_resolution_discriminator_forward.23} parent=99 // loop_header_branch
                  %1534 = sbr.rel (%p1532) target = $region107
                $region104: #{multi_resolution_discriminator_forward.23} parent=99 // loop_body
                  _
                $region105: #{multi_resolution_discriminator_forward.23} parent=99 // loop_footer
                  %s1535 = sadd.s32 1, %s1531
                $region106: #{multi_resolution_discriminator_forward.23} parent=99 // loop_footer_branch
                  %1530 = sbr.rel target = $region102
                $region107: #{multi_resolution_discriminator_forward.23} parent=99 // loop_exit
                  _
                %s1539 = ssub.s32 16, 1
                loop: start=0, step=1, limit=1
                $region108: #{multi_resolution_discriminator_forward.23} parent=99 // loop_pre_header
                  _
                $region109: #{multi_resolution_discriminator_forward.23} parent=99 // loop_header
                  %s1541 = sphi 0, %s1545
                  %p1542 = scmp.ge.s32.totalorder %s1541, 1
                  %s1546 = sphi %s1496, %s1496
                  %s1547 = sphi %s1503, %s1503
                $region110: #{multi_resolution_discriminator_forward.23} parent=99 // loop_header_branch
                  %1544 = sbr.rel (%p1542) target = $region114
                $region111: #{multi_resolution_discriminator_forward.23} parent=99 // loop_body
                  %v1548 = vld [vmem:[%s1546] sm:%s1539]
                  %1549 = vst [vmem:[%s1547] sm:%s1539] %v1548
                  %v1550 = vld [vmem:[%s1546 + $0x4] sm:%s1539]
                  %1551 = vst [vmem:[%s1547 + $0x14] sm:%s1539] %v1550
                  %v1552 = vld [vmem:[%s1546 + $0x8] sm:%s1539]
                  %1553 = vst [vmem:[%s1547 + $0x28] sm:%s1539] %v1552
                  %v1554 = vld [vmem:[%s1546 + $0xc] sm:%s1539]
                  %1555 = vst [vmem:[%s1547 + $0x3c] sm:%s1539] %v1554
                $region112: #{multi_resolution_discriminator_forward.23} parent=99 // loop_footer
                  %s1545 = sadd.s32 1, %s1541
                $region113: #{multi_resolution_discriminator_forward.23} parent=99 // loop_footer_branch
                  %1540 = sbr.rel target = $region109
                $region114: #{multi_resolution_discriminator_forward.23} parent=99 // loop_exit
                  _
              $region100: #{multi_resolution_discriminator_forward.23} parent=84 // pred_fallthru
                _
            $region85: #{multi_resolution_discriminator_forward.23} parent=80 // pred_fallthru
              _
            // Predicated region
            $region86: #{multi_resolution_discriminator_forward.23} parent=80 // pred_check
              _
            $region87: #{multi_resolution_discriminator_forward.23} parent=80 // pred_check_branch
              %1509 = sbr.rel (0) target = $region89
            $region88: #{multi_resolution_discriminator_forward.23} parent=80 // pred_region
              %s1511 = ssub.s32 16, 1
              loop: start=0, step=1, limit=1
              $region90: #{multi_resolution_discriminator_forward.23} parent=88 // loop_pre_header
                _
              $region91: #{multi_resolution_discriminator_forward.23} parent=88 // loop_header
                %s1513 = sphi 0, %s1517
                %p1514 = scmp.ge.s32.totalorder %s1513, 1
                %s1518 = sphi %s1496, %s1496
                %s1519 = sphi %s1503, %s1503
              $region92: #{multi_resolution_discriminator_forward.23} parent=88 // loop_header_branch
                %1516 = sbr.rel (%p1514) target = $region96
              $region93: #{multi_resolution_discriminator_forward.23} parent=88 // loop_body
                %v1520 = vld [vmem:[%s1518] sm:%s1511]
                %1521 = vst [vmem:[%s1519] sm:%s1511] %v1520
                %v1522 = vld [vmem:[%s1518 + $0x4] sm:%s1511]
                %1523 = vst [vmem:[%s1519 + $0x14] sm:%s1511] %v1522
                %v1524 = vld [vmem:[%s1518 + $0x8] sm:%s1511]
                %1525 = vst [vmem:[%s1519 + $0x28] sm:%s1511] %v1524
                %v1526 = vld [vmem:[%s1518 + $0xc] sm:%s1511]
                %1527 = vst [vmem:[%s1519 + $0x3c] sm:%s1511] %v1526
              $region94: #{multi_resolution_discriminator_forward.23} parent=88 // loop_footer
                %s1517 = sadd.s32 1, %s1513
              $region95: #{multi_resolution_discriminator_forward.23} parent=88 // loop_footer_branch
                %1512 = sbr.rel target = $region91
              $region96: #{multi_resolution_discriminator_forward.23} parent=88 // loop_exit
                _
            $region89: #{multi_resolution_discriminator_forward.23} parent=80 // pred_fallthru
              _
          $region81: #{multi_resolution_discriminator_forward.23} parent=76 // pred_fallthru
            _
          %1556 = vnop
        $region77: #{multi_resolution_discriminator_forward.23} parent=68 // pred_fallthru
          _
      $region69: #{multi_resolution_discriminator_forward.23} parent=5 // pred_fallthru
        _
      %p1557 = scmp.le.s32.totalorder 2, %s16
      // Predicated region
      $region115: #{multi_resolution_discriminator_forward.23} parent=5 // pred_check
        %p1558 = pneg %p1557
      $region116: #{multi_resolution_discriminator_forward.23} parent=5 // pred_check_branch
        %1560 = sbr.rel (%p1558) target = $region118
      $region117: #{multi_resolution_discriminator_forward.23} parent=5 // pred_region
        %s1561 = ssub.s32 %s16, 2
        // Predicated region
        $region119: #{multi_resolution_discriminator_forward.23} parent=117 // pred_check
          %p1562 = pneg %p143
        $region120: #{multi_resolution_discriminator_forward.23} parent=117 // pred_check_branch
          %1564 = sbr.rel (%p1562) target = $region122
        $region121: #{multi_resolution_discriminator_forward.23} parent=117 // pred_region
          %s1565 = sand.u32 %s128, 1
          %s1566 = sand.u32 %s128, 1
          %s1567 = smul.addr %s1566, 16
          %s1568 = scalar_lea.vmem [#allocation5], %s1567
        $region122: #{multi_resolution_discriminator_forward.23} parent=117 // pred_fallthru
          _
      $region118: #{multi_resolution_discriminator_forward.23} parent=5 // pred_fallthru
        _
    $region6: #{multi_resolution_discriminator_forward.23} parent=1 // loop_footer
      %s20 = sadd.s32 1, %s16
    $region7: #{multi_resolution_discriminator_forward.23} parent=1 // loop_footer_branch
      %15 = sbr.rel target = $region3
    $region8: #{multi_resolution_discriminator_forward.23} parent=1 // loop_exit
      _

// kernel: multi_resolution_discriminator_forward.26
$region0: #{multi_resolution_discriminator_forward.26}
  #allocation0 [shape = 'u32[]', space=smem, size = 0x4, offset = 0x4, fixed_abs, tag = 'smem constant byte address 0x4 - core index']
  #allocation1 [shape = 'u32[144,128]{1,0:T(1,128)}', space=vmem, size = 0x12000, scoped, tag = 'internal scratch']
  #allocation2 [shape = 's32[1]{0}', space=sflag, size = 0x4, scoped, tag = 'scoped memory for multi_resolution_discriminator_forward.26']
  #allocation3 [shape = 'u8[512]{0}', space=smem, size = 0x200, scoped, tag = 'prefetched SMEM operand 0']
  %s0 = inlined_call_operand.vmem [shape: s32[5], index: 0, kind: input, shape index: {}]
  %s1 = inlined_call_operand.vmem [shape: bf16[5,32,288], index: 1, kind: input, shape index: {}]
  %s2 = inlined_call_operand.vmem [shape: bf16[4,288,640], index: 2, kind: input, shape index: {}]
  %s3 = inlined_call_operand.vmem [shape: f32[5,32,1], index: 3, kind: input, shape index: {}]
  %s4 = inlined_call_operand.vmem [shape: bf16[4,32,640], index: 4, kind: output, shape index: {}]
  %s5 = sld [smem:[#allocation0]]
  $region123: #{multi_resolution_discriminator_forward.26} parent=0
    _
  %s7 = ssub.s32 1, %s5
  %s8 = scalar_select 0, %s7, %s5
  %s9 = sshll.u32 %s0, 4
  %s10 = int_to_ptr.vmem [resolvable:$true] %s9
  %12 = dma.vmem_to_smem %s10, 16, [#allocation3], [#allocation2]
  %13 = dma.done [#allocation2], 16
  %14 = sfence
  $region1: #{multi_resolution_discriminator_forward.26} parent=0
    #allocation4 [shape = 'u8[147456]{0}', space=vmem, size = 0x24000, scoped, tag = 'input window, operand 2']
    #allocation5 [shape = 'u8[16384]{0}', space=vmem, size = 0x4000, scoped, tag = 'output window, operand 0']
    loop: start=0, step=1, limit=22
    $region2: #{multi_resolution_discriminator_forward.26} parent=1 // loop_pre_header
      _
    $region3: #{multi_resolution_discriminator_forward.26} parent=1 // loop_header
      %s16 = sphi 0, %s20
      %p17 = scmp.ge.s32.totalorder %s16, 22
      %s23 = sphi 0, %s35
      %s24 = sphi 0, %s31
      %s25 = sphi 0, %s23
      %s26 = sphi 0, %s24
      %s27 = sphi 0, %s25
      %s28 = sphi 0, %s26
      %s40 = sphi 0, %s42
      %s43 = sphi 0, %s40
      %s44 = sphi 0, %s43
      %s60 = sphi 0, %s44
      %s68 = sphi 0, %s70
      %s71 = sphi 0, %s68
      %s72 = sphi 0, %s71
      %s88 = sphi 0, %s72
      %s96 = sphi 0, %s98
      %s99 = sphi 0, %s96
      %s100 = sphi 0, %s99
      %s116 = sphi 0, %s100
      %s124 = sphi 0, %s126
      %s127 = sphi 0, %s124
      %s128 = sphi 0, %s127
      %s144 = sphi 0, %s128
    $region4: #{multi_resolution_discriminator_forward.26} parent=1 // loop_header_branch
      %19 = sbr.rel (%p17) target = $region8
    $region5: #{multi_resolution_discriminator_forward.26} parent=1 // loop_body
      %s21 = ssub.s32 %s16, 1
      %s22 = ssub.s32 %s16, 2
      %s29 = sadd.s32 1, %s24
      %p30 = scmp.ge.s32.totalorder %s29, 5
      %s31 = scalar_select %p30, 0, %s29
      %s32 = sadd.s32 1, %s23
      %s33 = scalar_select %p30, %s32, %s23
      %p34 = scmp.ge.s32.totalorder %s33, 4
      %s35 = scalar_select %p34, 0, %s33
      %s36 = sld [smem:[#allocation3 + %s24]]
      %s37 = sld [smem:[#allocation3 + %s31]]
      %s38 = ssub.s32 %s36, %s37
      %p39 = scmp.eq.s32.totalorder %s38, 0
      %s41 = sadd.s32 %s40, 1
      %s42 = scalar_select %p39, %s40, %s41
      %p45 = pneg %p39
      %p46 = scmp.eq.s32.totalorder %s16, 19
      %p47 = por %p45, %p46
      %p48 = scmp.ne.s32.totalorder %s40, %s43
      %p49 = scmp.eq.s32.totalorder %s16, 0
      %p50 = por %p48, %p49
      %p51 = scmp.ne.s32.totalorder %s40, %s43
      %p52 = scmp.eq.s32.totalorder %s21, 19
      %p53 = por %p51, %p52
      %p54 = scmp.ne.s32.totalorder %s43, %s44
      %p55 = scmp.eq.s32.totalorder %s21, 0
      %p56 = por %p54, %p55
      %p57 = scmp.ne.s32.totalorder %s43, %s44
      %p58 = scmp.eq.s32.totalorder %s22, 19
      %p59 = por %p57, %p58
      %p61 = scmp.ne.s32.totalorder %s44, %s60
      %p62 = scmp.eq.s32.totalorder %s22, 0
      %p63 = por %p61, %p62
      %s64 = ssub.s32 %s23, %s35
      %s65 = ssub.s32 %s24, %s31
      %s66 = sor.u32 %s64, %s65
      %p67 = scmp.eq.s32.totalorder %s66, 0
      %s69 = sadd.s32 %s68, 1
      %s70 = scalar_select %p67, %s68, %s69
      %p73 = pneg %p67
      %p74 = scmp.eq.s32.totalorder %s16, 19
      %p75 = por %p73, %p74
      %p76 = scmp.ne.s32.totalorder %s68, %s71
      %p77 = scmp.eq.s32.totalorder %s16, 0
      %p78 = por %p76, %p77
      %p79 = scmp.ne.s32.totalorder %s68, %s71
      %p80 = scmp.eq.s32.totalorder %s21, 19
      %p81 = por %p79, %p80
      %p82 = scmp.ne.s32.totalorder %s71, %s72
      %p83 = scmp.eq.s32.totalorder %s21, 0
      %p84 = por %p82, %p83
      %p85 = scmp.ne.s32.totalorder %s71, %s72
      %p86 = scmp.eq.s32.totalorder %s22, 19
      %p87 = por %p85, %p86
      %p89 = scmp.ne.s32.totalorder %s72, %s88
      %p90 = scmp.eq.s32.totalorder %s22, 0
      %p91 = por %p89, %p90
      %s92 = sld [smem:[#allocation3 + %s24]]
      %s93 = sld [smem:[#allocation3 + %s31]]
      %s94 = ssub.s32 %s92, %s93
      %p95 = scmp.eq.s32.totalorder %s94, 0
      %s97 = sadd.s32 %s96, 1
      %s98 = scalar_select %p95, %s96, %s97
      %p101 = pneg %p95
      %p102 = scmp.eq.s32.totalorder %s16, 19
      %p103 = por %p101, %p102
      %p104 = scmp.ne.s32.totalorder %s96, %s99
      %p105 = scmp.eq.s32.totalorder %s16, 0
      %p106 = por %p104, %p105
      %p107 = scmp.ne.s32.totalorder %s96, %s99
      %p108 = scmp.eq.s32.totalorder %s21, 19
      %p109 = por %p107, %p108
      %p110 = scmp.ne.s32.totalorder %s99, %s100
      %p111 = scmp.eq.s32.totalorder %s21, 0
      %p112 = por %p110, %p111
      %p113 = scmp.ne.s32.totalorder %s99, %s100
      %p114 = scmp.eq.s32.totalorder %s22, 19
      %p115 = por %p113, %p114
      %p117 = scmp.ne.s32.totalorder %s100, %s116
      %p118 = scmp.eq.s32.totalorder %s22, 0
      %p119 = por %p117, %p118
      %s120 = ssub.s32 %s23, %s35
      %s121 = ssub.s32 %s24, %s31
      %s122 = sor.u32 %s120, %s121
      %p123 = scmp.eq.s32.totalorder %s122, 0
      %s125 = sadd.s32 %s124, 1
      %s126 = scalar_select %p123, %s124, %s125
      %p129 = pneg %p123
      %p130 = scmp.eq.s32.totalorder %s16, 19
      %p131 = por %p129, %p130
      %p132 = scmp.ne.s32.totalorder %s124, %s127
      %p133 = scmp.eq.s32.totalorder %s16, 0
      %p134 = por %p132, %p133
      %p135 = scmp.ne.s32.totalorder %s124, %s127
      %p136 = scmp.eq.s32.totalorder %s21, 19
      %p137 = por %p135, %p136
      %p138 = scmp.ne.s32.totalorder %s127, %s128
      %p139 = scmp.eq.s32.totalorder %s21, 0
      %p140 = por %p138, %p139
      %p141 = scmp.ne.s32.totalorder %s127, %s128
      %p142 = scmp.eq.s32.totalorder %s22, 19
      %p143 = por %p141, %p142
      %p145 = scmp.ne.s32.totalorder %s128, %s144
      %p146 = scmp.eq.s32.totalorder %s22, 0
      %p147 = por %p145, %p146
      %p148 = scmp.le.s32.totalorder 1, %s16
      %p149 = scmp.lt.s32.totalorder %s16, 21
      %p150 = pnand %p148, %p149
      %p151 = pneg %p150
      // Predicated region
      $region9: #{multi_resolution_discriminator_forward.26} parent=5 // pred_check
        _
      $region10: #{multi_resolution_discriminator_forward.26} parent=5 // pred_check_branch
        %153 = sbr.rel (%p150) target = $region12
      $region11: #{multi_resolution_discriminator_forward.26} parent=5 // pred_region
        %s154 = ssub.s32 %s16, 1
      $region12: #{multi_resolution_discriminator_forward.26} parent=5 // pred_fallthru
        _
      %p155 = scmp.lt.s32.totalorder %s16, 20
      // Predicated region
      $region13: #{multi_resolution_discriminator_forward.26} parent=5 // pred_check
        %p156 = pneg %p155
      $region14: #{multi_resolution_discriminator_forward.26} parent=5 // pred_check_branch
        %158 = sbr.rel (%p156) target = $region16
      $region15: #{multi_resolution_discriminator_forward.26} parent=5 // pred_region
        // Predicated region
        $region17: #{multi_resolution_discriminator_forward.26} parent=15 // pred_check
          %p159 = pneg %p50
        $region18: #{multi_resolution_discriminator_forward.26} parent=15 // pred_check_branch
          %161 = sbr.rel (%p159) target = $region20
        $region19: #{multi_resolution_discriminator_forward.26} parent=15 // pred_region
          %s162 = sld [smem:[#allocation3 + %s24]]
          %p163 = scmp.lt.s32.totalorder %s162, 4
          %s164 = scalar_select %p163, %s162, 4
          %s165 = smul.addr %s164, 12
          %s166 = smul.addr %s165, 4
          %s167 = scalar_lea.vmem %s1, %s166
          %s168 = sld [smem:[#allocation3 + %s24]]
        $region20: #{multi_resolution_discriminator_forward.26} parent=15 // pred_fallthru
          _
        // Predicated region
        $region21: #{multi_resolution_discriminator_forward.26} parent=15 // pred_check
          %p169 = pneg %p78
        $region22: #{multi_resolution_discriminator_forward.26} parent=15 // pred_check_branch
          %171 = sbr.rel (%p169) target = $region24
        $region23: #{multi_resolution_discriminator_forward.26} parent=15 // pred_region
          %s172 = sand.u32 %s68, 1
          %s173 = sand.u32 %s68, 1
          %s174 = smul.addr %s173, 144
          %s175 = scalar_lea.vmem [#allocation4], %s174
          %s176 = smul.addr %s23, 180
          %s177 = sadd.s32 %s24, %s176
          %s178 = smul.addr %s177, 4
          %s179 = scalar_lea.vmem %s2, %s178
          // Predicated region
          $region25: #{multi_resolution_discriminator_forward.26} parent=23 // pred_check
            _
          $region26: #{multi_resolution_discriminator_forward.26} parent=23 // pred_check_branch
            %181 = sbr.rel (0) target = $region28
          $region27: #{multi_resolution_discriminator_forward.26} parent=23 // pred_region
            // Predicated region
            $region29: #{multi_resolution_discriminator_forward.26} parent=27 // pred_check
              _
            $region30: #{multi_resolution_discriminator_forward.26} parent=27 // pred_check_branch
              %183 = sbr.rel target = $region32
            $region31: #{multi_resolution_discriminator_forward.26} parent=27 // pred_region
              // Predicated region
              $region44: #{multi_resolution_discriminator_forward.26} parent=31 // pred_check
                _
              $region45: #{multi_resolution_discriminator_forward.26} parent=31 // pred_check_branch
                %269 = sbr.rel (0) target = $region47
              $region46: #{multi_resolution_discriminator_forward.26} parent=31 // pred_region
                loop: start=0, step=1, limit=1
                $region48: #{multi_resolution_discriminator_forward.26} parent=46 // loop_pre_header
                  _
                $region49: #{multi_resolution_discriminator_forward.26} parent=46 // loop_header
                  %s271 = sphi 0, %s275
                  %p272 = scmp.ge.s32.totalorder %s271, 1
                  %s276 = sphi %s179, %s179
                  %s277 = sphi %s175, %s175
                $region50: #{multi_resolution_discriminator_forward.26} parent=46 // loop_header_branch
                  %274 = sbr.rel (%p272) target = $region54
                $region51: #{multi_resolution_discriminator_forward.26} parent=46 // loop_body
                  _
                $region52: #{multi_resolution_discriminator_forward.26} parent=46 // loop_footer
                  %s275 = sadd.s32 1, %s271
                $region53: #{multi_resolution_discriminator_forward.26} parent=46 // loop_footer_branch
                  %270 = sbr.rel target = $region49
                $region54: #{multi_resolution_discriminator_forward.26} parent=46 // loop_exit
                  _
                %s279 = ssub.s32 16, 1
                loop: start=0, step=1, limit=1
                $region55: #{multi_resolution_discriminator_forward.26} parent=46 // loop_pre_header
                  _
                $region56: #{multi_resolution_discriminator_forward.26} parent=46 // loop_header
                  %s281 = sphi 0, %s285
                  %p282 = scmp.ge.s32.totalorder %s281, 1
                  %s286 = sphi %s179, %s179
                  %s287 = sphi %s175, %s175
                $region57: #{multi_resolution_discriminator_forward.26} parent=46 // loop_header_branch
                  %284 = sbr.rel (%p282) target = $region61
                $region58: #{multi_resolution_discriminator_forward.26} parent=46 // loop_body
                  %v288 = vld [vmem:[%s286] sm:%s279]
                  %289 = vst [vmem:[%s287] sm:%s279] %v288
                  %v290 = vld [vmem:[%s286 + $0x14] sm:%s279]
                  %291 = vst [vmem:[%s287 + $0x4] sm:%s279] %v290
                  %v292 = vld [vmem:[%s286 + $0x28] sm:%s279]
                  %293 = vst [vmem:[%s287 + $0x8] sm:%s279] %v292
                  %v294 = vld [vmem:[%s286 + $0x3c] sm:%s279]
                  %295 = vst [vmem:[%s287 + $0xc] sm:%s279] %v294
                  %v296 = vld [vmem:[%s286 + $0x50] sm:%s279]
                  %297 = vst [vmem:[%s287 + $0x10] sm:%s279] %v296
                  %v298 = vld [vmem:[%s286 + $0x64] sm:%s279]
                  %299 = vst [vmem:[%s287 + $0x14] sm:%s279] %v298
                  %v300 = vld [vmem:[%s286 + $0x78] sm:%s279]
                  %301 = vst [vmem:[%s287 + $0x18] sm:%s279] %v300
                  %v302 = vld [vmem:[%s286 + $0x8c] sm:%s279]
                  %303 = vst [vmem:[%s287 + $0x1c] sm:%s279] %v302
                  %v304 = vld [vmem:[%s286 + $0xa0] sm:%s279]
                  %305 = vst [vmem:[%s287 + $0x20] sm:%s279] %v304
                  %v306 = vld [vmem:[%s286 + $0xb4] sm:%s279]
                  %307 = vst [vmem:[%s287 + $0x24] sm:%s279] %v306
                  %v308 = vld [vmem:[%s286 + $0xc8] sm:%s279]
                  %309 = vst [vmem:[%s287 + $0x28] sm:%s279] %v308
                  %v310 = vld [vmem:[%s286 + $0xdc] sm:%s279]
                  %311 = vst [vmem:[%s287 + $0x2c] sm:%s279] %v310
                  %v312 = vld [vmem:[%s286 + $0xf0] sm:%s279]
                  %313 = vst [vmem:[%s287 + $0x30] sm:%s279] %v312
                  %v314 = vld [vmem:[%s286 + $0x104] sm:%s279]
                  %315 = vst [vmem:[%s287 + $0x34] sm:%s279] %v314
                  %v316 = vld [vmem:[%s286 + $0x118] sm:%s279]
                  %317 = vst [vmem:[%s287 + $0x38] sm:%s279] %v316
                  %v318 = vld [vmem:[%s286 + $0x12c] sm:%s279]
                  %319 = vst [vmem:[%s287 + $0x3c] sm:%s279] %v318
                  %v320 = vld [vmem:[%s286 + $0x140] sm:%s279]
                  %321 = vst [vmem:[%s287 + $0x40] sm:%s279] %v320
                  %v322 = vld [vmem:[%s286 + $0x154] sm:%s279]
                  %323 = vst [vmem:[%s287 + $0x44] sm:%s279] %v322
                  %v324 = vld [vmem:[%s286 + $0x168] sm:%s279]
                  %325 = vst [vmem:[%s287 + $0x48] sm:%s279] %v324
                  %v326 = vld [vmem:[%s286 + $0x17c] sm:%s279]
                  %327 = vst [vmem:[%s287 + $0x4c] sm:%s279] %v326
                  %v328 = vld [vmem:[%s286 + $0x190] sm:%s279]
                  %329 = vst [vmem:[%s287 + $0x50] sm:%s279] %v328
                  %v330 = vld [vmem:[%s286 + $0x1a4] sm:%s279]
                  %331 = vst [vmem:[%s287 + $0x54] sm:%s279] %v330
                  %v332 = vld [vmem:[%s286 + $0x1b8] sm:%s279]
                  %333 = vst [vmem:[%s287 + $0x58] sm:%s279] %v332
                  %v334 = vld [vmem:[%s286 + $0x1cc] sm:%s279]
                  %335 = vst [vmem:[%s287 + $0x5c] sm:%s279] %v334
                  %v336 = vld [vmem:[%s286 + $0x1e0] sm:%s279]
                  %337 = vst [vmem:[%s287 + $0x60] sm:%s279] %v336
                  %v338 = vld [vmem:[%s286 + $0x1f4] sm:%s279]
                  %339 = vst [vmem:[%s287 + $0x64] sm:%s279] %v338
                  %v340 = vld [vmem:[%s286 + $0x208] sm:%s279]
                  %341 = vst [vmem:[%s287 + $0x68] sm:%s279] %v340
                  %v342 = vld [vmem:[%s286 + $0x21c] sm:%s279]
                  %343 = vst [vmem:[%s287 + $0x6c] sm:%s279] %v342
                  %v344 = vld [vmem:[%s286 + $0x230] sm:%s279]
                  %345 = vst [vmem:[%s287 + $0x70] sm:%s279] %v344
                  %v346 = vld [vmem:[%s286 + $0x244] sm:%s279]
                  %347 = vst [vmem:[%s287 + $0x74] sm:%s279] %v346
                  %v348 = vld [vmem:[%s286 + $0x258] sm:%s279]
                  %349 = vst [vmem:[%s287 + $0x78] sm:%s279] %v348
                  %v350 = vld [vmem:[%s286 + $0x26c] sm:%s279]
                  %351 = vst [vmem:[%s287 + $0x7c] sm:%s279] %v350
                  %v352 = vld [vmem:[%s286 + $0x280] sm:%s279]
                  %353 = vst [vmem:[%s287 + $0x80] sm:%s279] %v352
                  %v354 = vld [vmem:[%s286 + $0x294] sm:%s279]
                  %355 = vst [vmem:[%s287 + $0x84] sm:%s279] %v354
                  %v356 = vld [vmem:[%s286 + $0x2a8] sm:%s279]
                  %357 = vst [vmem:[%s287 + $0x88] sm:%s279] %v356
                  %v358 = vld [vmem:[%s286 + $0x2bc] sm:%s279]
                  %359 = vst [vmem:[%s287 + $0x8c] sm:%s279] %v358
                $region59: #{multi_resolution_discriminator_forward.26} parent=46 // loop_footer
                  %s285 = sadd.s32 1, %s281
                $region60: #{multi_resolution_discriminator_forward.26} parent=46 // loop_footer_branch
                  %280 = sbr.rel target = $region56
                $region61: #{multi_resolution_discriminator_forward.26} parent=46 // loop_exit
                  _
              $region47: #{multi_resolution_discriminator_forward.26} parent=31 // pred_fallthru
                _
            $region32: #{multi_resolution_discriminator_forward.26} parent=27 // pred_fallthru
              _
            // Predicated region
            $region33: #{multi_resolution_discriminator_forward.26} parent=27 // pred_check
              _
            $region34: #{multi_resolution_discriminator_forward.26} parent=27 // pred_check_branch
              %185 = sbr.rel (0) target = $region36
            $region35: #{multi_resolution_discriminator_forward.26} parent=27 // pred_region
              %s187 = ssub.s32 16, 1
              loop: start=0, step=1, limit=1
              $region37: #{multi_resolution_discriminator_forward.26} parent=35 // loop_pre_header
                _
              $region38: #{multi_resolution_discriminator_forward.26} parent=35 // loop_header
                %s189 = sphi 0, %s193
                %p190 = scmp.ge.s32.totalorder %s189, 1
                %s194 = sphi %s179, %s179
                %s195 = sphi %s175, %s175
              $region39: #{multi_resolution_discriminator_forward.26} parent=35 // loop_header_branch
                %192 = sbr.rel (%p190) target = $region43
              $region40: #{multi_resolution_discriminator_forward.26} parent=35 // loop_body
                %v196 = vld [vmem:[%s194] sm:%s187]
                %197 = vst [vmem:[%s195] sm:%s187] %v196
                %v198 = vld [vmem:[%s194 + $0x14] sm:%s187]
                %199 = vst [vmem:[%s195 + $0x4] sm:%s187] %v198
                %v200 = vld [vmem:[%s194 + $0x28] sm:%s187]
                %201 = vst [vmem:[%s195 + $0x8] sm:%s187] %v200
                %v202 = vld [vmem:[%s194 + $0x3c] sm:%s187]
                %203 = vst [vmem:[%s195 + $0xc] sm:%s187] %v202
                %v204 = vld [vmem:[%s194 + $0x50] sm:%s187]
                %205 = vst [vmem:[%s195 + $0x10] sm:%s187] %v204
                %v206 = vld [vmem:[%s194 + $0x64] sm:%s187]
                %207 = vst [vmem:[%s195 + $0x14] sm:%s187] %v206
                %v208 = vld [vmem:[%s194 + $0x78] sm:%s187]
                %209 = vst [vmem:[%s195 + $0x18] sm:%s187] %v208
                %v210 = vld [vmem:[%s194 + $0x8c] sm:%s187]
                %211 = vst [vmem:[%s195 + $0x1c] sm:%s187] %v210
                %v212 = vld [vmem:[%s194 + $0xa0] sm:%s187]
                %213 = vst [vmem:[%s195 + $0x20] sm:%s187] %v212
                %v214 = vld [vmem:[%s194 + $0xb4] sm:%s187]
                %215 = vst [vmem:[%s195 + $0x24] sm:%s187] %v214
                %v216 = vld [vmem:[%s194 + $0xc8] sm:%s187]
                %217 = vst [vmem:[%s195 + $0x28] sm:%s187] %v216
                %v218 = vld [vmem:[%s194 + $0xdc] sm:%s187]
                %219 = vst [vmem:[%s195 + $0x2c] sm:%s187] %v218
                %v220 = vld [vmem:[%s194 + $0xf0] sm:%s187]
                %221 = vst [vmem:[%s195 + $0x30] sm:%s187] %v220
                %v222 = vld [vmem:[%s194 + $0x104] sm:%s187]
                %223 = vst [vmem:[%s195 + $0x34] sm:%s187] %v222
                %v224 = vld [vmem:[%s194 + $0x118] sm:%s187]
                %225 = vst [vmem:[%s195 + $0x38] sm:%s187] %v224
                %v226 = vld [vmem:[%s194 + $0x12c] sm:%s187]
                %227 = vst [vmem:[%s195 + $0x3c] sm:%s187] %v226
                %v228 = vld [vmem:[%s194 + $0x140] sm:%s187]
                %229 = vst [vmem:[%s195 + $0x40] sm:%s187] %v228
                %v230 = vld [vmem:[%s194 + $0x154] sm:%s187]
                %231 = vst [vmem:[%s195 + $0x44] sm:%s187] %v230
                %v232 = vld [vmem:[%s194 + $0x168] sm:%s187]
                %233 = vst [vmem:[%s195 + $0x48] sm:%s187] %v232
                %v234 = vld [vmem:[%s194 + $0x17c] sm:%s187]
                %235 = vst [vmem:[%s195 + $0x4c] sm:%s187] %v234
                %v236 = vld [vmem:[%s194 + $0x190] sm:%s187]
                %237 = vst [vmem:[%s195 + $0x50] sm:%s187] %v236
                %v238 = vld [vmem:[%s194 + $0x1a4] sm:%s187]
                %239 = vst [vmem:[%s195 + $0x54] sm:%s187] %v238
                %v240 = vld [vmem:[%s194 + $0x1b8] sm:%s187]
                %241 = vst [vmem:[%s195 + $0x58] sm:%s187] %v240
                %v242 = vld [vmem:[%s194 + $0x1cc] sm:%s187]
                %243 = vst [vmem:[%s195 + $0x5c] sm:%s187] %v242
                %v244 = vld [vmem:[%s194 + $0x1e0] sm:%s187]
                %245 = vst [vmem:[%s195 + $0x60] sm:%s187] %v244
                %v246 = vld [vmem:[%s194 + $0x1f4] sm:%s187]
                %247 = vst [vmem:[%s195 + $0x64] sm:%s187] %v246
                %v248 = vld [vmem:[%s194 + $0x208] sm:%s187]
                %249 = vst [vmem:[%s195 + $0x68] sm:%s187] %v248
                %v250 = vld [vmem:[%s194 + $0x21c] sm:%s187]
                %251 = vst [vmem:[%s195 + $0x6c] sm:%s187] %v250
                %v252 = vld [vmem:[%s194 + $0x230] sm:%s187]
                %253 = vst [vmem:[%s195 + $0x70] sm:%s187] %v252
                %v254 = vld [vmem:[%s194 + $0x244] sm:%s187]
                %255 = vst [vmem:[%s195 + $0x74] sm:%s187] %v254
                %v256 = vld [vmem:[%s194 + $0x258] sm:%s187]
                %257 = vst [vmem:[%s195 + $0x78] sm:%s187] %v256
                %v258 = vld [vmem:[%s194 + $0x26c] sm:%s187]
                %259 = vst [vmem:[%s195 + $0x7c] sm:%s187] %v258
                %v260 = vld [vmem:[%s194 + $0x280] sm:%s187]
                %261 = vst [vmem:[%s195 + $0x80] sm:%s187] %v260
                %v262 = vld [vmem:[%s194 + $0x294] sm:%s187]
                %263 = vst [vmem:[%s195 + $0x84] sm:%s187] %v262
                %v264 = vld [vmem:[%s194 + $0x2a8] sm:%s187]
                %265 = vst [vmem:[%s195 + $0x88] sm:%s187] %v264
                %v266 = vld [vmem:[%s194 + $0x2bc] sm:%s187]
                %267 = vst [vmem:[%s195 + $0x8c] sm:%s187] %v266
              $region41: #{multi_resolution_discriminator_forward.26} parent=35 // loop_footer
                %s193 = sadd.s32 1, %s189
              $region42: #{multi_resolution_discriminator_forward.26} parent=35 // loop_footer_branch
                %188 = sbr.rel target = $region38
              $region43: #{multi_resolution_discriminator_forward.26} parent=35 // loop_exit
                _
            $region36: #{multi_resolution_discriminator_forward.26} parent=27 // pred_fallthru
              _
          $region28: #{multi_resolution_discriminator_forward.26} parent=23 // pred_fallthru
            _
          %360 = vnop
        $region24: #{multi_resolution_discriminator_forward.26} parent=15 // pred_fallthru
          _
        // Predicated region
        $region62: #{multi_resolution_discriminator_forward.26} parent=15 // pred_check
          %p361 = pneg %p106
        $region63: #{multi_resolution_discriminator_forward.26} parent=15 // pred_check_branch
          %363 = sbr.rel (%p361) target = $region65
        $region64: #{multi_resolution_discriminator_forward.26} parent=15 // pred_region
          %s364 = sld [smem:[#allocation3 + %s24]]
          %p365 = scmp.lt.s32.totalorder %s364, 4
          %s366 = scalar_select %p365, %s364, 4
          %s367 = smul.addr %s366, 4
          %s368 = smul.addr %s367, 8
          %s369 = scalar_lea.vmem %s3, %s368
          %s370 = sld [smem:[#allocation3 + %s24]]
        $region65: #{multi_resolution_discriminator_forward.26} parent=15 // pred_fallthru
          _
      $region16: #{multi_resolution_discriminator_forward.26} parent=5 // pred_fallthru
        _
      %p371 = scmp.le.s32.totalorder 1, %s16
      %p372 = scmp.lt.s32.totalorder %s16, 21
      %p373 = pnand %p371, %p372
      %p374 = pneg %p373
      // Predicated region
      $region66: #{multi_resolution_discriminator_forward.26} parent=5 // pred_check
        _
      $region67: #{multi_resolution_discriminator_forward.26} parent=5 // pred_check_branch
        %376 = sbr.rel (%p373) target = $region69
      $region68: #{multi_resolution_discriminator_forward.26} parent=5 // pred_region
        %s377 = ssub.s32 %s16, 1
        %s378 = sand.u32 %s71, 1
        %s379 = sand.u32 %s71, 1
        %s380 = smul.addr %s379, 144
        %s381 = scalar_lea.vmem [#allocation4], %s380
        // Predicated region
        $region70: #{multi_resolution_discriminator_forward.26} parent=68 // pred_check
          %p382 = pneg %p84
        $region71: #{multi_resolution_discriminator_forward.26} parent=68 // pred_check_branch
          %384 = sbr.rel (%p382) target = $region73
        $region72: #{multi_resolution_discriminator_forward.26} parent=68 // pred_region
          _
        $region73: #{multi_resolution_discriminator_forward.26} parent=68 // pred_fallthru
          _
        %s385 = sld [smem:[#allocation3 + %s26]]
        %p386 = scmp.lt.s32.totalorder %s385, 4
        %s387 = scalar_select %p386, %s385, 4
        %s388 = smul.addr %s387, 12
        %s389 = smul.addr %s388, 4
        %s390 = scalar_lea.vmem %s1, %s389
        %p391 = pneg %p56
        %p392 = pneg %p53
        %s393 = sand.u32 %s71, 1
        %s394 = sand.u32 %s71, 1
        %s395 = smul.addr %s394, 144
        %s396 = scalar_lea.vmem [#allocation4], %s395
        %p397 = pneg %p84
        %p398 = pneg %p81
        %s399 = sld [smem:[#allocation3 + %s26]]
        %p400 = scmp.lt.s32.totalorder %s399, 4
        %s401 = scalar_select %p400, %s399, 4
        %s402 = smul.addr %s401, 4
        %s403 = smul.addr %s402, 8
        %s404 = scalar_lea.vmem %s3, %s403
        %p405 = pneg %p112
        %p406 = pneg %p109
        %p407 = pneg %p140
        %p408 = pneg %p137
        %s409 = sand.u32 %s127, 1
        %s410 = sand.u32 %s127, 1
        %s411 = smul.addr %s410, 16
        %s412 = scalar_lea.vmem [#allocation5], %s411
        %s413 = sld [smem:[#allocation3 + %s26]]
        %p414 = scmp.lt.s32.totalorder %s413, 4
        %s415 = scalar_select %p414, %s413, 4
        %s416 = smul.addr %s415, 12
        %s417 = smul.addr %s416, 4
        %s418 = scalar_lea.vmem %s1, %s417
        %s419 = sld [smem:[#allocation3 + %s26]]
        %s420 = sld [smem:[#allocation3 + %s26]]
        %p421 = scmp.lt.s32.totalorder %s420, 4
        %s422 = scalar_select %p421, %s420, 4
        %s423 = smul.addr %s422, 4
        %s424 = smul.addr %s423, 8
        %s425 = scalar_lea.vmem %s3, %s424
        %s426 = sld [smem:[#allocation3 + %s26]]
        %v428 = vld [vmem:[%s418] sm:$0xff]
        %v429 = vld [vmem:[%s418 + $0x8] sm:$0xf]
        %v430 = vld [vmem:[%s418 + $0xc] sm:$0xff]
        %v431 = vld [vmem:[%s418 + $0x14] sm:$0xf]
        %v432 = vld [vmem:[%s418 + $0x18] sm:$0xff]
        %v433 = vld [vmem:[%s418 + $0x20] sm:$0xf]
        %v434 = vld [vmem:[%s418 + $0x24] sm:$0xff]
        %v435 = vld [vmem:[%s418 + $0x2c] sm:$0xf]
        %v436 = vld [vmem:[%s381] sm:$0xf]
        %v437 = vld [vmem:[%s381 + $0x4] sm:$0xf]
        %v438 = vld [vmem:[%s381 + $0x8] sm:$0xf]
        %v439 = vld [vmem:[%s381 + $0xc] sm:$0xf]
        %v440 = vld [vmem:[%s381 + $0x10] sm:$0xf]
        %v441 = vld [vmem:[%s381 + $0x14] sm:$0xf]
        %v442 = vld [vmem:[%s381 + $0x18] sm:$0xf]
        %v443 = vld [vmem:[%s381 + $0x1c] sm:$0xf]
        %v444 = vld [vmem:[%s381 + $0x20] sm:$0xf]
        %v445 = vld [vmem:[%s381 + $0x24] sm:$0xf]
        %v446 = vld [vmem:[%s381 + $0x28] sm:$0xf]
        %v447 = vld [vmem:[%s381 + $0x2c] sm:$0xf]
        %v448 = vld [vmem:[%s381 + $0x30] sm:$0xf]
        %v449 = vld [vmem:[%s381 + $0x34] sm:$0xf]
        %v450 = vld [vmem:[%s381 + $0x38] sm:$0xf]
        %v451 = vld [vmem:[%s381 + $0x3c] sm:$0xf]
        %v452 = vld [vmem:[%s381 + $0x40] sm:$0xf]
        %v453 = vld [vmem:[%s381 + $0x44] sm:$0xf]
        %v454 = vld [vmem:[%s381 + $0x48] sm:$0xf]
        %v455 = vld [vmem:[%s381 + $0x4c] sm:$0xf]
        %v456 = vld [vmem:[%s381 + $0x50] sm:$0xf]
        %v457 = vld [vmem:[%s381 + $0x54] sm:$0xf]
        %v458 = vld [vmem:[%s381 + $0x58] sm:$0xf]
        %v459 = vld [vmem:[%s381 + $0x5c] sm:$0xf]
        %v460 = vld [vmem:[%s381 + $0x60] sm:$0xf]
        %v461 = vld [vmem:[%s381 + $0x64] sm:$0xf]
        %v462 = vld [vmem:[%s381 + $0x68] sm:$0xf]
        %v463 = vld [vmem:[%s381 + $0x6c] sm:$0xf]
        %v464 = vld [vmem:[%s381 + $0x70] sm:$0xf]
        %v465 = vld [vmem:[%s381 + $0x74] sm:$0xf]
        %v466 = vld [vmem:[%s381 + $0x78] sm:$0xf]
        %v467 = vld [vmem:[%s381 + $0x7c] sm:$0xf]
        %v468 = vld [vmem:[%s381 + $0x80] sm:$0xf]
        %v469 = vld [vmem:[%s381 + $0x84] sm:$0xf]
        %v470 = vld [vmem:[%s381 + $0x88] sm:$0xf]
        %v471 = vld [vmem:[%s381 + $0x8c] sm:$0xf]
        %v472 = vld [vmem:[%s425] sm:$0xff]
        %v473 = vld [vmem:[%s425 + $0x8] sm:$0xff]
        %v474 = vld [vmem:[%s425 + $0x10] sm:$0xff]
        %v475 = vld [vmem:[%s425 + $0x18] sm:$0xff]
        %477 = vset.pattern.permute.xlu0 0
        %478 = vperm.xlu0 %477, %v472
        %v479 = vpop.permute.xlu0 %478
        %482 = vset.pattern.permute.xlu0 0
        %483 = vperm.xlu0 %482, %v473
        %v484 = vpop.permute.xlu0 %483
        %487 = vset.pattern.permute.xlu0 0
        %488 = vperm.xlu0 %487, %v474
        %v489 = vpop.permute.xlu0 %488
        %492 = vset.pattern.permute.xlu0 0
        %493 = vperm.xlu0 %492, %v475
        %v494 = vpop.permute.xlu0 %493
        %v504 = vunpack.c.l.b16 %v428
        %v505 = vunpack.c.h.b16 %v428
        %v506 = vunpack.c.l.b16 %v429
        %v507 = vunpack.c.l.b16 %v430
        %v508 = vunpack.c.h.b16 %v430
        %v509 = vunpack.c.l.b16 %v431
        %v510 = vunpack.c.l.b16 %v432
        %v511 = vunpack.c.h.b16 %v432
        %v512 = vunpack.c.l.b16 %v433
        %v513 = vunpack.c.l.b16 %v434
        %v514 = vunpack.c.h.b16 %v434
        %v515 = vunpack.c.l.b16 %v435
        %v516 = vpack.c.b16 %v507, %v504
        %v517 = vpack.c.b16 %v508, %v505
        %v518 = vpack.c.b16 %v509, %v506
        %v519 = vpack.c.b16 %v513, %v510
        %v520 = vpack.c.b16 %v514, %v511
        %v521 = vpack.c.b16 %v515, %v512
        %v562 = vunpack.c.l.b16 %v436
        %v563 = vunpack.c.l.b16 %v437
        %v564 = vunpack.c.l.b16 %v438
        %v565 = vunpack.c.l.b16 %v439
        %v566 = vunpack.c.l.b16 %v440
        %v567 = vunpack.c.l.b16 %v441
        %v568 = vunpack.c.l.b16 %v442
        %v569 = vunpack.c.l.b16 %v443
        %v570 = vunpack.c.l.b16 %v444
        %v571 = vunpack.c.l.b16 %v445
        %v572 = vunpack.c.l.b16 %v446
        %v573 = vunpack.c.l.b16 %v447
        %v574 = vunpack.c.l.b16 %v448
        %v575 = vunpack.c.l.b16 %v449
        %v576 = vunpack.c.l.b16 %v450
        %v577 = vunpack.c.l.b16 %v451
        %v578 = vunpack.c.l.b16 %v452
        %v579 = vunpack.c.l.b16 %v453
        %v580 = vunpack.c.l.b16 %v454
        %v581 = vunpack.c.l.b16 %v455
        %v582 = vunpack.c.l.b16 %v456
        %v583 = vunpack.c.l.b16 %v457
        %v584 = vunpack.c.l.b16 %v458
        %v585 = vunpack.c.l.b16 %v459
        %v586 = vunpack.c.l.b16 %v460
        %v587 = vunpack.c.l.b16 %v461
        %v588 = vunpack.c.l.b16 %v462
        %v589 = vunpack.c.l.b16 %v463
        %v590 = vunpack.c.l.b16 %v464
        %v591 = vunpack.c.l.b16 %v465
        %v592 = vunpack.c.l.b16 %v466
        %v593 = vunpack.c.l.b16 %v467
        %v594 = vunpack.c.l.b16 %v468
        %v595 = vunpack.c.l.b16 %v469
        %v596 = vunpack.c.l.b16 %v470
        %v597 = vunpack.c.l.b16 %v471
        %v598 = vpack.c.b16 %v563, %v562
        %v599 = vpack.c.b16 %v565, %v564
        %v600 = vpack.c.b16 %v567, %v566
        %v601 = vpack.c.b16 %v569, %v568
        %v602 = vpack.c.b16 %v571, %v570
        %v603 = vpack.c.b16 %v573, %v572
        %v604 = vpack.c.b16 %v575, %v574
        %v605 = vpack.c.b16 %v577, %v576
        %v606 = vpack.c.b16 %v579, %v578
        %v607 = vpack.c.b16 %v581, %v580
        %v608 = vpack.c.b16 %v583, %v582
        %v609 = vpack.c.b16 %v585, %v584
        %v610 = vpack.c.b16 %v587, %v586
        %v611 = vpack.c.b16 %v589, %v588
        %v612 = vpack.c.b16 %v591, %v590
        %v613 = vpack.c.b16 %v593, %v592
        %v614 = vpack.c.b16 %v595, %v594
        %v615 = vpack.c.b16 %v597, %v596
        %vm634 = vcmask 261120
        %v636 = vsel %vm634, %v518, 0
        %v639 = vsel %vm634, %v521, 0
        %641 = vmatprep.subr.bf16.mxu0 0
        %642 = vmatpush1.bf16.msra.mxu0 %v605
        %643 = vmatprep.subr.bf16.mxu0 0
        %644 = vmatpush1.bf16.msra.mxu0 %v604
        %645 = vmatprep.subr.bf16.mxu0 0
        %646 = vmatpush1.bf16.msra.mxu0 %v603
        %647 = vmatprep.subr.bf16.mxu0 0
        %648 = vmatpush1.bf16.msra.mxu0 %v602
        %649 = vmatprep.subr.bf16.mxu0 0
        %650 = vmatpush1.bf16.msra.mxu0 %v601
        %651 = vmatprep.subr.bf16.mxu0 0
        %652 = vmatpush1.bf16.msra.mxu0 %v600
        %653 = vmatprep.subr.bf16.mxu0 0
        %654 = vmatpush1.bf16.msra.mxu0 %v599
        %655 = vmatprep.subr.bf16.mxu0 0
        %656 = vmatpush1.bf16.msra.mxu0 %v598
        %657 = vmatprep.subr.bf16.mxu0 0
        %658 = vmatpush2.bf16.msra.mxu0 %v613
        %659 = vmatprep.subr.bf16.mxu0 0
        %660 = vmatpush2.bf16.msra.mxu0 %v612
        %661 = vmatprep.subr.bf16.mxu0 0
        %662 = vmatpush2.bf16.msra.mxu0 %v611
        %663 = vmatprep.subr.bf16.mxu0 0
        %664 = vmatpush2.bf16.msra.mxu0 %v610
        %665 = vmatprep.subr.bf16.mxu0 0
        %666 = vmatpush2.bf16.msra.mxu0 %v609
        %667 = vmatprep.subr.bf16.mxu0 0
        %668 = vmatpush2.bf16.msra.mxu0 %v608
        %669 = vmatprep.subr.bf16.mxu0 0
        %670 = vmatpush2.bf16.msra.mxu0 %v607
        %671 = vmatprep.subr.bf16.mxu0 0
        %672 = vmatpush2.bf16.msra.mxu0 %v606
        %673 = vmatprep.mubr.bf16.mxu0 %v517
        %674 = vmatmul.mubr.bf16.gmra.mxu0 %v516
        %v675 = vpop.f32.mrf.mxu0
        %v676 = vadd.f32 %v479, %v675
        %v677 = vpop.f32.mrf.mxu0
        %v678 = vpop.f32.mrf.mxu0
        %v679 = vadd.f32 %v484, %v678
        %v680 = vpop.f32.mrf.mxu0
        %681 = vmatprep.mubr.bf16.mxu0 %v520
        %682 = vmatmul.mubr.bf16.gmra.mxu0 %v519
        %v683 = vpop.f32.mrf.mxu0
        %v684 = vadd.f32 %v489, %v683
        %v685 = vpop.f32.mrf.mxu0
        %v686 = vpop.f32.mrf.mxu0
        %v687 = vadd.f32 %v494, %v686
        %v688 = vpop.f32.mrf.mxu0
        %689 = vdwg.mxu0
        %690 = vmatprep.subr.bf16.mxu0 0
        %691 = vmatpush1.bf16.msra.mxu0 0
        %692 = vmatprep.subr.bf16.mxu0 0
        %693 = vmatpush1.bf16.msra.mxu0 0
        %694 = vmatprep.subr.bf16.mxu0 0
        %695 = vmatpush1.bf16.msra.mxu0 0
        %696 = vmatprep.subr.bf16.mxu0 0
        %697 = vmatpush1.bf16.msra.mxu0 0
        %698 = vmatprep.subr.bf16.mxu0 0
        %699 = vmatpush1.bf16.msra.mxu0 0
        %700 = vmatprep.subr.bf16.mxu0 0
        %701 = vmatpush1.bf16.msra.mxu0 0
        %702 = vmatprep.subr.bf16.mxu0 0
        %703 = vmatpush1.bf16.msra.mxu0 %v615
        %704 = vmatprep.subr.bf16.mxu0 0
        %705 = vmatpush1.bf16.msra.mxu0 %v614
        %706 = vmatprep.subr.bf16.mxu0 0
        %707 = vmatpush2.bf16.msra.mxu0 0
        %708 = vmatprep.subr.bf16.mxu0 0
        %709 = vmatpush2.bf16.msra.mxu0 0
        %710 = vmatprep.subr.bf16.mxu0 0
        %711 = vmatpush2.bf16.msra.mxu0 0
        %712 = vmatprep.subr.bf16.mxu0 0
        %713 = vmatpush2.bf16.msra.mxu0 0
        %714 = vmatprep.subr.bf16.mxu0 0
        %715 = vmatpush2.bf16.msra.mxu0 0
        %716 = vmatprep.subr.bf16.mxu0 0
        %717 = vmatpush2.bf16.msra.mxu0 0
        %718 = vmatprep.subr.bf16.mxu0 0
        %719 = vmatpush2.bf16.msra.mxu0 0
        %720 = vmatprep.subr.bf16.mxu0 0
        %721 = vmatpush2.bf16.msra.mxu0 0
        %722 = vmatprep.mubr.bf16.mxu0 0
        %723 = vmatmul.mubr.bf16.gmra.mxu0 %v636
        %v724 = vpop.f32.mrf.mxu0
        %v725 = vadd.f32 %v676, %v724
        %v726 = vpop.f32.mrf.mxu0
        %v727 = vpop.f32.mrf.mxu0
        %v728 = vadd.f32 %v679, %v727
        %v729 = vpop.f32.mrf.mxu0
        %730 = vmatprep.mubr.bf16.mxu0 0
        %731 = vmatmul.mubr.bf16.gmra.mxu0 %v639
        %v732 = vpop.f32.mrf.mxu0
        %v733 = vadd.f32 %v684, %v732
        %v734 = vpop.f32.mrf.mxu0
        %v735 = vpop.f32.mrf.mxu0
        %v736 = vadd.f32 %v687, %v735
        %v737 = vpop.f32.mrf.mxu0
        %738 = vdwg.mxu0
        %vm739 = vcmp.ge.f32.partialorder %v725, 0.0
        %vm740 = vcmp.ge.f32.partialorder %v728, 0.0
        %vm741 = vcmp.ge.f32.partialorder %v733, 0.0
        %vm742 = vcmp.ge.f32.partialorder %v736, 0.0
        %v743 = vmul.f32 %v725, 0.1
        %v744 = vmul.f32 %v728, 0.1
        %v745 = vmul.f32 %v733, 0.1
        %v746 = vmul.f32 %v736, 0.1
        %v747 = vsel %vm739, %v725, %v743
        %v748 = vsel %vm740, %v728, %v744
        %v749 = vsel %vm741, %v733, %v745
        %v750 = vsel %vm742, %v736, %v746
        %v751 = vpack.c.bf16 %v748, %v747
        %v752 = vpack.c.bf16 %v750, %v749
        %v755 = vunpack.c.l.b16 %v751
        %v756 = vunpack.c.h.b16 %v751
        %v757 = vunpack.c.l.b16 %v752
        %v758 = vunpack.c.h.b16 %v752
        %v759 = vpack.c.b16 %v755, %v755
        %v760 = vpack.c.b16 %v756, %v756
        %v761 = vpack.c.b16 %v757, %v757
        %v762 = vpack.c.b16 %v758, %v758
        %767 = vst [vmem:[%s412] sm:$0xf] %v759
        %768 = vst [vmem:[%s412 + $0x4] sm:$0xf] %v760
        %769 = vst [vmem:[%s412 + $0x8] sm:$0xf] %v761
        %770 = vst [vmem:[%s412 + $0xc] sm:$0xf] %v762
        %s771 = sand.u32 %s127, 1
        %s772 = sand.u32 %s127, 1
        %s773 = smul.addr %s772, 16
        %s774 = scalar_lea.vmem [#allocation5], %s773
        // Predicated region
        $region74: #{multi_resolution_discriminator_forward.26} parent=68 // pred_check
          %p775 = pneg %p137
        $region75: #{multi_resolution_discriminator_forward.26} parent=68 // pred_check_branch
          %777 = sbr.rel (%p775) target = $region77
        $region76: #{multi_resolution_discriminator_forward.26} parent=68 // pred_region
          %s778 = smul.addr %s25, 20
          %s779 = sadd.s32 %s26, %s778
          %s780 = smul.addr %s779, 4
          %s781 = scalar_lea.vmem %s4, %s780
          // Predicated region
          $region78: #{multi_resolution_discriminator_forward.26} parent=76 // pred_check
            _
          $region79: #{multi_resolution_discriminator_forward.26} parent=76 // pred_check_branch
            %783 = sbr.rel (0) target = $region81
          $region80: #{multi_resolution_discriminator_forward.26} parent=76 // pred_region
            // Predicated region
            $region82: #{multi_resolution_discriminator_forward.26} parent=80 // pred_check
              _
            $region83: #{multi_resolution_discriminator_forward.26} parent=80 // pred_check_branch
              %785 = sbr.rel target = $region85
            $region84: #{multi_resolution_discriminator_forward.26} parent=80 // pred_region
              // Predicated region
              $region97: #{multi_resolution_discriminator_forward.26} parent=84 // pred_check
                _
              $region98: #{multi_resolution_discriminator_forward.26} parent=84 // pred_check_branch
                %807 = sbr.rel (0) target = $region100
              $region99: #{multi_resolution_discriminator_forward.26} parent=84 // pred_region
                loop: start=0, step=1, limit=1
                $region101: #{multi_resolution_discriminator_forward.26} parent=99 // loop_pre_header
                  _
                $region102: #{multi_resolution_discriminator_forward.26} parent=99 // loop_header
                  %s809 = sphi 0, %s813
                  %p810 = scmp.ge.s32.totalorder %s809, 1
                  %s814 = sphi %s774, %s774
                  %s815 = sphi %s781, %s781
                $region103: #{multi_resolution_discriminator_forward.26} parent=99 // loop_header_branch
                  %812 = sbr.rel (%p810) target = $region107
                $region104: #{multi_resolution_discriminator_forward.26} parent=99 // loop_body
                  _
                $region105: #{multi_resolution_discriminator_forward.26} parent=99 // loop_footer
                  %s813 = sadd.s32 1, %s809
                $region106: #{multi_resolution_discriminator_forward.26} parent=99 // loop_footer_branch
                  %808 = sbr.rel target = $region102
                $region107: #{multi_resolution_discriminator_forward.26} parent=99 // loop_exit
                  _
                %s817 = ssub.s32 16, 1
                loop: start=0, step=1, limit=1
                $region108: #{multi_resolution_discriminator_forward.26} parent=99 // loop_pre_header
                  _
                $region109: #{multi_resolution_discriminator_forward.26} parent=99 // loop_header
                  %s819 = sphi 0, %s823
                  %p820 = scmp.ge.s32.totalorder %s819, 1
                  %s824 = sphi %s774, %s774
                  %s825 = sphi %s781, %s781
                $region110: #{multi_resolution_discriminator_forward.26} parent=99 // loop_header_branch
                  %822 = sbr.rel (%p820) target = $region114
                $region111: #{multi_resolution_discriminator_forward.26} parent=99 // loop_body
                  %v826 = vld [vmem:[%s824] sm:%s817]
                  %827 = vst [vmem:[%s825] sm:%s817] %v826
                  %v828 = vld [vmem:[%s824 + $0x4] sm:%s817]
                  %829 = vst [vmem:[%s825 + $0x14] sm:%s817] %v828
                  %v830 = vld [vmem:[%s824 + $0x8] sm:%s817]
                  %831 = vst [vmem:[%s825 + $0x28] sm:%s817] %v830
                  %v832 = vld [vmem:[%s824 + $0xc] sm:%s817]
                  %833 = vst [vmem:[%s825 + $0x3c] sm:%s817] %v832
                $region112: #{multi_resolution_discriminator_forward.26} parent=99 // loop_footer
                  %s823 = sadd.s32 1, %s819
                $region113: #{multi_resolution_discriminator_forward.26} parent=99 // loop_footer_branch
                  %818 = sbr.rel target = $region109
                $region114: #{multi_resolution_discriminator_forward.26} parent=99 // loop_exit
                  _
              $region100: #{multi_resolution_discriminator_forward.26} parent=84 // pred_fallthru
                _
            $region85: #{multi_resolution_discriminator_forward.26} parent=80 // pred_fallthru
              _
            // Predicated region
            $region86: #{multi_resolution_discriminator_forward.26} parent=80 // pred_check
              _
            $region87: #{multi_resolution_discriminator_forward.26} parent=80 // pred_check_branch
              %787 = sbr.rel (0) target = $region89
            $region88: #{multi_resolution_discriminator_forward.26} parent=80 // pred_region
              %s789 = ssub.s32 16, 1
              loop: start=0, step=1, limit=1
              $region90: #{multi_resolution_discriminator_forward.26} parent=88 // loop_pre_header
                _
              $region91: #{multi_resolution_discriminator_forward.26} parent=88 // loop_header
                %s791 = sphi 0, %s795
                %p792 = scmp.ge.s32.totalorder %s791, 1
                %s796 = sphi %s774, %s774
                %s797 = sphi %s781, %s781
              $region92: #{multi_resolution_discriminator_forward.26} parent=88 // loop_header_branch
                %794 = sbr.rel (%p792) target = $region96
              $region93: #{multi_resolution_discriminator_forward.26} parent=88 // loop_body
                %v798 = vld [vmem:[%s796] sm:%s789]
                %799 = vst [vmem:[%s797] sm:%s789] %v798
                %v800 = vld [vmem:[%s796 + $0x4] sm:%s789]
                %801 = vst [vmem:[%s797 + $0x14] sm:%s789] %v800
                %v802 = vld [vmem:[%s796 + $0x8] sm:%s789]
                %803 = vst [vmem:[%s797 + $0x28] sm:%s789] %v802
                %v804 = vld [vmem:[%s796 + $0xc] sm:%s789]
                %805 = vst [vmem:[%s797 + $0x3c] sm:%s789] %v804
              $region94: #{multi_resolution_discriminator_forward.26} parent=88 // loop_footer
                %s795 = sadd.s32 1, %s791
              $region95: #{multi_resolution_discriminator_forward.26} parent=88 // loop_footer_branch
                %790 = sbr.rel target = $region91
              $region96: #{multi_resolution_discriminator_forward.26} parent=88 // loop_exit
                _
            $region89: #{multi_resolution_discriminator_forward.26} parent=80 // pred_fallthru
              _
          $region81: #{multi_resolution_discriminator_forward.26} parent=76 // pred_fallthru
            _
          %834 = vnop
        $region77: #{multi_resolution_discriminator_forward.26} parent=68 // pred_fallthru
          _
      $region69: #{multi_resolution_discriminator_forward.26} parent=5 // pred_fallthru
        _
      %p835 = scmp.le.s32.totalorder 2, %s16
      // Predicated region
      $region115: #{multi_resolution_discriminator_forward.26} parent=5 // pred_check
        %p836 = pneg %p835
      $region116: #{multi_resolution_discriminator_forward.26} parent=5 // pred_check_branch
        %838 = sbr.rel (%p836) target = $region118
      $region117: #{multi_resolution_discriminator_forward.26} parent=5 // pred_region
        %s839 = ssub.s32 %s16, 2
        // Predicated region
        $region119: #{multi_resolution_discriminator_forward.26} parent=117 // pred_check
          %p840 = pneg %p143
        $region120: #{multi_resolution_discriminator_forward.26} parent=117 // pred_check_branch
          %842 = sbr.rel (%p840) target = $region122
        $region121: #{multi_resolution_discriminator_forward.26} parent=117 // pred_region
          %s843 = sand.u32 %s128, 1
          %s844 = sand.u32 %s128, 1
          %s845 = smul.addr %s844, 16
          %s846 = scalar_lea.vmem [#allocation5], %s845
        $region122: #{multi_resolution_discriminator_forward.26} parent=117 // pred_fallthru
          _
      $region118: #{multi_resolution_discriminator_forward.26} parent=5 // pred_fallthru
        _
    $region6: #{multi_resolution_discriminator_forward.26} parent=1 // loop_footer
      %s20 = sadd.s32 1, %s16
    $region7: #{multi_resolution_discriminator_forward.26} parent=1 // loop_footer_branch
      %15 = sbr.rel target = $region3
    $region8: #{multi_resolution_discriminator_forward.26} parent=1 // loop_exit
      _

// kernel: multi_resolution_discriminator_forward.27
$region0: #{multi_resolution_discriminator_forward.27}
  #allocation0 [shape = 'u32[]', space=smem, size = 0x4, offset = 0x4, fixed_abs, tag = 'smem constant byte address 0x4 - core index']
  #allocation1 [shape = 'u32[144,128]{1,0:T(1,128)}', space=vmem, size = 0x12000, scoped, tag = 'internal scratch']
  #allocation2 [shape = 's32[1]{0}', space=sflag, size = 0x4, scoped, tag = 'scoped memory for multi_resolution_discriminator_forward.27']
  #allocation3 [shape = 's32[1]{0:T(128)S(6)}', space=smem, size = 0x200, scoped, tag = 'prefetched SMEM operand 0']
  %s0 = inlined_call_operand.<no memory space> [shape: s32[1], index: 0, kind: input, shape index: {}]
  %s1 = inlined_call_operand.vmem [shape: bf16[1,8,288], index: 1, kind: input, shape index: {}]
  %s2 = inlined_call_operand.vmem [shape: bf16[4,288,256], index: 2, kind: input, shape index: {}]
  %s3 = inlined_call_operand.vmem [shape: f32[1,8,1], index: 3, kind: input, shape index: {}]
  %s4 = inlined_call_operand.vmem [shape: bf16[4,8,256], index: 4, kind: output, shape index: {}]
  %s5 = sld [smem:[#allocation0]]
  $region45: #{multi_resolution_discriminator_forward.27} parent=0
    _
  %s7 = ssub.s32 1, %s5
  %s8 = scalar_select 0, %s7, %s5
  %9 = sst [smem:[#allocation3]] %s0
  loop: start=0, step=1, limit=6
  $region2: #{multi_resolution_discriminator_forward.27} parent=0 // loop_pre_header
    _
  $region3: #{multi_resolution_discriminator_forward.27} parent=0 // loop_header
    %s11 = sphi 0, %s15
    %p12 = scmp.ge.s32.totalorder %s11, 6
    %s18 = sphi 0, %s30
    %s19 = sphi 0, %s26
    %s20 = sphi 0, %s18
    %s21 = sphi 0, %s19
    %s22 = sphi 0, %s20
    %s23 = sphi 0, %s21
    %s35 = sphi 0, %s37
    %s38 = sphi 0, %s35
    %s39 = sphi 0, %s38
    %s55 = sphi 0, %s39
    %s63 = sphi 0, %s65
    %s66 = sphi 0, %s63
    %s67 = sphi 0, %s66
    %s83 = sphi 0, %s67
    %s91 = sphi 0, %s93
    %s94 = sphi 0, %s91
    %s95 = sphi 0, %s94
    %s111 = sphi 0, %s95
    %s119 = sphi 0, %s121
    %s122 = sphi 0, %s119
    %s123 = sphi 0, %s122
    %s139 = sphi 0, %s123
  $region4: #{multi_resolution_discriminator_forward.27} parent=0 // loop_header_branch
    %14 = sbr.rel (%p12) target = $region8
  $region5: #{multi_resolution_discriminator_forward.27} parent=0 // loop_body
    %s16 = ssub.s32 %s11, 1
    %s17 = ssub.s32 %s11, 2
    %s24 = sadd.s32 1, %s19
    %p25 = scmp.ge.s32.totalorder %s24, 1
    %s26 = scalar_select %p25, 0, %s24
    %s27 = sadd.s32 1, %s18
    %s28 = scalar_select %p25, %s27, %s18
    %p29 = scmp.ge.s32.totalorder %s28, 4
    %s30 = scalar_select %p29, 0, %s28
    %s31 = sld [smem:[#allocation3 + %s19]]
    %s32 = sld [smem:[#allocation3 + %s26]]
    %s33 = ssub.s32 %s31, %s32
    %p34 = scmp.eq.s32.totalorder %s33, 0
    %s36 = sadd.s32 %s35, 1
    %s37 = scalar_select %p34, %s35, %s36
    %p40 = pneg %p34
    %p41 = scmp.eq.s32.totalorder %s11, 3
    %p42 = por %p40, %p41
    %p43 = scmp.ne.s32.totalorder %s35, %s38
    %p44 = scmp.eq.s32.totalorder %s11, 0
    %p45 = por %p43, %p44
    %p46 = scmp.ne.s32.totalorder %s35, %s38
    %p47 = scmp.eq.s32.totalorder %s16, 3
    %p48 = por %p46, %p47
    %p49 = scmp.ne.s32.totalorder %s38, %s39
    %p50 = scmp.eq.s32.totalorder %s16, 0
    %p51 = por %p49, %p50
    %p52 = scmp.ne.s32.totalorder %s38, %s39
    %p53 = scmp.eq.s32.totalorder %s17, 3
    %p54 = por %p52, %p53
    %p56 = scmp.ne.s32.totalorder %s39, %s55
    %p57 = scmp.eq.s32.totalorder %s17, 0
    %p58 = por %p56, %p57
    %s59 = ssub.s32 %s18, %s30
    %s60 = ssub.s32 %s19, %s26
    %s61 = sor.u32 %s59, %s60
    %p62 = scmp.eq.s32.totalorder %s61, 0
    %s64 = sadd.s32 %s63, 1
    %s65 = scalar_select %p62, %s63, %s64
    %p68 = pneg %p62
    %p69 = scmp.eq.s32.totalorder %s11, 3
    %p70 = por %p68, %p69
    %p71 = scmp.ne.s32.totalorder %s63, %s66
    %p72 = scmp.eq.s32.totalorder %s11, 0
    %p73 = por %p71, %p72
    %p74 = scmp.ne.s32.totalorder %s63, %s66
    %p75 = scmp.eq.s32.totalorder %s16, 3
    %p76 = por %p74, %p75
    %p77 = scmp.ne.s32.totalorder %s66, %s67
    %p78 = scmp.eq.s32.totalorder %s16, 0
    %p79 = por %p77, %p78
    %p80 = scmp.ne.s32.totalorder %s66, %s67
    %p81 = scmp.eq.s32.totalorder %s17, 3
    %p82 = por %p80, %p81
    %p84 = scmp.ne.s32.totalorder %s67, %s83
    %p85 = scmp.eq.s32.totalorder %s17, 0
    %p86 = por %p84, %p85
    %s87 = sld [smem:[#allocation3 + %s19]]
    %s88 = sld [smem:[#allocation3 + %s26]]
    %s89 = ssub.s32 %s87, %s88
    %p90 = scmp.eq.s32.totalorder %s89, 0
    %s92 = sadd.s32 %s91, 1
    %s93 = scalar_select %p90, %s91, %s92
    %p96 = pneg %p90
    %p97 = scmp.eq.s32.totalorder %s11, 3
    %p98 = por %p96, %p97
    %p99 = scmp.ne.s32.totalorder %s91, %s94
    %p100 = scmp.eq.s32.totalorder %s11, 0
    %p101 = por %p99, %p100
    %p102 = scmp.ne.s32.totalorder %s91, %s94
    %p103 = scmp.eq.s32.totalorder %s16, 3
    %p104 = por %p102, %p103
    %p105 = scmp.ne.s32.totalorder %s94, %s95
    %p106 = scmp.eq.s32.totalorder %s16, 0
    %p107 = por %p105, %p106
    %p108 = scmp.ne.s32.totalorder %s94, %s95
    %p109 = scmp.eq.s32.totalorder %s17, 3
    %p110 = por %p108, %p109
    %p112 = scmp.ne.s32.totalorder %s95, %s111
    %p113 = scmp.eq.s32.totalorder %s17, 0
    %p114 = por %p112, %p113
    %s115 = ssub.s32 %s18, %s30
    %s116 = ssub.s32 %s19, %s26
    %s117 = sor.u32 %s115, %s116
    %p118 = scmp.eq.s32.totalorder %s117, 0
    %s120 = sadd.s32 %s119, 1
    %s121 = scalar_select %p118, %s119, %s120
    %p124 = pneg %p118
    %p125 = scmp.eq.s32.totalorder %s11, 3
    %p126 = por %p124, %p125
    %p127 = scmp.ne.s32.totalorder %s119, %s122
    %p128 = scmp.eq.s32.totalorder %s11, 0
    %p129 = por %p127, %p128
    %p130 = scmp.ne.s32.totalorder %s119, %s122
    %p131 = scmp.eq.s32.totalorder %s16, 3
    %p132 = por %p130, %p131
    %p133 = scmp.ne.s32.totalorder %s122, %s123
    %p134 = scmp.eq.s32.totalorder %s16, 0
    %p135 = por %p133, %p134
    %p136 = scmp.ne.s32.totalorder %s122, %s123
    %p137 = scmp.eq.s32.totalorder %s17, 3
    %p138 = por %p136, %p137
    %p140 = scmp.ne.s32.totalorder %s123, %s139
    %p141 = scmp.eq.s32.totalorder %s17, 0
    %p142 = por %p140, %p141
    %p143 = scmp.le.s32.totalorder 1, %s11
    %p144 = scmp.lt.s32.totalorder %s11, 5
    %p145 = pnand %p143, %p144
    %p146 = pneg %p145
    // Predicated region
    $region9: #{multi_resolution_discriminator_forward.27} parent=5 // pred_check
      _
    $region10: #{multi_resolution_discriminator_forward.27} parent=5 // pred_check_branch
      %148 = sbr.rel (%p145) target = $region12
    $region11: #{multi_resolution_discriminator_forward.27} parent=5 // pred_region
      %s149 = ssub.s32 %s11, 1
      // Predicated region
      $region13: #{multi_resolution_discriminator_forward.27} parent=11 // pred_check
        %p150 = pneg %p51
      $region14: #{multi_resolution_discriminator_forward.27} parent=11 // pred_check_branch
        %152 = sbr.rel (%p150) target = $region16
      $region15: #{multi_resolution_discriminator_forward.27} parent=11 // pred_region
        %s153 = sld [smem:[#allocation3 + %s21]]
        %p154 = scmp.lt.s32.totalorder %s153, 0
        %s155 = scalar_select %p154, %s153, 0
        %s156 = smul.addr %s155, 3
        %s157 = smul.addr %s156, 4
        %s158 = scalar_lea.vmem %s1, %s157
        %s159 = sld [smem:[#allocation3 + %s21]]
      $region16: #{multi_resolution_discriminator_forward.27} parent=11 // pred_fallthru
        _
      // Predicated region
      $region17: #{multi_resolution_discriminator_forward.27} parent=11 // pred_check
        %p160 = pneg %p107
      $region18: #{multi_resolution_discriminator_forward.27} parent=11 // pred_check_branch
        %162 = sbr.rel (%p160) target = $region20
      $region19: #{multi_resolution_discriminator_forward.27} parent=11 // pred_region
        %s163 = sld [smem:[#allocation3 + %s21]]
        %p164 = scmp.lt.s32.totalorder %s163, 0
        %s165 = scalar_select %p164, %s163, 0
        %s166 = smul.addr %s165, 8
        %s167 = scalar_lea.vmem %s3, %s166
        %s168 = sld [smem:[#allocation3 + %s21]]
      $region20: #{multi_resolution_discriminator_forward.27} parent=11 // pred_fallthru
        _
    $region12: #{multi_resolution_discriminator_forward.27} parent=5 // pred_fallthru
      _
    %p169 = scmp.lt.s32.totalorder %s11, 4
    // Predicated region
    $region21: #{multi_resolution_discriminator_forward.27} parent=5 // pred_check
      %p170 = pneg %p169
    $region22: #{multi_resolution_discriminator_forward.27} parent=5 // pred_check_branch
      %172 = sbr.rel (%p170) target = $region24
    $region23: #{multi_resolution_discriminator_forward.27} parent=5 // pred_region
      // Predicated region
      $region25: #{multi_resolution_discriminator_forward.27} parent=23 // pred_check
        %p173 = pneg %p73
      $region26: #{multi_resolution_discriminator_forward.27} parent=23 // pred_check_branch
        %175 = sbr.rel (%p173) target = $region28
      $region27: #{multi_resolution_discriminator_forward.27} parent=23 // pred_region
        %s176 = smul.u32 2, %s19
        %p177 = scmp.lt.s32.totalorder %s18, 3
        %s178 = scalar_select %p177, %s18, 3
        %p179 = scmp.lt.s32.totalorder %s176, 1
        %s180 = scalar_select %p179, %s176, 1
        %s181 = smul.addr %s178, 72
        %s182 = sadd.s32 %s180, %s181
        %s183 = smul.addr %s182, 4
        %s184 = scalar_lea.vmem %s2, %s183
        %s185 = smul.u32 2, %s19
      $region28: #{multi_resolution_discriminator_forward.27} parent=23 // pred_fallthru
        _
    $region24: #{multi_resolution_discriminator_forward.27} parent=5 // pred_fallthru
      _
    %p186 = scmp.le.s32.totalorder 1, %s11
    %p187 = scmp.lt.s32.totalorder %s11, 5
    %p188 = pnand %p186, %p187
    %p189 = pneg %p188
    // Predicated region
    $region29: #{multi_resolution_discriminator_forward.27} parent=5 // pred_check
      _
    $region30: #{multi_resolution_discriminator_forward.27} parent=5 // pred_check_branch
      %191 = sbr.rel (%p188) target = $region32
    $region31: #{multi_resolution_discriminator_forward.27} parent=5 // pred_region
      %s192 = ssub.s32 %s11, 1
      %s193 = sld [smem:[#allocation3 + %s21]]
      %p194 = scmp.lt.s32.totalorder %s193, 0
      %s195 = scalar_select %p194, %s193, 0
      %s196 = smul.addr %s195, 3
      %s197 = smul.addr %s196, 4
      %s198 = scalar_lea.vmem %s1, %s197
      %p199 = pneg %p51
      %p200 = pneg %p48
      %s201 = smul.u32 2, %s21
      %p202 = scmp.lt.s32.totalorder %s20, 3
      %s203 = scalar_select %p202, %s20, 3
      %p204 = scmp.lt.s32.totalorder %s201, 1
      %s205 = scalar_select %p204, %s201, 1
      %s206 = smul.addr %s203, 72
      %s207 = sadd.s32 %s205, %s206
      %s208 = smul.addr %s207, 4
      %s209 = scalar_lea.vmem %s2, %s208
      %p210 = pneg %p79
      %p211 = pneg %p76
      %s212 = sld [smem:[#allocation3 + %s21]]
      %p213 = scmp.lt.s32.totalorder %s212, 0
      %s214 = scalar_select %p213, %s212, 0
      %s215 = smul.addr %s214, 8
      %s216 = scalar_lea.vmem %s3, %s215
      %p217 = pneg %p107
      %p218 = pneg %p104
      %p219 = pneg %p135
      %p220 = pneg %p132
      %s221 = smul.u32 2, %s21
      %p222 = scmp.lt.s32.totalorder %s20, 3
      %s223 = scalar_select %p222, %s20, 3
      %p224 = scmp.lt.s32.totalorder %s221, 1
      %s225 = scalar_select %p224, %s221, 1
      %s226 = smul.addr %s223, 2
      %s227 = sadd.s32 %s225, %s226
      %s228 = smul.addr %s227, 4
      %s229 = scalar_lea.vmem %s4, %s228
      %s230 = sld [smem:[#allocation3 + %s21]]
      %p231 = scmp.lt.s32.totalorder %s230, 0
      %s232 = scalar_select %p231, %s230, 0
      %s233 = smul.addr %s232, 3
      %s234 = smul.addr %s233, 4
      %s235 = scalar_lea.vmem %s1, %s234
      %s236 = sld [smem:[#allocation3 + %s21]]
      %s237 = smul.u32 2, %s21
      %p238 = scmp.lt.s32.totalorder %s20, 3
      %s239 = scalar_select %p238, %s20, 3
      %p240 = scmp.lt.s32.totalorder %s237, 1
      %s241 = scalar_select %p240, %s237, 1
      %s242 = smul.addr %s239, 72
      %s243 = sadd.s32 %s241, %s242
      %s244 = smul.addr %s243, 4
      %s245 = scalar_lea.vmem %s2, %s244
      %s246 = smul.u32 2, %s21
      %s247 = sld [smem:[#allocation3 + %s21]]
      %p248 = scmp.lt.s32.totalorder %s247, 0
      %s249 = scalar_select %p248, %s247, 0
      %s250 = smul.addr %s249, 8
      %s251 = scalar_lea.vmem %s3, %s250
      %s252 = sld [smem:[#allocation3 + %s21]]
      %s253 = smul.u32 2, %s21
      %p254 = scmp.lt.s32.totalorder %s20, 3
      %s255 = scalar_select %p254, %s20, 3
      %p256 = scmp.lt.s32.totalorder %s253, 1
      %s257 = scalar_select %p256, %s253, 1
      %s258 = smul.addr %s255, 2
      %s259 = sadd.s32 %s257, %s258
      %s260 = smul.addr %s259, 4
      %s261 = scalar_lea.vmem %s4, %s260
      %s262 = smul.u32 2, %s21
      %v264 = vld [vmem:[%s235] sm:$0xff]
      %v265 = vld [vmem:[%s235 + $0x8] sm:$0xf]
      %v266 = vld [vmem:[%s245] sm:$0xff]
      %v267 = vld [vmem:[%s245 + $0x8] sm:$0xff]
      %v268 = vld [vmem:[%s245 + $0x10] sm:$0xff]
      %v269 = vld [vmem:[%s245 + $0x18] sm:$0xff]
      %v270 = vld [vmem:[%s245 + $0x20] sm:$0xff]
      %v271 = vld [vmem:[%s245 + $0x28] sm:$0xff]
      %v272 = vld [vmem:[%s245 + $0x30] sm:$0xff]
      %v273 = vld [vmem:[%s245 + $0x38] sm:$0xff]
      %v274 = vld [vmem:[%s245 + $0x40] sm:$0xff]
      %v275 = vld [vmem:[%s245 + $0x48] sm:$0xff]
      %v276 = vld [vmem:[%s245 + $0x50] sm:$0xff]
      %v277 = vld [vmem:[%s245 + $0x58] sm:$0xff]
      %v278 = vld [vmem:[%s245 + $0x60] sm:$0xff]
      %v279 = vld [vmem:[%s245 + $0x68] sm:$0xff]
      %v280 = vld [vmem:[%s245 + $0x70] sm:$0xff]
      %v281 = vld [vmem:[%s245 + $0x78] sm:$0xff]
      %v282 = vld [vmem:[%s245 + $0x80] sm:$0xff]
      %v283 = vld [vmem:[%s245 + $0x88] sm:$0xff]
      %v284 = vld [vmem:[%s245 + $0x90] sm:$0xff]
      %v285 = vld [vmem:[%s245 + $0x98] sm:$0xff]
      %v286 = vld [vmem:[%s245 + $0xa0] sm:$0xff]
      %v287 = vld [vmem:[%s245 + $0xa8] sm:$0xff]
      %v288 = vld [vmem:[%s245 + $0xb0] sm:$0xff]
      %v289 = vld [vmem:[%s245 + $0xb8] sm:$0xff]
      %v290 = vld [vmem:[%s245 + $0xc0] sm:$0xff]
      %v291 = vld [vmem:[%s245 + $0xc8] sm:$0xff]
      %v292 = vld [vmem:[%s245 + $0xd0] sm:$0xff]
      %v293 = vld [vmem:[%s245 + $0xd8] sm:$0xff]
      %v294 = vld [vmem:[%s245 + $0xe0] sm:$0xff]
      %v295 = vld [vmem:[%s245 + $0xe8] sm:$0xff]
      %v296 = vld [vmem:[%s245 + $0xf0] sm:$0xff]
      %v297 = vld [vmem:[%s245 + $0xf8] sm:$0xff]
      %v298 = vld [vmem:[%s245 + $0x100] sm:$0xff]
      %v299 = vld [vmem:[%s245 + $0x108] sm:$0xff]
      %v300 = vld [vmem:[%s245 + $0x110] sm:$0xff]
      %v301 = vld [vmem:[%s245 + $0x118] sm:$0xff]
      %v302 = vld [vmem:[%s251] sm:$0xff]
      %304 = vset.pattern.permute.xlu0 0
      %305 = vperm.xlu0 %304, %v302
      %v306 = vpop.permute.xlu0 %305
      %v310 = vunpack.c.l.b16 %v264
      %v311 = vunpack.c.h.b16 %v264
      %v312 = vunpack.c.l.b16 %v265
      %v313 = vpack.c.b16 %v310, %v310
      %v314 = vpack.c.b16 %v311, %v311
      %v315 = vpack.c.b16 %v312, %v312
      %v354 = vunpack.c.l.b16 %v266
      %v355 = vunpack.c.h.b16 %v266
      %v356 = vunpack.c.l.b16 %v267
      %v357 = vunpack.c.h.b16 %v267
      %v358 = vunpack.c.l.b16 %v268
      %v359 = vunpack.c.h.b16 %v268
      %v360 = vunpack.c.l.b16 %v269
      %v361 = vunpack.c.h.b16 %v269
      %v362 = vunpack.c.l.b16 %v270
      %v363 = vunpack.c.h.b16 %v270
      %v364 = vunpack.c.l.b16 %v271
      %v365 = vunpack.c.h.b16 %v271
      %v366 = vunpack.c.l.b16 %v272
      %v367 = vunpack.c.h.b16 %v272
      %v368 = vunpack.c.l.b16 %v273
      %v369 = vunpack.c.h.b16 %v273
      %v370 = vunpack.c.l.b16 %v274
      %v371 = vunpack.c.h.b16 %v274
      %v372 = vunpack.c.l.b16 %v275
      %v373 = vunpack.c.h.b16 %v275
      %v374 = vunpack.c.l.b16 %v276
      %v375 = vunpack.c.h.b16 %v276
      %v376 = vunpack.c.l.b16 %v277
      %v377 = vunpack.c.h.b16 %v277
      %v378 = vunpack.c.l.b16 %v278
      %v379 = vunpack.c.h.b16 %v278
      %v380 = vunpack.c.l.b16 %v279
      %v381 = vunpack.c.h.b16 %v279
      %v382 = vunpack.c.l.b16 %v280
      %v383 = vunpack.c.h.b16 %v280
      %v384 = vunpack.c.l.b16 %v281
      %v385 = vunpack.c.h.b16 %v281
      %v386 = vunpack.c.l.b16 %v282
      %v387 = vunpack.c.h.b16 %v282
      %v388 = vunpack.c.l.b16 %v283
      %v389 = vunpack.c.h.b16 %v283
      %v390 = vunpack.c.l.b16 %v284
      %v391 = vunpack.c.h.b16 %v284
      %v392 = vunpack.c.l.b16 %v285
      %v393 = vunpack.c.h.b16 %v285
      %v394 = vunpack.c.l.b16 %v286
      %v395 = vunpack.c.h.b16 %v286
      %v396 = vunpack.c.l.b16 %v287
      %v397 = vunpack.c.h.b16 %v287
      %v398 = vunpack.c.l.b16 %v288
      %v399 = vunpack.c.h.b16 %v288
      %v400 = vunpack.c.l.b16 %v289
      %v401 = vunpack.c.h.b16 %v289
      %v402 = vunpack.c.l.b16 %v290
      %v403 = vunpack.c.h.b16 %v290
      %v404 = vunpack.c.l.b16 %v291
      %v405 = vunpack.c.h.b16 %v291
      %v406 = vunpack.c.l.b16 %v292
      %v407 = vunpack.c.h.b16 %v292
      %v408 = vunpack.c.l.b16 %v293
      %v409 = vunpack.c.h.b16 %v293
      %v410 = vunpack.c.l.b16 %v294
      %v411 = vunpack.c.h.b16 %v294
      %v412 = vunpack.c.l.b16 %v295
      %v413 = vunpack.c.h.b16 %v295
      %v414 = vunpack.c.l.b16 %v296
      %v415 = vunpack.c.h.b16 %v296
      %v416 = vunpack.c.l.b16 %v297
      %v417 = vunpack.c.h.b16 %v297
      %v418 = vunpack.c.l.b16 %v298
      %v419 = vunpack.c.h.b16 %v298
      %v420 = vunpack.c.l.b16 %v299
      %v421 = vunpack.c.h.b16 %v299
      %v422 = vunpack.c.l.b16 %v300
      %v423 = vunpack.c.h.b16 %v300
      %v424 = vunpack.c.l.b16 %v301
      %v425 = vunpack.c.h.b16 %v301
      %v426 = vpack.c.b16 %v356, %v354
      %v427 = vpack.c.b16 %v357, %v355
      %v428 = vpack.c.b16 %v360, %v358
      %v429 = vpack.c.b16 %v361, %v359
      %v430 = vpack.c.b16 %v364, %v362
      %v431 = vpack.c.b16 %v365, %v363
      %v432 = vpack.c.b16 %v368, %v366
      %v433 = vpack.c.b16 %v369, %v367
      %v434 = vpack.c.b16 %v372, %v370
      %v435 = vpack.c.b16 %v373, %v371
      %v436 = vpack.c.b16 %v376, %v374
      %v437 = vpack.c.b16 %v377, %v375
      %v438 = vpack.c.b16 %v380, %v378
      %v439 = vpack.c.b16 %v381, %v379
      %v440 = vpack.c.b16 %v384, %v382
      %v441 = vpack.c.b16 %v385, %v383
      %v442 = vpack.c.b16 %v388, %v386
      %v443 = vpack.c.b16 %v389, %v387
      %v444 = vpack.c.b16 %v392, %v390
      %v445 = vpack.c.b16 %v393, %v391
      %v446 = vpack.c.b16 %v396, %v394
      %v447 = vpack.c.b16 %v397, %v395
      %v448 = vpack.c.b16 %v400, %v398
      %v449 = vpack.c.b16 %v401, %v399
      %v450 = vpack.c.b16 %v404, %v402
      %v451 = vpack.c.b16 %v405, %v403
      %v452 = vpack.c.b16 %v408, %v406
      %v453 = vpack.c.b16 %v409, %v407
      %v454 = vpack.c.b16 %v412, %v410
      %v455 = vpack.c.b16 %v413, %v411
      %v456 = vpack.c.b16 %v416, %v414
      %v457 = vpack.c.b16 %v417, %v415
      %v458 = vpack.c.b16 %v420, %v418
      %v459 = vpack.c.b16 %v421, %v419
      %v460 = vpack.c.b16 %v424, %v422
      %v461 = vpack.c.b16 %v425, %v423
      %vm498 = vcmask 261120
      %v500 = vsel %vm498, %v315, 0
      %502 = vmatprep.subr.bf16.mxu0 %v441
      %503 = vmatpush1.bf16.msra.mxu0 %v440
      %504 = vmatprep.subr.bf16.mxu0 %v439
      %505 = vmatpush1.bf16.msra.mxu0 %v438
      %506 = vmatprep.subr.bf16.mxu0 %v437
      %507 = vmatpush1.bf16.msra.mxu0 %v436
      %508 = vmatprep.subr.bf16.mxu0 %v435
      %509 = vmatpush1.bf16.msra.mxu0 %v434
      %510 = vmatprep.subr.bf16.mxu0 %v433
      %511 = vmatpush1.bf16.msra.mxu0 %v432
      %512 = vmatprep.subr.bf16.mxu0 %v431
      %513 = vmatpush1.bf16.msra.mxu0 %v430
      %514 = vmatprep.subr.bf16.mxu0 %v429
      %515 = vmatpush1.bf16.msra.mxu0 %v428
      %516 = vmatprep.subr.bf16.mxu0 %v427
      %517 = vmatpush1.bf16.msra.mxu0 %v426
      %518 = vmatprep.subr.bf16.mxu0 %v457
      %519 = vmatpush2.bf16.msra.mxu0 %v456
      %520 = vmatprep.subr.bf16.mxu0 %v455
      %521 = vmatpush2.bf16.msra.mxu0 %v454
      %522 = vmatprep.subr.bf16.mxu0 %v453
      %523 = vmatpush2.bf16.msra.mxu0 %v452
      %524 = vmatprep.subr.bf16.mxu0 %v451
      %525 = vmatpush2.bf16.msra.mxu0 %v450
      %526 = vmatprep.subr.bf16.mxu0 %v449
      %527 = vmatpush2.bf16.msra.mxu0 %v448
      %528 = vmatprep.subr.bf16.mxu0 %v447
      %529 = vmatpush2.bf16.msra.mxu0 %v446
      %530 = vmatprep.subr.bf16.mxu0 %v445
      %531 = vmatpush2.bf16.msra.mxu0 %v444
      %532 = vmatprep.subr.bf16.mxu0 %v443
      %533 = vmatpush2.bf16.msra.mxu0 %v442
      %534 = vmatprep.mubr.bf16.mxu0 %v314
      %535 = vmatmul.mubr.bf16.gmra.mxu0 %v313
      %v536 = vpop.f32.mrf.mxu0
      %v537 = vadd.f32 %v306, %v536
      %v538 = vpop.f32.mrf.mxu0
      %v539 = vadd.f32 %v306, %v538
      %v540 = vpop.f32.mrf.mxu0
      %v541 = vpop.f32.mrf.mxu0
      %542 = vdwg.mxu0
      %543 = vmatprep.subr.bf16.mxu0 0
      %544 = vmatpush1.bf16.msra.mxu0 0
      %545 = vmatprep.subr.bf16.mxu0 0
      %546 = vmatpush1.bf16.msra.mxu0 0
      %547 = vmatprep.subr.bf16.mxu0 0
      %548 = vmatpush1.bf16.msra.mxu0 0
      %549 = vmatprep.subr.bf16.mxu0 0
      %550 = vmatpush1.bf16.msra.mxu0 0
      %551 = vmatprep.subr.bf16.mxu0 0
      %552 = vmatpush1.bf16.msra.mxu0 0
      %553 = vmatprep.subr.bf16.mxu0 0
      %554 = vmatpush1.bf16.msra.mxu0 0
      %555 = vmatprep.subr.bf16.mxu0 %v461
      %556 = vmatpush1.bf16.msra.mxu0 %v460
      %557 = vmatprep.subr.bf16.mxu0 %v459
      %558 = vmatpush1.bf16.msra.mxu0 %v458
      %559 = vmatprep.subr.bf16.mxu0 0
      %560 = vmatpush2.bf16.msra.mxu0 0
      %561 = vmatprep.subr.bf16.mxu0 0
      %562 = vmatpush2.bf16.msra.mxu0 0
      %563 = vmatprep.subr.bf16.mxu0 0
      %564 = vmatpush2.bf16.msra.mxu0 0
      %565 = vmatprep.subr.bf16.mxu0 0
      %566 = vmatpush2.bf16.msra.mxu0 0
      %567 = vmatprep.subr.bf16.mxu0 0
      %568 = vmatpush2.bf16.msra.mxu0 0
      %569 = vmatprep.subr.bf16.mxu0 0
      %570 = vmatpush2.bf16.msra.mxu0 0
      %571 = vmatprep.subr.bf16.mxu0 0
      %572 = vmatpush2.bf16.msra.mxu0 0
      %573 = vmatprep.subr.bf16.mxu0 0
      %574 = vmatpush2.bf16.msra.mxu0 0
      %575 = vmatprep.mubr.bf16.mxu0 0
      %576 = vmatmul.mubr.bf16.gmra.mxu0 %v500
      %v577 = vpop.f32.mrf.mxu0
      %v578 = vadd.f32 %v537, %v577
      %v579 = vpop.f32.mrf.mxu0
      %v580 = vadd.f32 %v539, %v579
      %v581 = vpop.f32.mrf.mxu0
      %v582 = vpop.f32.mrf.mxu0
      %583 = vdwg.mxu0
      %v584 = vpack.c.bf16 %v578, %v578
      %v585 = vpack.c.bf16 %v580, %v580
      %v588 = vunpack.c.l.b16 %v584
      %v589 = vunpack.c.l.b16 %v585
      %v590 = vpack.c.b16 %v589, %v588
      %592 = vst [vmem:[%s261] sm:$0xff] %v590
      %s593 = smul.u32 2, %s21
      %p594 = scmp.lt.s32.totalorder %s20, 3
      %s595 = scalar_select %p594, %s20, 3
      %p596 = scmp.lt.s32.totalorder %s593, 1
      %s597 = scalar_select %p596, %s593, 1
      %s598 = smul.addr %s595, 2
      %s599 = sadd.s32 %s597, %s598
      %s600 = smul.addr %s599, 4
      %s601 = scalar_lea.vmem %s4, %s600
      // Predicated region
      $region33: #{multi_resolution_discriminator_forward.27} parent=31 // pred_check
        %p602 = pneg %p132
      $region34: #{multi_resolution_discriminator_forward.27} parent=31 // pred_check_branch
        %604 = sbr.rel (%p602) target = $region36
      $region35: #{multi_resolution_discriminator_forward.27} parent=31 // pred_region
        %s605 = smul.u32 2, %s21
      $region36: #{multi_resolution_discriminator_forward.27} parent=31 // pred_fallthru
        _
    $region32: #{multi_resolution_discriminator_forward.27} parent=5 // pred_fallthru
      _
    %p606 = scmp.le.s32.totalorder 2, %s11
    // Predicated region
    $region37: #{multi_resolution_discriminator_forward.27} parent=5 // pred_check
      %p607 = pneg %p606
    $region38: #{multi_resolution_discriminator_forward.27} parent=5 // pred_check_branch
      %609 = sbr.rel (%p607) target = $region40
    $region39: #{multi_resolution_discriminator_forward.27} parent=5 // pred_region
      %s610 = ssub.s32 %s11, 2
      // Predicated region
      $region41: #{multi_resolution_discriminator_forward.27} parent=39 // pred_check
        %p611 = pneg %p138
      $region42: #{multi_resolution_discriminator_forward.27} parent=39 // pred_check_branch
        %613 = sbr.rel (%p611) target = $region44
      $region43: #{multi_resolution_discriminator_forward.27} parent=39 // pred_region
        %s614 = smul.u32 2, %s23
        %p615 = scmp.lt.s32.totalorder %s22, 3
        %s616 = scalar_select %p615, %s22, 3
        %p617 = scmp.lt.s32.totalorder %s614, 1
        %s618 = scalar_select %p617, %s614, 1
        %s619 = smul.addr %s616, 2
        %s620 = sadd.s32 %s618, %s619
        %s621 = smul.addr %s620, 4
        %s622 = scalar_lea.vmem %s4, %s621
      $region44: #{multi_resolution_discriminator_forward.27} parent=39 // pred_fallthru
        _
    $region40: #{multi_resolution_discriminator_forward.27} parent=5 // pred_fallthru
      _
  $region6: #{multi_resolution_discriminator_forward.27} parent=0 // loop_footer
    %s15 = sadd.s32 1, %s11
  $region7: #{multi_resolution_discriminator_forward.27} parent=0 // loop_footer_branch
    %10 = sbr.rel target = $region3
  $region8: #{multi_resolution_discriminator_forward.27} parent=0 // loop_exit
    _

// kernel: multi_resolution_discriminator_forward.14
$region0: #{multi_resolution_discriminator_forward.14}
  #allocation0 [shape = 'u32[]', space=smem, size = 0x4, offset = 0x4, fixed_abs, tag = 'smem constant byte address 0x4 - core index']
  #allocation1 [shape = 'u32[144,128]{1,0:T(1,128)}', space=vmem, size = 0x12000, scoped, tag = 'internal scratch']
  %s0 = inlined_call_operand.vmem [shape: bf16[4,17,64], index: 0, kind: input, shape index: {}]
  %s1 = inlined_call_operand.vmem [shape: bf16[2,64,128], index: 1, kind: input, shape index: {}]
  %s2 = inlined_call_operand.vmem [shape: bf16[4,2,17,128], index: 2, kind: output, shape index: {}]
  %s3 = sld [smem:[#allocation0]]
  $region41: #{multi_resolution_discriminator_forward.14} parent=0
    _
  %s5 = ssub.s32 1, %s3
  %s6 = scalar_select 0, %s5, %s3
  loop: start=0, step=1, limit=6
  $region2: #{multi_resolution_discriminator_forward.14} parent=0 // loop_pre_header
    _
  $region3: #{multi_resolution_discriminator_forward.14} parent=0 // loop_header
    %s8 = sphi 0, %s12
    %p9 = scmp.ge.s32.totalorder %s8, 6
    %s15 = sphi 0, %s27
    %s16 = sphi 0, %s23
    %s17 = sphi 0, %s15
    %s18 = sphi 0, %s16
    %s19 = sphi 0, %s17
    %s20 = sphi 0, %s18
    %s32 = sphi 0, %s34
    %s35 = sphi 0, %s32
    %s36 = sphi 0, %s35
    %s52 = sphi 0, %s36
    %s56 = sphi 0, %s56
    %s58 = sphi 0, %s56
    %s59 = sphi 0, %s58
    %s73 = sphi 0, %s59
    %s81 = sphi 0, %s83
    %s84 = sphi 0, %s81
    %s85 = sphi 0, %s84
    %s101 = sphi 0, %s85
  $region4: #{multi_resolution_discriminator_forward.14} parent=0 // loop_header_branch
    %11 = sbr.rel (%p9) target = $region8
  $region5: #{multi_resolution_discriminator_forward.14} parent=0 // loop_body
    %s13 = ssub.s32 %s8, 1
    %s14 = ssub.s32 %s8, 2
    %s21 = sadd.s32 1, %s16
    %p22 = scmp.ge.s32.totalorder %s21, 1
    %s23 = scalar_select %p22, 0, %s21
    %s24 = sadd.s32 1, %s15
    %s25 = scalar_select %p22, %s24, %s15
    %p26 = scmp.ge.s32.totalorder %s25, 4
    %s27 = scalar_select %p26, 0, %s25
    %s28 = ssub.s32 %s15, %s27
    %s29 = ssub.s32 %s16, %s23
    %s30 = sor.u32 %s28, %s29
    %p31 = scmp.eq.s32.totalorder %s30, 0
    %s33 = sadd.s32 %s32, 1
    %s34 = scalar_select %p31, %s32, %s33
    %p37 = pneg %p31
    %p38 = scmp.eq.s32.totalorder %s8, 3
    %p39 = por %p37, %p38
    %p40 = scmp.ne.s32.totalorder %s32, %s35
    %p41 = scmp.eq.s32.totalorder %s8, 0
    %p42 = por %p40, %p41
    %p43 = scmp.ne.s32.totalorder %s32, %s35
    %p44 = scmp.eq.s32.totalorder %s13, 3
    %p45 = por %p43, %p44
    %p46 = scmp.ne.s32.totalorder %s35, %s36
    %p47 = scmp.eq.s32.totalorder %s13, 0
    %p48 = por %p46, %p47
    %p49 = scmp.ne.s32.totalorder %s35, %s36
    %p50 = scmp.eq.s32.totalorder %s14, 3
    %p51 = por %p49, %p50
    %p53 = scmp.ne.s32.totalorder %s36, %s52
    %p54 = scmp.eq.s32.totalorder %s14, 0
    %p55 = por %p53, %p54
    %s57 = sadd.s32 %s56, 1
    %p60 = scmp.eq.s32.totalorder %s8, 3
    %p61 = scmp.ne.s32.totalorder %s56, %s58
    %p62 = scmp.eq.s32.totalorder %s8, 0
    %p63 = por %p61, %p62
    %p64 = scmp.ne.s32.totalorder %s56, %s58
    %p65 = scmp.eq.s32.totalorder %s13, 3
    %p66 = por %p64, %p65
    %p67 = scmp.ne.s32.totalorder %s58, %s59
    %p68 = scmp.eq.s32.totalorder %s13, 0
    %p69 = por %p67, %p68
    %p70 = scmp.ne.s32.totalorder %s58, %s59
    %p71 = scmp.eq.s32.totalorder %s14, 3
    %p72 = por %p70, %p71
    %p74 = scmp.ne.s32.totalorder %s59, %s73
    %p75 = scmp.eq.s32.totalorder %s14, 0
    %p76 = por %p74, %p75
    %s77 = ssub.s32 %s15, %s27
    %s78 = ssub.s32 %s16, %s23
    %s79 = sor.u32 %s77, %s78
    %p80 = scmp.eq.s32.totalorder %s79, 0
    %s82 = sadd.s32 %s81, 1
    %s83 = scalar_select %p80, %s81, %s82
    %p86 = pneg %p80
    %p87 = scmp.eq.s32.totalorder %s8, 3
    %p88 = por %p86, %p87
    %p89 = scmp.ne.s32.totalorder %s81, %s84
    %p90 = scmp.eq.s32.totalorder %s8, 0
    %p91 = por %p89, %p90
    %p92 = scmp.ne.s32.totalorder %s81, %s84
    %p93 = scmp.eq.s32.totalorder %s13, 3
    %p94 = por %p92, %p93
    %p95 = scmp.ne.s32.totalorder %s84, %s85
    %p96 = scmp.eq.s32.totalorder %s13, 0
    %p97 = por %p95, %p96
    %p98 = scmp.ne.s32.totalorder %s84, %s85
    %p99 = scmp.eq.s32.totalorder %s14, 3
    %p100 = por %p98, %p99
    %p102 = scmp.ne.s32.totalorder %s85, %s101
    %p103 = scmp.eq.s32.totalorder %s14, 0
    %p104 = por %p102, %p103
    %p105 = scmp.le.s32.totalorder 1, %s8
    %p106 = scmp.lt.s32.totalorder %s8, 5
    %p107 = pnand %p105, %p106
    %p108 = pneg %p107
    // Predicated region
    $region9: #{multi_resolution_discriminator_forward.14} parent=5 // pred_check
      _
    $region10: #{multi_resolution_discriminator_forward.14} parent=5 // pred_check_branch
      %110 = sbr.rel (%p107) target = $region12
    $region11: #{multi_resolution_discriminator_forward.14} parent=5 // pred_region
      %s111 = ssub.s32 %s8, 1
      // Predicated region
      $region13: #{multi_resolution_discriminator_forward.14} parent=11 // pred_check
        %p112 = pneg %p69
      $region14: #{multi_resolution_discriminator_forward.14} parent=11 // pred_check_branch
        %114 = sbr.rel (%p112) target = $region16
      $region15: #{multi_resolution_discriminator_forward.14} parent=11 // pred_region
        _
      $region16: #{multi_resolution_discriminator_forward.14} parent=11 // pred_fallthru
        _
    $region12: #{multi_resolution_discriminator_forward.14} parent=5 // pred_fallthru
      _
    %p115 = scmp.lt.s32.totalorder %s8, 4
    // Predicated region
    $region17: #{multi_resolution_discriminator_forward.14} parent=5 // pred_check
      %p116 = pneg %p115
    $region18: #{multi_resolution_discriminator_forward.14} parent=5 // pred_check_branch
      %118 = sbr.rel (%p116) target = $region20
    $region19: #{multi_resolution_discriminator_forward.14} parent=5 // pred_region
      // Predicated region
      $region21: #{multi_resolution_discriminator_forward.14} parent=19 // pred_check
        %p119 = pneg %p42
      $region22: #{multi_resolution_discriminator_forward.14} parent=19 // pred_check_branch
        %121 = sbr.rel (%p119) target = $region24
      $region23: #{multi_resolution_discriminator_forward.14} parent=19 // pred_region
        %s122 = smul.u32 3, %s16
        %p123 = scmp.lt.s32.totalorder %s15, 3
        %s124 = scalar_select %p123, %s15, 3
        %p125 = scmp.lt.s32.totalorder %s122, 2
        %s126 = scalar_select %p125, %s122, 2
        %s127 = smul.addr %s124, 3
        %s128 = sadd.s32 %s126, %s127
        %s129 = smul.addr %s128, 4
        %s130 = scalar_lea.vmem %s0, %s129
        %s131 = smul.u32 3, %s16
      $region24: #{multi_resolution_discriminator_forward.14} parent=19 // pred_fallthru
        _
    $region20: #{multi_resolution_discriminator_forward.14} parent=5 // pred_fallthru
      _
    %p132 = scmp.le.s32.totalorder 1, %s8
    %p133 = scmp.lt.s32.totalorder %s8, 5
    %p134 = pnand %p132, %p133
    %p135 = pneg %p134
    // Predicated region
    $region25: #{multi_resolution_discriminator_forward.14} parent=5 // pred_check
      _
    $region26: #{multi_resolution_discriminator_forward.14} parent=5 // pred_check_branch
      %137 = sbr.rel (%p134) target = $region28
    $region27: #{multi_resolution_discriminator_forward.14} parent=5 // pred_region
      %s138 = ssub.s32 %s8, 1
      %s139 = smul.u32 3, %s18
      %p140 = scmp.lt.s32.totalorder %s17, 3
      %s141 = scalar_select %p140, %s17, 3
      %p142 = scmp.lt.s32.totalorder %s139, 2
      %s143 = scalar_select %p142, %s139, 2
      %s144 = smul.addr %s141, 3
      %s145 = sadd.s32 %s143, %s144
      %s146 = smul.addr %s145, 4
      %s147 = scalar_lea.vmem %s0, %s146
      %p148 = pneg %p48
      %p149 = pneg %p45
      %p150 = pneg %p69
      %p151 = pneg %p66
      %p152 = pneg %p97
      %p153 = pneg %p94
      %s154 = smul.u32 3, %s18
      %p155 = scmp.lt.s32.totalorder %s17, 3
      %s156 = scalar_select %p155, %s17, 3
      %p157 = scmp.lt.s32.totalorder %s154, 2
      %s158 = scalar_select %p157, %s154, 2
      %s159 = smul.addr %s156, 6
      %s160 = sadd.s32 %s158, %s159
      %s161 = smul.addr %s160, 4
      %s162 = scalar_lea.vmem %s2, %s161
      %s163 = smul.u32 3, %s18
      %p164 = scmp.lt.s32.totalorder %s17, 3
      %s165 = scalar_select %p164, %s17, 3
      %p166 = scmp.lt.s32.totalorder %s163, 2
      %s167 = scalar_select %p166, %s163, 2
      %s168 = smul.addr %s165, 3
      %s169 = sadd.s32 %s167, %s168
      %s170 = smul.addr %s169, 4
      %s171 = scalar_lea.vmem %s0, %s170
      %s172 = smul.u32 3, %s18
      %s173 = smul.u32 3, %s18
      %p174 = scmp.lt.s32.totalorder %s17, 3
      %s175 = scalar_select %p174, %s17, 3
      %p176 = scmp.lt.s32.totalorder %s173, 2
      %s177 = scalar_select %p176, %s173, 2
      %s178 = smul.addr %s175, 6
      %s179 = sadd.s32 %s177, %s178
      %s180 = smul.addr %s179, 4
      %s181 = scalar_lea.vmem %s2, %s180
      %s182 = smul.u32 3, %s18
      %v184 = vld [vmem:[%s171] sm:$0xf]
      %v185 = vld [vmem:[%s171 + $0x4] sm:$0xf]
      %v186 = vld [vmem:[%s171 + $0x8] sm:$0x1]
      %v187 = vld [vmem:[%s1] sm:$0xf]
      %v188 = vld [vmem:[%s1 + $0x4] sm:$0xf]
      %v189 = vld [vmem:[%s1 + $0x8] sm:$0xf]
      %v190 = vld [vmem:[%s1 + $0xc] sm:$0xf]
      %v191 = vld [vmem:[%s1 + $0x10] sm:$0xf]
      %v192 = vld [vmem:[%s1 + $0x14] sm:$0xf]
      %v193 = vld [vmem:[%s1 + $0x18] sm:$0xf]
      %v194 = vld [vmem:[%s1 + $0x1c] sm:$0xf]
      %v198 = vunpack.c.l.b16 %v184
      %v199 = vunpack.c.l.b16 %v185
      %v200 = vunpack.c.l.b16 %v186
      %v201 = vpack.c.b16 %v199, %v198
      %v202 = vpack.c.b16 %v200, %v200
      %v211 = vunpack.c.l.b16 %v187
      %v212 = vunpack.c.l.b16 %v188
      %v213 = vunpack.c.l.b16 %v189
      %v214 = vunpack.c.l.b16 %v190
      %v215 = vunpack.c.l.b16 %v191
      %v216 = vunpack.c.l.b16 %v192
      %v217 = vunpack.c.l.b16 %v193
      %v218 = vunpack.c.l.b16 %v194
      %v219 = vpack.c.b16 %v212, %v211
      %v220 = vpack.c.b16 %v214, %v213
      %v221 = vpack.c.b16 %v216, %v215
      %v222 = vpack.c.b16 %v218, %v217
      %vm227 = vcmask 523264
      %v229 = vsel %vm227, %v201, 0
      %v232 = vsel %vm227, %v202, 0
      %234 = vmatprep.subr.bf16.mxu0 0
      %235 = vmatpush1.bf16.msra.mxu0 0
      %236 = vmatprep.subr.bf16.mxu0 0
      %237 = vmatpush1.bf16.msra.mxu0 0
      %238 = vmatprep.subr.bf16.mxu0 0
      %239 = vmatpush1.bf16.msra.mxu0 0
      %240 = vmatprep.subr.bf16.mxu0 0
      %241 = vmatpush1.bf16.msra.mxu0 0
      %242 = vmatprep.subr.bf16.mxu0 0
      %243 = vmatpush1.bf16.msra.mxu0 %v222
      %244 = vmatprep.subr.bf16.mxu0 0
      %245 = vmatpush1.bf16.msra.mxu0 %v221
      %246 = vmatprep.subr.bf16.mxu0 0
      %247 = vmatpush1.bf16.msra.mxu0 %v220
      %248 = vmatprep.subr.bf16.mxu0 0
      %249 = vmatpush1.bf16.msra.mxu0 %v219
      %250 = vmatprep.subr.bf16.mxu0 0
      %251 = vmatpush2.bf16.msra.mxu0 0
      %252 = vmatprep.subr.bf16.mxu0 0
      %253 = vmatpush2.bf16.msra.mxu0 0
      %254 = vmatprep.subr.bf16.mxu0 0
      %255 = vmatpush2.bf16.msra.mxu0 0
      %256 = vmatprep.subr.bf16.mxu0 0
      %257 = vmatpush2.bf16.msra.mxu0 0
      %258 = vmatprep.subr.bf16.mxu0 0
      %259 = vmatpush2.bf16.msra.mxu0 0
      %260 = vmatprep.subr.bf16.mxu0 0
      %261 = vmatpush2.bf16.msra.mxu0 0
      %262 = vmatprep.subr.bf16.mxu0 0
      %263 = vmatpush2.bf16.msra.mxu0 0
      %264 = vmatprep.subr.bf16.mxu0 0
      %265 = vmatpush2.bf16.msra.mxu0 0
      %266 = vmatprep.mubr.bf16.mxu0 0
      %267 = vmatmul.mubr.bf16.gmra.mxu0 %v229
      %v268 = vpop.f32.mrf.mxu0
      %v269 = vadd.f32 0.0, %v268
      %v270 = vpop.f32.mrf.mxu0
      %v271 = vpop.f32.mrf.mxu0
      %v272 = vadd.f32 0.0, %v271
      %v273 = vpop.f32.mrf.mxu0
      %274 = vmatprep.mubr.bf16.mxu0 0
      %275 = vmatmul.mubr.bf16.gmra.mxu0 %v232
      %v276 = vpop.f32.mrf.mxu0
      %v277 = vadd.f32 0.0, %v276
      %v278 = vpop.f32.mrf.mxu0
      %v279 = vpop.f32.mrf.mxu0
      %v280 = vpop.f32.mrf.mxu0
      %281 = vdwg.mxu0
      %v282 = vpack.c.bf16 %v272, %v269
      %v283 = vpack.c.bf16 %v277, %v277
      %v286 = vunpack.c.l.b16 %v282
      %v287 = vunpack.c.h.b16 %v282
      %v288 = vunpack.c.l.b16 %v283
      %v289 = vpack.c.b16 %v286, %v286
      %v290 = vpack.c.b16 %v287, %v287
      %v291 = vpack.c.b16 %v288, %v288
      %295 = vst [vmem:[%s181] sm:$0xf] %v289
      %296 = vst [vmem:[%s181 + $0x4] sm:$0xf] %v290
      %vm297 = vcmask 1040384
      %vm298 = vsmask.f32 256
      %vm299 = vmand %vm297, %vm298
      %v300 = vld [vmem:[%s181 + $0x8] sm:$0x1]
      %v301 = vsel %vm299, %v291, %v300
      %302 = vst [vmem:[%s181 + $0x8] sm:$0x1] %v301
      %s303 = scalar_lea.vmem %s1, 32
      %v304 = vld [vmem:[%s303] sm:$0xf]
      %v305 = vld [vmem:[%s303 + $0x4] sm:$0xf]
      %v306 = vld [vmem:[%s303 + $0x8] sm:$0xf]
      %v307 = vld [vmem:[%s303 + $0xc] sm:$0xf]
      %v308 = vld [vmem:[%s303 + $0x10] sm:$0xf]
      %v309 = vld [vmem:[%s303 + $0x14] sm:$0xf]
      %v310 = vld [vmem:[%s303 + $0x18] sm:$0xf]
      %v311 = vld [vmem:[%s303 + $0x1c] sm:$0xf]
      %v320 = vunpack.c.l.b16 %v304
      %v321 = vunpack.c.l.b16 %v305
      %v322 = vunpack.c.l.b16 %v306
      %v323 = vunpack.c.l.b16 %v307
      %v324 = vunpack.c.l.b16 %v308
      %v325 = vunpack.c.l.b16 %v309
      %v326 = vunpack.c.l.b16 %v310
      %v327 = vunpack.c.l.b16 %v311
      %v328 = vpack.c.b16 %v321, %v320
      %v329 = vpack.c.b16 %v323, %v322
      %v330 = vpack.c.b16 %v325, %v324
      %v331 = vpack.c.b16 %v327, %v326
      %336 = vmatprep.subr.bf16.mxu0 0
      %337 = vmatpush1.bf16.msra.mxu0 0
      %338 = vmatprep.subr.bf16.mxu0 0
      %339 = vmatpush1.bf16.msra.mxu0 0
      %340 = vmatprep.subr.bf16.mxu0 0
      %341 = vmatpush1.bf16.msra.mxu0 0
      %342 = vmatprep.subr.bf16.mxu0 0
      %343 = vmatpush1.bf16.msra.mxu0 0
      %344 = vmatprep.subr.bf16.mxu0 0
      %345 = vmatpush1.bf16.msra.mxu0 %v331
      %346 = vmatprep.subr.bf16.mxu0 0
      %347 = vmatpush1.bf16.msra.mxu0 %v330
      %348 = vmatprep.subr.bf16.mxu0 0
      %349 = vmatpush1.bf16.msra.mxu0 %v329
      %350 = vmatprep.subr.bf16.mxu0 0
      %351 = vmatpush1.bf16.msra.mxu0 %v328
      %352 = vmatprep.subr.bf16.mxu0 0
      %353 = vmatpush2.bf16.msra.mxu0 0
      %354 = vmatprep.subr.bf16.mxu0 0
      %355 = vmatpush2.bf16.msra.mxu0 0
      %356 = vmatprep.subr.bf16.mxu0 0
      %357 = vmatpush2.bf16.msra.mxu0 0
      %358 = vmatprep.subr.bf16.mxu0 0
      %359 = vmatpush2.bf16.msra.mxu0 0
      %360 = vmatprep.subr.bf16.mxu0 0
      %361 = vmatpush2.bf16.msra.mxu0 0
      %362 = vmatprep.subr.bf16.mxu0 0
      %363 = vmatpush2.bf16.msra.mxu0 0
      %364 = vmatprep.subr.bf16.mxu0 0
      %365 = vmatpush2.bf16.msra.mxu0 0
      %366 = vmatprep.subr.bf16.mxu0 0
      %367 = vmatpush2.bf16.msra.mxu0 0
      %368 = vmatprep.mubr.bf16.mxu0 0
      %369 = vmatmul.mubr.bf16.gmra.mxu0 %v229
      %v370 = vpop.f32.mrf.mxu0
      %v371 = vadd.f32 0.0, %v370
      %v372 = vpop.f32.mrf.mxu0
      %v373 = vpop.f32.mrf.mxu0
      %v374 = vadd.f32 0.0, %v373
      %v375 = vpop.f32.mrf.mxu0
      %376 = vmatprep.mubr.bf16.mxu0 0
      %377 = vmatmul.mubr.bf16.gmra.mxu0 %v232
      %v378 = vpop.f32.mrf.mxu0
      %v379 = vadd.f32 0.0, %v378
      %v380 = vpop.f32.mrf.mxu0
      %v381 = vpop.f32.mrf.mxu0
      %v382 = vpop.f32.mrf.mxu0
      %383 = vdwg.mxu0
      %v384 = vpack.c.bf16 %v374, %v371
      %v385 = vpack.c.bf16 %v379, %v379
      %v388 = vunpack.c.l.b16 %v384
      %v389 = vunpack.c.h.b16 %v384
      %v390 = vunpack.c.l.b16 %v385
      %v391 = vpack.c.b16 %v388, %v388
      %v392 = vpack.c.b16 %v389, %v389
      %v393 = vpack.c.b16 %v390, %v390
      %s397 = scalar_lea.vmem %s181, 12
      %398 = vst [vmem:[%s397] sm:$0xf] %v391
      %399 = vst [vmem:[%s397 + $0x4] sm:$0xf] %v392
      %v400 = vld [vmem:[%s397 + $0x8] sm:$0x1]
      %v401 = vsel %vm299, %v393, %v400
      %402 = vst [vmem:[%s397 + $0x8] sm:$0x1] %v401
      %s403 = smul.u32 3, %s18
      %p404 = scmp.lt.s32.totalorder %s17, 3
      %s405 = scalar_select %p404, %s17, 3
      %p406 = scmp.lt.s32.totalorder %s403, 2
      %s407 = scalar_select %p406, %s403, 2
      %s408 = smul.addr %s405, 6
      %s409 = sadd.s32 %s407, %s408
      %s410 = smul.addr %s409, 4
      %s411 = scalar_lea.vmem %s2, %s410
      // Predicated region
      $region29: #{multi_resolution_discriminator_forward.14} parent=27 // pred_check
        %p412 = pneg %p94
      $region30: #{multi_resolution_discriminator_forward.14} parent=27 // pred_check_branch
        %414 = sbr.rel (%p412) target = $region32
      $region31: #{multi_resolution_discriminator_forward.14} parent=27 // pred_region
        %s415 = smul.u32 3, %s18
      $region32: #{multi_resolution_discriminator_forward.14} parent=27 // pred_fallthru
        _
    $region28: #{multi_resolution_discriminator_forward.14} parent=5 // pred_fallthru
      _
    %p416 = scmp.le.s32.totalorder 2, %s8
    // Predicated region
    $region33: #{multi_resolution_discriminator_forward.14} parent=5 // pred_check
      %p417 = pneg %p416
    $region34: #{multi_resolution_discriminator_forward.14} parent=5 // pred_check_branch
      %419 = sbr.rel (%p417) target = $region36
    $region35: #{multi_resolution_discriminator_forward.14} parent=5 // pred_region
      %s420 = ssub.s32 %s8, 2
      // Predicated region
      $region37: #{multi_resolution_discriminator_forward.14} parent=35 // pred_check
        %p421 = pneg %p100
      $region38: #{multi_resolution_discriminator_forward.14} parent=35 // pred_check_branch
        %423 = sbr.rel (%p421) target = $region40
      $region39: #{multi_resolution_discriminator_forward.14} parent=35 // pred_region
        %s424 = smul.u32 3, %s20
        %p425 = scmp.lt.s32.totalorder %s19, 3
        %s426 = scalar_select %p425, %s19, 3
        %p427 = scmp.lt.s32.totalorder %s424, 2
        %s428 = scalar_select %p427, %s424, 2
        %s429 = smul.addr %s426, 6
        %s430 = sadd.s32 %s428, %s429
        %s431 = smul.addr %s430, 4
        %s432 = scalar_lea.vmem %s2, %s431
      $region40: #{multi_resolution_discriminator_forward.14} parent=35 // pred_fallthru
        _
    $region36: #{multi_resolution_discriminator_forward.14} parent=5 // pred_fallthru
      _
  $region6: #{multi_resolution_discriminator_forward.14} parent=0 // loop_footer
    %s12 = sadd.s32 1, %s8
  $region7: #{multi_resolution_discriminator_forward.14} parent=0 // loop_footer_branch
    %7 = sbr.rel target = $region3
  $region8: #{multi_resolution_discriminator_forward.14} parent=0 // loop_exit
    _

// kernel: multi_resolution_discriminator_forward.20
$region0: #{multi_resolution_discriminator_forward.20}
  #allocation0 [shape = 'u32[]', space=smem, size = 0x4, offset = 0x4, fixed_abs, tag = 'smem constant byte address 0x4 - core index']
  #allocation1 [shape = 'u32[144,128]{1,0:T(1,128)}', space=vmem, size = 0x12000, scoped, tag = 'internal scratch']
  #allocation2 [shape = 's32[1]{0}', space=sflag, size = 0x4, scoped, tag = 'scoped memory for multi_resolution_discriminator_forward.20']
  #allocation3 [shape = 's32[1]{0:T(128)S(6)}', space=smem, size = 0x200, scoped, tag = 'prefetched SMEM operand 0']
  %s0 = inlined_call_operand.<no memory space> [shape: s32[1], index: 0, kind: input, shape index: {}]
  %s1 = inlined_call_operand.vmem [shape: bf16[1,8,288], index: 1, kind: input, shape index: {}]
  %s2 = inlined_call_operand.vmem [shape: bf16[4,288,128], index: 2, kind: input, shape index: {}]
  %s3 = inlined_call_operand.vmem [shape: f32[1,8,1], index: 3, kind: input, shape index: {}]
  %s4 = inlined_call_operand.vmem [shape: bf16[4,8,128], index: 4, kind: output, shape index: {}]
  %s5 = sld [smem:[#allocation0]]
  $region45: #{multi_resolution_discriminator_forward.20} parent=0
    _
  %s7 = ssub.s32 1, %s5
  %s8 = scalar_select 0, %s7, %s5
  %9 = sst [smem:[#allocation3]] %s0
  loop: start=0, step=1, limit=6
  $region2: #{multi_resolution_discriminator_forward.20} parent=0 // loop_pre_header
    _
  $region3: #{multi_resolution_discriminator_forward.20} parent=0 // loop_header
    %s11 = sphi 0, %s15
    %p12 = scmp.ge.s32.totalorder %s11, 6
    %s18 = sphi 0, %s30
    %s19 = sphi 0, %s26
    %s20 = sphi 0, %s18
    %s21 = sphi 0, %s19
    %s22 = sphi 0, %s20
    %s23 = sphi 0, %s21
    %s35 = sphi 0, %s37
    %s38 = sphi 0, %s35
    %s39 = sphi 0, %s38
    %s55 = sphi 0, %s39
    %s63 = sphi 0, %s65
    %s66 = sphi 0, %s63
    %s67 = sphi 0, %s66
    %s83 = sphi 0, %s67
    %s91 = sphi 0, %s93
    %s94 = sphi 0, %s91
    %s95 = sphi 0, %s94
    %s111 = sphi 0, %s95
    %s119 = sphi 0, %s121
    %s122 = sphi 0, %s119
    %s123 = sphi 0, %s122
    %s139 = sphi 0, %s123
  $region4: #{multi_resolution_discriminator_forward.20} parent=0 // loop_header_branch
    %14 = sbr.rel (%p12) target = $region8
  $region5: #{multi_resolution_discriminator_forward.20} parent=0 // loop_body
    %s16 = ssub.s32 %s11, 1
    %s17 = ssub.s32 %s11, 2
    %s24 = sadd.s32 1, %s19
    %p25 = scmp.ge.s32.totalorder %s24, 1
    %s26 = scalar_select %p25, 0, %s24
    %s27 = sadd.s32 1, %s18
    %s28 = scalar_select %p25, %s27, %s18
    %p29 = scmp.ge.s32.totalorder %s28, 4
    %s30 = scalar_select %p29, 0, %s28
    %s31 = sld [smem:[#allocation3 + %s19]]
    %s32 = sld [smem:[#allocation3 + %s26]]
    %s33 = ssub.s32 %s31, %s32
    %p34 = scmp.eq.s32.totalorder %s33, 0
    %s36 = sadd.s32 %s35, 1
    %s37 = scalar_select %p34, %s35, %s36
    %p40 = pneg %p34
    %p41 = scmp.eq.s32.totalorder %s11, 3
    %p42 = por %p40, %p41
    %p43 = scmp.ne.s32.totalorder %s35, %s38
    %p44 = scmp.eq.s32.totalorder %s11, 0
    %p45 = por %p43, %p44
    %p46 = scmp.ne.s32.totalorder %s35, %s38
    %p47 = scmp.eq.s32.totalorder %s16, 3
    %p48 = por %p46, %p47
    %p49 = scmp.ne.s32.totalorder %s38, %s39
    %p50 = scmp.eq.s32.totalorder %s16, 0
    %p51 = por %p49, %p50
    %p52 = scmp.ne.s32.totalorder %s38, %s39
    %p53 = scmp.eq.s32.totalorder %s17, 3
    %p54 = por %p52, %p53
    %p56 = scmp.ne.s32.totalorder %s39, %s55
    %p57 = scmp.eq.s32.totalorder %s17, 0
    %p58 = por %p56, %p57
    %s59 = ssub.s32 %s18, %s30
    %s60 = ssub.s32 %s19, %s26
    %s61 = sor.u32 %s59, %s60
    %p62 = scmp.eq.s32.totalorder %s61, 0
    %s64 = sadd.s32 %s63, 1
    %s65 = scalar_select %p62, %s63, %s64
    %p68 = pneg %p62
    %p69 = scmp.eq.s32.totalorder %s11, 3
    %p70 = por %p68, %p69
    %p71 = scmp.ne.s32.totalorder %s63, %s66
    %p72 = scmp.eq.s32.totalorder %s11, 0
    %p73 = por %p71, %p72
    %p74 = scmp.ne.s32.totalorder %s63, %s66
    %p75 = scmp.eq.s32.totalorder %s16, 3
    %p76 = por %p74, %p75
    %p77 = scmp.ne.s32.totalorder %s66, %s67
    %p78 = scmp.eq.s32.totalorder %s16, 0
    %p79 = por %p77, %p78
    %p80 = scmp.ne.s32.totalorder %s66, %s67
    %p81 = scmp.eq.s32.totalorder %s17, 3
    %p82 = por %p80, %p81
    %p84 = scmp.ne.s32.totalorder %s67, %s83
    %p85 = scmp.eq.s32.totalorder %s17, 0
    %p86 = por %p84, %p85
    %s87 = sld [smem:[#allocation3 + %s19]]
    %s88 = sld [smem:[#allocation3 + %s26]]
    %s89 = ssub.s32 %s87, %s88
    %p90 = scmp.eq.s32.totalorder %s89, 0
    %s92 = sadd.s32 %s91, 1
    %s93 = scalar_select %p90, %s91, %s92
    %p96 = pneg %p90
    %p97 = scmp.eq.s32.totalorder %s11, 3
    %p98 = por %p96, %p97
    %p99 = scmp.ne.s32.totalorder %s91, %s94
    %p100 = scmp.eq.s32.totalorder %s11, 0
    %p101 = por %p99, %p100
    %p102 = scmp.ne.s32.totalorder %s91, %s94
    %p103 = scmp.eq.s32.totalorder %s16, 3
    %p104 = por %p102, %p103
    %p105 = scmp.ne.s32.totalorder %s94, %s95
    %p106 = scmp.eq.s32.totalorder %s16, 0
    %p107 = por %p105, %p106
    %p108 = scmp.ne.s32.totalorder %s94, %s95
    %p109 = scmp.eq.s32.totalorder %s17, 3
    %p110 = por %p108, %p109
    %p112 = scmp.ne.s32.totalorder %s95, %s111
    %p113 = scmp.eq.s32.totalorder %s17, 0
    %p114 = por %p112, %p113
    %s115 = ssub.s32 %s18, %s30
    %s116 = ssub.s32 %s19, %s26
    %s117 = sor.u32 %s115, %s116
    %p118 = scmp.eq.s32.totalorder %s117, 0
    %s120 = sadd.s32 %s119, 1
    %s121 = scalar_select %p118, %s119, %s120
    %p124 = pneg %p118
    %p125 = scmp.eq.s32.totalorder %s11, 3
    %p126 = por %p124, %p125
    %p127 = scmp.ne.s32.totalorder %s119, %s122
    %p128 = scmp.eq.s32.totalorder %s11, 0
    %p129 = por %p127, %p128
    %p130 = scmp.ne.s32.totalorder %s119, %s122
    %p131 = scmp.eq.s32.totalorder %s16, 3
    %p132 = por %p130, %p131
    %p133 = scmp.ne.s32.totalorder %s122, %s123
    %p134 = scmp.eq.s32.totalorder %s16, 0
    %p135 = por %p133, %p134
    %p136 = scmp.ne.s32.totalorder %s122, %s123
    %p137 = scmp.eq.s32.totalorder %s17, 3
    %p138 = por %p136, %p137
    %p140 = scmp.ne.s32.totalorder %s123, %s139
    %p141 = scmp.eq.s32.totalorder %s17, 0
    %p142 = por %p140, %p141
    %p143 = scmp.le.s32.totalorder 1, %s11
    %p144 = scmp.lt.s32.totalorder %s11, 5
    %p145 = pnand %p143, %p144
    %p146 = pneg %p145
    // Predicated region
    $region9: #{multi_resolution_discriminator_forward.20} parent=5 // pred_check
      _
    $region10: #{multi_resolution_discriminator_forward.20} parent=5 // pred_check_branch
      %148 = sbr.rel (%p145) target = $region12
    $region11: #{multi_resolution_discriminator_forward.20} parent=5 // pred_region
      %s149 = ssub.s32 %s11, 1
      // Predicated region
      $region13: #{multi_resolution_discriminator_forward.20} parent=11 // pred_check
        %p150 = pneg %p51
      $region14: #{multi_resolution_discriminator_forward.20} parent=11 // pred_check_branch
        %152 = sbr.rel (%p150) target = $region16
      $region15: #{multi_resolution_discriminator_forward.20} parent=11 // pred_region
        %s153 = sld [smem:[#allocation3 + %s21]]
        %p154 = scmp.lt.s32.totalorder %s153, 0
        %s155 = scalar_select %p154, %s153, 0
        %s156 = smul.addr %s155, 3
        %s157 = smul.addr %s156, 4
        %s158 = scalar_lea.vmem %s1, %s157
        %s159 = sld [smem:[#allocation3 + %s21]]
      $region16: #{multi_resolution_discriminator_forward.20} parent=11 // pred_fallthru
        _
      // Predicated region
      $region17: #{multi_resolution_discriminator_forward.20} parent=11 // pred_check
        %p160 = pneg %p107
      $region18: #{multi_resolution_discriminator_forward.20} parent=11 // pred_check_branch
        %162 = sbr.rel (%p160) target = $region20
      $region19: #{multi_resolution_discriminator_forward.20} parent=11 // pred_region
        %s163 = sld [smem:[#allocation3 + %s21]]
        %p164 = scmp.lt.s32.totalorder %s163, 0
        %s165 = scalar_select %p164, %s163, 0
        %s166 = smul.addr %s165, 8
        %s167 = scalar_lea.vmem %s3, %s166
        %s168 = sld [smem:[#allocation3 + %s21]]
      $region20: #{multi_resolution_discriminator_forward.20} parent=11 // pred_fallthru
        _
    $region12: #{multi_resolution_discriminator_forward.20} parent=5 // pred_fallthru
      _
    %p169 = scmp.lt.s32.totalorder %s11, 4
    // Predicated region
    $region21: #{multi_resolution_discriminator_forward.20} parent=5 // pred_check
      %p170 = pneg %p169
    $region22: #{multi_resolution_discriminator_forward.20} parent=5 // pred_check_branch
      %172 = sbr.rel (%p170) target = $region24
    $region23: #{multi_resolution_discriminator_forward.20} parent=5 // pred_region
      // Predicated region
      $region25: #{multi_resolution_discriminator_forward.20} parent=23 // pred_check
        %p173 = pneg %p73
      $region26: #{multi_resolution_discriminator_forward.20} parent=23 // pred_check_branch
        %175 = sbr.rel (%p173) target = $region28
      $region27: #{multi_resolution_discriminator_forward.20} parent=23 // pred_region
        %p176 = scmp.lt.s32.totalorder %s18, 3
        %s177 = scalar_select %p176, %s18, 3
        %p178 = scmp.lt.s32.totalorder %s19, 0
        %s179 = scalar_select %p178, %s19, 0
        %s180 = smul.addr %s177, 36
        %s181 = sadd.s32 %s179, %s180
        %s182 = smul.addr %s181, 4
        %s183 = scalar_lea.vmem %s2, %s182
      $region28: #{multi_resolution_discriminator_forward.20} parent=23 // pred_fallthru
        _
    $region24: #{multi_resolution_discriminator_forward.20} parent=5 // pred_fallthru
      _
    %p184 = scmp.le.s32.totalorder 1, %s11
    %p185 = scmp.lt.s32.totalorder %s11, 5
    %p186 = pnand %p184, %p185
    %p187 = pneg %p186
    // Predicated region
    $region29: #{multi_resolution_discriminator_forward.20} parent=5 // pred_check
      _
    $region30: #{multi_resolution_discriminator_forward.20} parent=5 // pred_check_branch
      %189 = sbr.rel (%p186) target = $region32
    $region31: #{multi_resolution_discriminator_forward.20} parent=5 // pred_region
      %s190 = ssub.s32 %s11, 1
      %s191 = sld [smem:[#allocation3 + %s21]]
      %p192 = scmp.lt.s32.totalorder %s191, 0
      %s193 = scalar_select %p192, %s191, 0
      %s194 = smul.addr %s193, 3
      %s195 = smul.addr %s194, 4
      %s196 = scalar_lea.vmem %s1, %s195
      %p197 = pneg %p51
      %p198 = pneg %p48
      %p199 = scmp.lt.s32.totalorder %s20, 3
      %s200 = scalar_select %p199, %s20, 3
      %p201 = scmp.lt.s32.totalorder %s21, 0
      %s202 = scalar_select %p201, %s21, 0
      %s203 = smul.addr %s200, 36
      %s204 = sadd.s32 %s202, %s203
      %s205 = smul.addr %s204, 4
      %s206 = scalar_lea.vmem %s2, %s205
      %p207 = pneg %p79
      %p208 = pneg %p76
      %s209 = sld [smem:[#allocation3 + %s21]]
      %p210 = scmp.lt.s32.totalorder %s209, 0
      %s211 = scalar_select %p210, %s209, 0
      %s212 = smul.addr %s211, 8
      %s213 = scalar_lea.vmem %s3, %s212
      %p214 = pneg %p107
      %p215 = pneg %p104
      %p216 = pneg %p135
      %p217 = pneg %p132
      %p218 = scmp.lt.s32.totalorder %s20, 3
      %s219 = scalar_select %p218, %s20, 3
      %p220 = scmp.lt.s32.totalorder %s21, 0
      %s221 = scalar_select %p220, %s21, 0
      %s222 = sadd.s32 %s221, %s219
      %s223 = smul.addr %s222, 4
      %s224 = scalar_lea.vmem %s4, %s223
      %s225 = sld [smem:[#allocation3 + %s21]]
      %p226 = scmp.lt.s32.totalorder %s225, 0
      %s227 = scalar_select %p226, %s225, 0
      %s228 = smul.addr %s227, 3
      %s229 = smul.addr %s228, 4
      %s230 = scalar_lea.vmem %s1, %s229
      %s231 = sld [smem:[#allocation3 + %s21]]
      %p232 = scmp.lt.s32.totalorder %s20, 3
      %s233 = scalar_select %p232, %s20, 3
      %p234 = scmp.lt.s32.totalorder %s21, 0
      %s235 = scalar_select %p234, %s21, 0
      %s236 = smul.addr %s233, 36
      %s237 = sadd.s32 %s235, %s236
      %s238 = smul.addr %s237, 4
      %s239 = scalar_lea.vmem %s2, %s238
      %s240 = sld [smem:[#allocation3 + %s21]]
      %p241 = scmp.lt.s32.totalorder %s240, 0
      %s242 = scalar_select %p241, %s240, 0
      %s243 = smul.addr %s242, 8
      %s244 = scalar_lea.vmem %s3, %s243
      %s245 = sld [smem:[#allocation3 + %s21]]
      %p246 = scmp.lt.s32.totalorder %s20, 3
      %s247 = scalar_select %p246, %s20, 3
      %p248 = scmp.lt.s32.totalorder %s21, 0
      %s249 = scalar_select %p248, %s21, 0
      %s250 = sadd.s32 %s249, %s247
      %s251 = smul.addr %s250, 4
      %s252 = scalar_lea.vmem %s4, %s251
      %v254 = vld [vmem:[%s230] sm:$0xff]
      %v255 = vld [vmem:[%s230 + $0x8] sm:$0xf]
      %v256 = vld [vmem:[%s239] sm:$0xf]
      %v257 = vld [vmem:[%s239 + $0x4] sm:$0xf]
      %v258 = vld [vmem:[%s239 + $0x8] sm:$0xf]
      %v259 = vld [vmem:[%s239 + $0xc] sm:$0xf]
      %v260 = vld [vmem:[%s239 + $0x10] sm:$0xf]
      %v261 = vld [vmem:[%s239 + $0x14] sm:$0xf]
      %v262 = vld [vmem:[%s239 + $0x18] sm:$0xf]
      %v263 = vld [vmem:[%s239 + $0x1c] sm:$0xf]
      %v264 = vld [vmem:[%s239 + $0x20] sm:$0xf]
      %v265 = vld [vmem:[%s239 + $0x24] sm:$0xf]
      %v266 = vld [vmem:[%s239 + $0x28] sm:$0xf]
      %v267 = vld [vmem:[%s239 + $0x2c] sm:$0xf]
      %v268 = vld [vmem:[%s239 + $0x30] sm:$0xf]
      %v269 = vld [vmem:[%s239 + $0x34] sm:$0xf]
      %v270 = vld [vmem:[%s239 + $0x38] sm:$0xf]
      %v271 = vld [vmem:[%s239 + $0x3c] sm:$0xf]
      %v272 = vld [vmem:[%s239 + $0x40] sm:$0xf]
      %v273 = vld [vmem:[%s239 + $0x44] sm:$0xf]
      %v274 = vld [vmem:[%s239 + $0x48] sm:$0xf]
      %v275 = vld [vmem:[%s239 + $0x4c] sm:$0xf]
      %v276 = vld [vmem:[%s239 + $0x50] sm:$0xf]
      %v277 = vld [vmem:[%s239 + $0x54] sm:$0xf]
      %v278 = vld [vmem:[%s239 + $0x58] sm:$0xf]
      %v279 = vld [vmem:[%s239 + $0x5c] sm:$0xf]
      %v280 = vld [vmem:[%s239 + $0x60] sm:$0xf]
      %v281 = vld [vmem:[%s239 + $0x64] sm:$0xf]
      %v282 = vld [vmem:[%s239 + $0x68] sm:$0xf]
      %v283 = vld [vmem:[%s239 + $0x6c] sm:$0xf]
      %v284 = vld [vmem:[%s239 + $0x70] sm:$0xf]
      %v285 = vld [vmem:[%s239 + $0x74] sm:$0xf]
      %v286 = vld [vmem:[%s239 + $0x78] sm:$0xf]
      %v287 = vld [vmem:[%s239 + $0x7c] sm:$0xf]
      %v288 = vld [vmem:[%s239 + $0x80] sm:$0xf]
      %v289 = vld [vmem:[%s239 + $0x84] sm:$0xf]
      %v290 = vld [vmem:[%s239 + $0x88] sm:$0xf]
      %v291 = vld [vmem:[%s239 + $0x8c] sm:$0xf]
      %v292 = vld [vmem:[%s244] sm:$0xff]
      %294 = vset.pattern.permute.xlu0 0
      %295 = vperm.xlu0 %294, %v292
      %v296 = vpop.permute.xlu0 %295
      %v300 = vunpack.c.l.b16 %v254
      %v301 = vunpack.c.h.b16 %v254
      %v302 = vunpack.c.l.b16 %v255
      %v303 = vpack.c.b16 %v300, %v300
      %v304 = vpack.c.b16 %v301, %v301
      %v305 = vpack.c.b16 %v302, %v302
      %v344 = vunpack.c.l.b16 %v256
      %v345 = vunpack.c.l.b16 %v257
      %v346 = vunpack.c.l.b16 %v258
      %v347 = vunpack.c.l.b16 %v259
      %v348 = vunpack.c.l.b16 %v260
      %v349 = vunpack.c.l.b16 %v261
      %v350 = vunpack.c.l.b16 %v262
      %v351 = vunpack.c.l.b16 %v263
      %v352 = vunpack.c.l.b16 %v264
      %v353 = vunpack.c.l.b16 %v265
      %v354 = vunpack.c.l.b16 %v266
      %v355 = vunpack.c.l.b16 %v267
      %v356 = vunpack.c.l.b16 %v268
      %v357 = vunpack.c.l.b16 %v269
      %v358 = vunpack.c.l.b16 %v270
      %v359 = vunpack.c.l.b16 %v271
      %v360 = vunpack.c.l.b16 %v272
      %v361 = vunpack.c.l.b16 %v273
      %v362 = vunpack.c.l.b16 %v274
      %v363 = vunpack.c.l.b16 %v275
      %v364 = vunpack.c.l.b16 %v276
      %v365 = vunpack.c.l.b16 %v277
      %v366 = vunpack.c.l.b16 %v278
      %v367 = vunpack.c.l.b16 %v279
      %v368 = vunpack.c.l.b16 %v280
      %v369 = vunpack.c.l.b16 %v281
      %v370 = vunpack.c.l.b16 %v282
      %v371 = vunpack.c.l.b16 %v283
      %v372 = vunpack.c.l.b16 %v284
      %v373 = vunpack.c.l.b16 %v285
      %v374 = vunpack.c.l.b16 %v286
      %v375 = vunpack.c.l.b16 %v287
      %v376 = vunpack.c.l.b16 %v288
      %v377 = vunpack.c.l.b16 %v289
      %v378 = vunpack.c.l.b16 %v290
      %v379 = vunpack.c.l.b16 %v291
      %v380 = vpack.c.b16 %v345, %v344
      %v381 = vpack.c.b16 %v347, %v346
      %v382 = vpack.c.b16 %v349, %v348
      %v383 = vpack.c.b16 %v351, %v350
      %v384 = vpack.c.b16 %v353, %v352
      %v385 = vpack.c.b16 %v355, %v354
      %v386 = vpack.c.b16 %v357, %v356
      %v387 = vpack.c.b16 %v359, %v358
      %v388 = vpack.c.b16 %v361, %v360
      %v389 = vpack.c.b16 %v363, %v362
      %v390 = vpack.c.b16 %v365, %v364
      %v391 = vpack.c.b16 %v367, %v366
      %v392 = vpack.c.b16 %v369, %v368
      %v393 = vpack.c.b16 %v371, %v370
      %v394 = vpack.c.b16 %v373, %v372
      %v395 = vpack.c.b16 %v375, %v374
      %v396 = vpack.c.b16 %v377, %v376
      %v397 = vpack.c.b16 %v379, %v378
      %vm416 = vcmask 261120
      %v418 = vsel %vm416, %v305, 0
      %420 = vmatprep.subr.bf16.mxu0 0
      %421 = vmatpush1.bf16.msra.mxu0 %v387
      %422 = vmatprep.subr.bf16.mxu0 0
      %423 = vmatpush1.bf16.msra.mxu0 %v386
      %424 = vmatprep.subr.bf16.mxu0 0
      %425 = vmatpush1.bf16.msra.mxu0 %v385
      %426 = vmatprep.subr.bf16.mxu0 0
      %427 = vmatpush1.bf16.msra.mxu0 %v384
      %428 = vmatprep.subr.bf16.mxu0 0
      %429 = vmatpush1.bf16.msra.mxu0 %v383
      %430 = vmatprep.subr.bf16.mxu0 0
      %431 = vmatpush1.bf16.msra.mxu0 %v382
      %432 = vmatprep.subr.bf16.mxu0 0
      %433 = vmatpush1.bf16.msra.mxu0 %v381
      %434 = vmatprep.subr.bf16.mxu0 0
      %435 = vmatpush1.bf16.msra.mxu0 %v380
      %436 = vmatprep.subr.bf16.mxu0 0
      %437 = vmatpush2.bf16.msra.mxu0 %v395
      %438 = vmatprep.subr.bf16.mxu0 0
      %439 = vmatpush2.bf16.msra.mxu0 %v394
      %440 = vmatprep.subr.bf16.mxu0 0
      %441 = vmatpush2.bf16.msra.mxu0 %v393
      %442 = vmatprep.subr.bf16.mxu0 0
      %443 = vmatpush2.bf16.msra.mxu0 %v392
      %444 = vmatprep.subr.bf16.mxu0 0
      %445 = vmatpush2.bf16.msra.mxu0 %v391
      %446 = vmatprep.subr.bf16.mxu0 0
      %447 = vmatpush2.bf16.msra.mxu0 %v390
      %448 = vmatprep.subr.bf16.mxu0 0
      %449 = vmatpush2.bf16.msra.mxu0 %v389
      %450 = vmatprep.subr.bf16.mxu0 0
      %451 = vmatpush2.bf16.msra.mxu0 %v388
      %452 = vmatprep.mubr.bf16.mxu0 %v304
      %453 = vmatmul.mubr.bf16.gmra.mxu0 %v303
      %v454 = vpop.f32.mrf.mxu0
      %v455 = vadd.f32 %v296, %v454
      %v456 = vpop.f32.mrf.mxu0
      %v457 = vpop.f32.mrf.mxu0
      %v458 = vpop.f32.mrf.mxu0
      %459 = vdwg.mxu0
      %460 = vmatprep.subr.bf16.mxu0 0
      %461 = vmatpush1.bf16.msra.mxu0 0
      %462 = vmatprep.subr.bf16.mxu0 0
      %463 = vmatpush1.bf16.msra.mxu0 0
      %464 = vmatprep.subr.bf16.mxu0 0
      %465 = vmatpush1.bf16.msra.mxu0 0
      %466 = vmatprep.subr.bf16.mxu0 0
      %467 = vmatpush1.bf16.msra.mxu0 0
      %468 = vmatprep.subr.bf16.mxu0 0
      %469 = vmatpush1.bf16.msra.mxu0 0
      %470 = vmatprep.subr.bf16.mxu0 0
      %471 = vmatpush1.bf16.msra.mxu0 0
      %472 = vmatprep.subr.bf16.mxu0 0
      %473 = vmatpush1.bf16.msra.mxu0 %v397
      %474 = vmatprep.subr.bf16.mxu0 0
      %475 = vmatpush1.bf16.msra.mxu0 %v396
      %476 = vmatprep.subr.bf16.mxu0 0
      %477 = vmatpush2.bf16.msra.mxu0 0
      %478 = vmatprep.subr.bf16.mxu0 0
      %479 = vmatpush2.bf16.msra.mxu0 0
      %480 = vmatprep.subr.bf16.mxu0 0
      %481 = vmatpush2.bf16.msra.mxu0 0
      %482 = vmatprep.subr.bf16.mxu0 0
      %483 = vmatpush2.bf16.msra.mxu0 0
      %484 = vmatprep.subr.bf16.mxu0 0
      %485 = vmatpush2.bf16.msra.mxu0 0
      %486 = vmatprep.subr.bf16.mxu0 0
      %487 = vmatpush2.bf16.msra.mxu0 0
      %488 = vmatprep.subr.bf16.mxu0 0
      %489 = vmatpush2.bf16.msra.mxu0 0
      %490 = vmatprep.subr.bf16.mxu0 0
      %491 = vmatpush2.bf16.msra.mxu0 0
      %492 = vmatprep.mubr.bf16.mxu0 0
      %493 = vmatmul.mubr.bf16.gmra.mxu0 %v418
      %v494 = vpop.f32.mrf.mxu0
      %v495 = vadd.f32 %v455, %v494
      %v496 = vpop.f32.mrf.mxu0
      %v497 = vpop.f32.mrf.mxu0
      %v498 = vpop.f32.mrf.mxu0
      %499 = vdwg.mxu0
      %v500 = vpack.c.bf16 %v495, %v495
      %501 = vst [vmem:[%s252] sm:$0xf] %v500
      %p502 = scmp.lt.s32.totalorder %s20, 3
      %s503 = scalar_select %p502, %s20, 3
      %p504 = scmp.lt.s32.totalorder %s21, 0
      %s505 = scalar_select %p504, %s21, 0
      %s506 = sadd.s32 %s505, %s503
      %s507 = smul.addr %s506, 4
      %s508 = scalar_lea.vmem %s4, %s507
      // Predicated region
      $region33: #{multi_resolution_discriminator_forward.20} parent=31 // pred_check
        %p509 = pneg %p132
      $region34: #{multi_resolution_discriminator_forward.20} parent=31 // pred_check_branch
        %511 = sbr.rel (%p509) target = $region36
      $region35: #{multi_resolution_discriminator_forward.20} parent=31 // pred_region
        _
      $region36: #{multi_resolution_discriminator_forward.20} parent=31 // pred_fallthru
        _
    $region32: #{multi_resolution_discriminator_forward.20} parent=5 // pred_fallthru
      _
    %p512 = scmp.le.s32.totalorder 2, %s11
    // Predicated region
    $region37: #{multi_resolution_discriminator_forward.20} parent=5 // pred_check
      %p513 = pneg %p512
    $region38: #{multi_resolution_discriminator_forward.20} parent=5 // pred_check_branch
      %515 = sbr.rel (%p513) target = $region40
    $region39: #{multi_resolution_discriminator_forward.20} parent=5 // pred_region
      %s516 = ssub.s32 %s11, 2
      // Predicated region
      $region41: #{multi_resolution_discriminator_forward.20} parent=39 // pred_check
        %p517 = pneg %p138
      $region42: #{multi_resolution_discriminator_forward.20} parent=39 // pred_check_branch
        %519 = sbr.rel (%p517) target = $region44
      $region43: #{multi_resolution_discriminator_forward.20} parent=39 // pred_region
        %p520 = scmp.lt.s32.totalorder %s22, 3
        %s521 = scalar_select %p520, %s22, 3
        %p522 = scmp.lt.s32.totalorder %s23, 0
        %s523 = scalar_select %p522, %s23, 0
        %s524 = sadd.s32 %s523, %s521
        %s525 = smul.addr %s524, 4
        %s526 = scalar_lea.vmem %s4, %s525
      $region44: #{multi_resolution_discriminator_forward.20} parent=39 // pred_fallthru
        _
    $region40: #{multi_resolution_discriminator_forward.20} parent=5 // pred_fallthru
      _
  $region6: #{multi_resolution_discriminator_forward.20} parent=0 // loop_footer
    %s15 = sadd.s32 1, %s11
  $region7: #{multi_resolution_discriminator_forward.20} parent=0 // loop_footer_branch
    %10 = sbr.rel target = $region3
  $region8: #{multi_resolution_discriminator_forward.20} parent=0 // loop_exit
    _

</llo_original>
